<compile_context>
chip_gen: v7x
topology: tpu7x:2x2x1
jax: 0.10.0
libtpu: 0.0.40
codegen_flags: <defaults>
</compile_context>

<pallas_src>
import functools

import jax
import jax.numpy as jnp
from jax.experimental import pallas as pl
from jax.experimental.pallas import tpu as pltpu


def _round_up(x, m):
    return (x + m - 1) // m * m


def _pick_m_tiling(m):
    """Whole-M block when small (no padding); otherwise 256-row tiles."""
    mp = _round_up(m, 8)
    if mp <= 256:
        return mp, mp
    tm = 256
    return _round_up(m, tm), tm


# --------------------------------------------------------------------------
# Fused GEMM kernel:  out = act(relu?(A) @ B + bias) [+ residual]
# --------------------------------------------------------------------------

def _gemm_fused_kernel(*refs, activation, pre_relu_a, has_residual):
    if has_residual:
        a_ref, b_ref, bias_ref, res_ref, o_ref = refs
    else:
        a_ref, b_ref, bias_ref, o_ref = refs
        res_ref = None
    a = a_ref[...]
    if pre_relu_a:                       # fused ReLU on the input activation
        a = jnp.maximum(a, 0)
    acc = jnp.dot(a, b_ref[...], preferred_element_type=jnp.float32)
    acc = acc + bias_ref[...]            # (tm, N) + (1, N)
    if activation == "relu":
        acc = jnp.maximum(acc, 0.0)
    elif activation == "sigmoid":
        acc = jax.nn.sigmoid(acc)
    if has_residual:                     # fused residual add (skip connection)
        acc = acc + res_ref[...].astype(jnp.float32)
    o_ref[...] = acc.astype(o_ref.dtype)


def matmul_bias_act(a, b, bias, residual=None, activation="none",
                    pre_relu_a=False, out_dtype=jnp.bfloat16):
    """act(relu?(A) @ B + bias) (+ residual).  A:(M,K)  B:(K,N)  bias:(N,)."""
    M, K = a.shape
    K2, N = b.shape
    assert K == K2
    Mp, tm = _pick_m_tiling(M)

    a_bf = a.astype(jnp.bfloat16)
    if Mp != M:
        a_bf = jnp.pad(a_bf, ((0, Mp - M), (0, 0)))
    b_bf = b.astype(jnp.bfloat16)
    bias2 = bias.astype(jnp.float32).reshape(1, N)

    in_arrays = [a_bf, b_bf, bias2]
    in_specs = [
        pl.BlockSpec((tm, K), lambda i: (i, 0)),   # single K block (K is small)
        pl.BlockSpec((K, N), lambda i: (0, 0)),    # weights resident
        pl.BlockSpec((1, N), lambda i: (0, 0)),
    ]
    has_residual = residual is not None
    if has_residual:
        r = residual.reshape(M, N).astype(jnp.bfloat16)
        if Mp != M:
            r = jnp.pad(r, ((0, Mp - M), (0, 0)))
        in_arrays.append(r)
        in_specs.append(pl.BlockSpec((tm, N), lambda i: (i, 0)))

    kernel = functools.partial(_gemm_fused_kernel, activation=activation,
                               pre_relu_a=pre_relu_a, has_residual=has_residual)
    out = pl.pallas_call(
        kernel,
        out_shape=jax.ShapeDtypeStruct((Mp, N), out_dtype),
        grid=(Mp // tm,),
        in_specs=in_specs,
        out_specs=pl.BlockSpec((tm, N), lambda i: (i, 0)),
        compiler_params=pltpu.CompilerParams(
            dimension_semantics=("parallel",)),
    )(*in_arrays)
    if Mp != M:
        out = out[:M]
    return out


# --------------------------------------------------------------------------
# Fused pre-quantization 1x1 conv + nearest-codebook quantizer
# --------------------------------------------------------------------------

def _prequant_quantize_kernel(a_ref, b_ref, bias_ref, et_ref, enc_ref, q_ref):
    # pre-ReLU (= residual stack's trailing ReLU), 1x1 conv, codebook lookup.
    a = jnp.maximum(a_ref[...], 0)
    enc = jnp.dot(a, b_ref[...], preferred_element_type=jnp.float32) + bias_ref[...]
    et = et_ref[...]                                     # (D, K) codebook^T, f32
    z2 = jnp.sum(enc * enc, axis=-1, keepdims=True)      # (tm, 1)
    e2 = jnp.sum(et * et, axis=0, keepdims=True)         # (1, K)
    ze = jnp.dot(enc, et, preferred_element_type=jnp.float32)        # (tm, K)
    d = z2 - 2.0 * ze + e2                               # ||z - e_k||^2 (f32)
    kiota = jax.lax.broadcasted_iota(jnp.int32, d.shape, 1)
    dmin = jnp.min(d, axis=-1, keepdims=True)
    idx = jnp.min(jnp.where(d == dmin, kiota, d.shape[1]),
                  axis=-1, keepdims=True)                # first-min == argmin
    onehot = (kiota == idx).astype(jnp.float32)          # (tm, K)
    q = jax.lax.dot_general(onehot, et, (((1,), (1,)), ((), ())),
                            preferred_element_type=jnp.float32)      # (tm, D)
    enc_ref[...] = enc.astype(enc_ref.dtype)
    q_ref[...] = q.astype(q_ref.dtype)


def prequant_and_quantize(h, w_mat, bias, codebook):
    """h: (N,H,W,C) pre-ReLU stack output -> (encoded, quantized), (N,H,W,D) f32."""
    N, H, W, C = h.shape
    D = w_mat.shape[1]
    K = codebook.shape[0]
    M = N * H * W
    Mp, tm = _pick_m_tiling(M)
    a = h.reshape(M, C).astype(jnp.bfloat16)
    if Mp != M:
        a = jnp.pad(a, ((0, Mp - M), (0, 0)))
    enc, q = pl.pallas_call(
        _prequant_quantize_kernel,
        out_shape=(jax.ShapeDtypeStruct((Mp, D), jnp.float32),
                   jax.ShapeDtypeStruct((Mp, D), jnp.float32)),
        grid=(Mp // tm,),
        in_specs=[
            pl.BlockSpec((tm, C), lambda i: (i, 0)),
            pl.BlockSpec((C, D), lambda i: (0, 0)),
            pl.BlockSpec((1, D), lambda i: (0, 0)),
            pl.BlockSpec((D, K), lambda i: (0, 0)),      # codebook^T resident
        ],
        out_specs=[pl.BlockSpec((tm, D), lambda i: (i, 0)),
                   pl.BlockSpec((tm, D), lambda i: (i, 0))],
        compiler_params=pltpu.CompilerParams(
            dimension_semantics=("parallel",)),
    )(a, w_mat.astype(jnp.bfloat16), bias.astype(jnp.float32).reshape(1, D),
      codebook.astype(jnp.float32).T)
    if Mp != M:
        enc, q = enc[:M], q[:M]
    return enc.reshape(N, H, W, D), q.reshape(N, H, W, D)


# --------------------------------------------------------------------------
# Conv layers (NHWC im2col glue in JAX, fused GEMM in Pallas)
# --------------------------------------------------------------------------

def _conv_w_to_mat(w):
    """PyTorch Conv2d weight (Cout,Cin,kh,kw) -> (kh*kw*Cin, Cout) GEMM matrix."""
    cout, cin, kh, kw = w.shape
    return w.transpose(2, 3, 1, 0).reshape(kh * kw * cin, cout)


def _convT_w_to_mat(w):
    """PyTorch ConvTranspose2d weight (Cin,Cout,kh,kw) -> equivalent conv matrix."""
    w = jnp.flip(w, axis=(-2, -1)).transpose(1, 0, 2, 3)   # (Cout, Cin, kh, kw)
    return _conv_w_to_mat(w)


def conv2d_nhwc(x, w_mat, bias, kh, kw, stride, padding, activation="none",
                pre_relu_a=False, residual=None, out_dtype=jnp.bfloat16):
    """x: (N,H,W,Cin) -> (N,Ho,Wo,Cout).  w_mat: (kh*kw*Cin, Cout)."""
    N, H, W, Cin = x.shape
    Cout = w_mat.shape[1]
    Ho = (H + 2 * padding - kh) // stride + 1
    Wo = (W + 2 * padding - kw) // stride + 1
    if kh == 1 and kw == 1 and stride == 1 and padding == 0:
        a = x.reshape(N * H * W, Cin)                      # 1x1 conv: no im2col
    else:
        xp = x
        if padding > 0:
            xp = jnp.pad(x, ((0, 0), (padding, padding), (padding, padding), (0, 0)))
        # TODO(synk): move im2col into the kernel (data-dependent index maps)
        # to avoid the kh*kw-fold replication in HBM.
        cols = []
        for i in range(kh):
            for j in range(kw):
                cols.append(xp[:, i:i + (Ho - 1) * stride + 1:stride,
                               j:j + (Wo - 1) * stride + 1:stride, :])
        a = jnp.concatenate(cols, axis=-1).reshape(N * Ho * Wo, kh * kw * Cin)
    res_mat = residual.reshape(N * Ho * Wo, Cout) if residual is not None else None
    out = matmul_bias_act(a, w_mat, bias, residual=res_mat,
                          activation=activation, pre_relu_a=pre_relu_a,
                          out_dtype=out_dtype)
    return out.reshape(N, Ho, Wo, Cout)


def conv_transpose2d_nhwc(x, w_mat, bias, kh, kw, stride, padding,
                          activation="none", pre_relu_a=False,
                          out_dtype=jnp.bfloat16):
    """PyTorch ConvTranspose2d in NHWC via zero-insertion + regular conv."""
    # TODO(synk): sub-pixel (stride^2-phase) decomposition would avoid feeding
    # ~75% zero rows to the MXU at stride=2; kept as dilate+conv for clarity.
    assert kh == kw, "square kernels assumed (true for this model)"
    N, H, W, Cin = x.shape
    Hd, Wd = (H - 1) * stride + 1, (W - 1) * stride + 1
    xz = jnp.zeros((N, Hd, Wd, Cin), x.dtype).at[:, ::stride, ::stride, :].set(x)
    return conv2d_nhwc(xz, w_mat, bias, kh, kw, 1, kh - 1 - padding,
                       activation=activation, pre_relu_a=pre_relu_a,
                       out_dtype=out_dtype)


def residual_stack_pre_relu(h, res_params):
    """x + Conv1x1(ReLU(Conv3x3(ReLU(x)))) blocks.  The stack's trailing ReLU is
    NOT applied here: callers fuse it into the next conv via pre_relu_a=True."""
    for (w1m, b1, w2m, b2) in res_params:
        r = conv2d_nhwc(h, w1m, b1, 3, 3, 1, 1, activation="relu", pre_relu_a=True)
        h = conv2d_nhwc(r, w2m, b2, 1, 1, 1, 0, activation="none", residual=h)
    return h


# --------------------------------------------------------------------------
# QVAE forward
# --------------------------------------------------------------------------

def qvae_forward(params, x_nchw):
    p = params
    # NCHW -> NHWC bf16 once at the boundary.
    x = x_nchw.transpose(0, 2, 3, 1).astype(jnp.bfloat16)

    # ----- ResEncoder -----
    h = conv2d_nhwc(x, p["e1_wm"], p["e1_b"], 4, 4, 2, 1, "relu")
    h = conv2d_nhwc(h, p["e2_wm"], p["e2_b"], 4, 4, 2, 1, "relu")
    h = conv2d_nhwc(h, p["e3_wm"], p["e3_b"], 3, 3, 1, 1, "none")
    h = residual_stack_pre_relu(h, p["enc_res"])     # trailing ReLU fused below

    # ----- pre-quantization 1x1 conv + nearest-codebook quantizer (fused) -----
    encoded, quantized = prequant_and_quantize(h, p["pq_wm"], p["pq_b"],
                                               p["codebook"])

    # straight-through estimator (forward value == quantized)
    quantized_skip_grad = encoded + jax.lax.stop_gradient(quantized - encoded)

    # ----- ResDecoder -----
    d = conv2d_nhwc(quantized_skip_grad.astype(jnp.bfloat16),
                    p["d1_wm"], p["d1_b"], 3, 3, 1, 1, "none")
    d = residual_stack_pre_relu(d, p["dec_res"])     # trailing ReLU fused below
    d = conv_transpose2d_nhwc(d, p["dt1_wm"], p["dt1_b"], 4, 4, 2, 1,
                              activation="relu", pre_relu_a=True)
    recon = conv_transpose2d_nhwc(d, p["dt2_wm"], p["dt2_b"], 4, 4, 2, 1,
                                  activation="sigmoid", out_dtype=jnp.float32)

    # Back to NCHW at the boundary.
    to_nchw = lambda t: t.transpose(0, 3, 1, 2)
    return to_nchw(encoded), to_nchw(quantized), to_nchw(recon)


# --------------------------------------------------------------------------
# Deterministic parameter construction (weights stored in GEMM layout)
# --------------------------------------------------------------------------

def init_params(key, in_channels=3, num_hiddens=32, num_res_hiddens=16,
                num_res_layers=2, embedding_dim=8, num_embeddings=32,
                rgb_out=True):
    keys = iter(jax.random.split(key, 64))

    def conv_p(cout, cin, kh, kw):
        bound = 1.0 / (cin * kh * kw) ** 0.5
        w = jax.random.uniform(next(keys), (cout, cin, kh, kw), jnp.float32,
                               -bound, bound)
        b = jax.random.uniform(next(keys), (cout,), jnp.float32, -bound, bound)
        return _conv_w_to_mat(w), b

    def convT_p(cin, cout, kh, kw):
        bound = 1.0 / (cin * kh * kw) ** 0.5
        w = jax.random.uniform(next(keys), (cin, cout, kh, kw), jnp.float32,
                               -bound, bound)
        b = jax.random.uniform(next(keys), (cout,), jnp.float32, -bound, bound)
        return _convT_w_to_mat(w), b

    def res_params():
        blocks = []
        for _ in range(num_res_layers):
            w1m, b1 = conv_p(num_res_hiddens, num_hiddens, 3, 3)
            w2m, b2 = conv_p(num_hiddens, num_res_hiddens, 1, 1)
            blocks.append((w1m, b1, w2m, b2))
        return blocks

    out_channels = 3 if rgb_out else 1
    p = {}
    p["e1_wm"], p["e1_b"] = conv_p(num_hiddens // 2, in_channels, 4, 4)
    p["e2_wm"], p["e2_b"] = conv_p(num_hiddens, num_hiddens // 2, 4, 4)
    p["e3_wm"], p["e3_b"] = conv_p(num_hiddens, num_hiddens, 3, 3)
    p["enc_res"] = res_params()
    p["pq_wm"], p["pq_b"] = conv_p(embedding_dim, num_hiddens, 1, 1)
    p["codebook"] = jax.random.normal(next(keys), (num_embeddings, embedding_dim),
                                      jnp.float32)
    p["d1_wm"], p["d1_b"] = conv_p(num_hiddens, embedding_dim, 3, 3)
    p["dec_res"] = res_params()
    p["dt1_wm"], p["dt1_b"] = convT_p(num_hiddens, num_hiddens // 2, 4, 4)
    p["dt2_wm"], p["dt2_b"] = convT_p(num_hiddens // 2, out_channels, 4, 4)
    return p


if __name__ == "__main__":
    key = jax.random.PRNGKey(0)
    pkey, xkey = jax.random.split(key)
    params = init_params(pkey, in_channels=3, num_hiddens=32, num_res_hiddens=16,
                         num_res_layers=2, embedding_dim=8, num_embeddings=32,
                         rgb_out=True)
    # x in [0, 1] (BCE-compatible image input), NCHW, batch=2, 3x16x16
    x = jax.random.uniform(xkey, (2, 3, 16, 16), jnp.float32)

    fwd = jax.jit(qvae_forward)
    encoded, quantized, recon_x = fwd(params, x)
    jax.block_until_ready((encoded, quantized, recon_x))

    assert encoded.shape == (2, 8, 4, 4)
    assert quantized.shape == (2, 8, 4, 4)
    assert recon_x.shape == x.shape
    assert bool(jnp.all(jnp.isfinite(recon_x)))
    assert bool(jnp.all((recon_x >= 0.0) & (recon_x <= 1.0)))
    print("KERNEL_OK")
</pallas_src>

<mosaic_0001>
module attributes {stable_mosaic.version = 11 : i64} {
  func.func @_gemm_fused_kernel(%arg0: i32, %arg1: memref<128x48xbf16, #tpu.memory_space<vmem>>, %arg2: memref<48x16xbf16, #tpu.memory_space<vmem>>, %arg3: memref<1x16xf32, #tpu.memory_space<vmem>>, %arg4: memref<128x16xbf16, #tpu.memory_space<vmem>>) attributes {dimension_semantics = [#tpu.dimension_semantics<parallel>], iteration_bounds = array<i64: 1>, scalar_prefetch = 0 : i64, scratch_operands = 0 : i64, tpu.core_type = #tpu.core_type<tc>, window_params = [{transform_indices = @transform_0, window_bounds = array<i64: 128, 48>}, {pipeline_mode = #tpu.pipeline_mode<synchronous>, transform_indices = @transform_1, window_bounds = array<i64: 48, 16>}, {pipeline_mode = #tpu.pipeline_mode<synchronous>, transform_indices = @transform_2, window_bounds = array<i64: 1, 16>}, {transform_indices = @transform_3, window_bounds = array<i64: 128, 16>}]} {
    %c0 = arith.constant 0 : index
    %c0_0 = arith.constant 0 : index
    %0 = vector.load %arg1[%c0, %c0_0] : memref<128x48xbf16, #tpu.memory_space<vmem>>, vector<128x48xbf16>
    %c0_1 = arith.constant 0 : index
    %c0_2 = arith.constant 0 : index
    %1 = vector.load %arg2[%c0_1, %c0_2] : memref<48x16xbf16, #tpu.memory_space<vmem>>, vector<48x16xbf16>
    %cst = arith.constant dense<0.000000e+00> : vector<128x16xf32>
    %2 = tpu.matmul %0, %1, %cst {dimension_numbers = #tpu.dot_dimension_numbers<[1], [0], [0], [1], [0, 0, 1, 1], [], []>} : vector<128x48xbf16>, vector<48x16xbf16>, vector<128x16xf32> -> vector<128x16xf32>
    %c0_3 = arith.constant 0 : index
    %c0_4 = arith.constant 0 : index
    %3 = vector.load %arg3[%c0_3, %c0_4] : memref<1x16xf32, #tpu.memory_space<vmem>>, vector<1x16xf32>
    %4 = vector.broadcast %3 : vector<1x16xf32> to vector<128x16xf32>
    %5 = arith.addf %2, %4 : vector<128x16xf32>
    %cst_5 = arith.constant 0.000000e+00 : f32
    %6 = vector.broadcast %cst_5 : f32 to vector<128x16xf32>
    %7 = arith.maximumf %5, %6 : vector<128x16xf32>
    %8 = arith.truncf %7 : vector<128x16xf32> to vector<128x16xbf16>
    %c0_6 = arith.constant 0 : index
    %c0_7 = arith.constant 0 : index
    %9 = vector.load %arg4[%c0_6, %c0_7] : memref<128x16xbf16, #tpu.memory_space<vmem>>, vector<128x16xbf16>
    tpu.vector_store %arg4[%c0_6, %c0_7], %8 {strides = array<i32>} : memref<128x16xbf16, #tpu.memory_space<vmem>>, vector<128x16xbf16>,
    return
  }
  func.func @transform_0(%arg0: i32) -> (i32, i32) {
    %c0_i32 = arith.constant 0 : i32
    %c0_i32_0 = arith.constant 0 : i32
    return %arg0, %c0_i32 : i32, i32
  }
  func.func @transform_1(%arg0: i32) -> (i32, i32) {
    %c0_i32 = arith.constant 0 : i32
    %c0_i32_0 = arith.constant 0 : i32
    %c0_i32_1 = arith.constant 0 : i32
    return %c0_i32, %c0_i32_0 : i32, i32
  }
  func.func @transform_2(%arg0: i32) -> (i32, i32) {
    %c0_i32 = arith.constant 0 : i32
    %c0_i32_0 = arith.constant 0 : i32
    %c0_i32_1 = arith.constant 0 : i32
    return %c0_i32, %c0_i32_0 : i32, i32
  }
  func.func @transform_3(%arg0: i32) -> (i32, i32) {
    %c0_i32 = arith.constant 0 : i32
    %c0_i32_0 = arith.constant 0 : i32
    return %arg0, %c0_i32 : i32, i32
  }
}

module attributes {stable_mosaic.version = 11 : i64} {
  func.func @_gemm_fused_kernel(%arg0: i32, %arg1: memref<32x256xbf16, #tpu.memory_space<vmem>>, %arg2: memref<256x32xbf16, #tpu.memory_space<vmem>>, %arg3: memref<1x32xf32, #tpu.memory_space<vmem>>, %arg4: memref<32x32xbf16, #tpu.memory_space<vmem>>) attributes {dimension_semantics = [#tpu.dimension_semantics<parallel>], iteration_bounds = array<i64: 1>, scalar_prefetch = 0 : i64, scratch_operands = 0 : i64, tpu.core_type = #tpu.core_type<tc>, window_params = [{transform_indices = @transform_0, window_bounds = array<i64: 32, 256>}, {pipeline_mode = #tpu.pipeline_mode<synchronous>, transform_indices = @transform_1, window_bounds = array<i64: 256, 32>}, {pipeline_mode = #tpu.pipeline_mode<synchronous>, transform_indices = @transform_2, window_bounds = array<i64: 1, 32>}, {transform_indices = @transform_3, window_bounds = array<i64: 32, 32>}]} {
    %c0 = arith.constant 0 : index
    %c0_0 = arith.constant 0 : index
    %0 = vector.load %arg1[%c0, %c0_0] : memref<32x256xbf16, #tpu.memory_space<vmem>>, vector<32x256xbf16>
    %c0_1 = arith.constant 0 : index
    %c0_2 = arith.constant 0 : index
    %1 = vector.load %arg2[%c0_1, %c0_2] : memref<256x32xbf16, #tpu.memory_space<vmem>>, vector<256x32xbf16>
    %cst = arith.constant dense<0.000000e+00> : vector<32x32xf32>
    %2 = tpu.matmul %0, %1, %cst {dimension_numbers = #tpu.dot_dimension_numbers<[1], [0], [0], [1], [0, 0, 1, 1], [], []>} : vector<32x256xbf16>, vector<256x32xbf16>, vector<32x32xf32> -> vector<32x32xf32>
    %c0_3 = arith.constant 0 : index
    %c0_4 = arith.constant 0 : index
    %3 = vector.load %arg3[%c0_3, %c0_4] : memref<1x32xf32, #tpu.memory_space<vmem>>, vector<1x32xf32>
    %4 = vector.broadcast %3 : vector<1x32xf32> to vector<32x32xf32>
    %5 = arith.addf %2, %4 : vector<32x32xf32>
    %cst_5 = arith.constant 0.000000e+00 : f32
    %6 = vector.broadcast %cst_5 : f32 to vector<32x32xf32>
    %7 = arith.maximumf %5, %6 : vector<32x32xf32>
    %8 = arith.truncf %7 : vector<32x32xf32> to vector<32x32xbf16>
    %c0_6 = arith.constant 0 : index
    %c0_7 = arith.constant 0 : index
    %9 = vector.load %arg4[%c0_6, %c0_7] : memref<32x32xbf16, #tpu.memory_space<vmem>>, vector<32x32xbf16>
    tpu.vector_store %arg4[%c0_6, %c0_7], %8 {strides = array<i32>} : memref<32x32xbf16, #tpu.memory_space<vmem>>, vector<32x32xbf16>,
    return
  }
  func.func @transform_0(%arg0: i32) -> (i32, i32) {
    %c0_i32 = arith.constant 0 : i32
    %c0_i32_0 = arith.constant 0 : i32
    return %arg0, %c0_i32 : i32, i32
  }
  func.func @transform_1(%arg0: i32) -> (i32, i32) {
    %c0_i32 = arith.constant 0 : i32
    %c0_i32_0 = arith.constant 0 : i32
    %c0_i32_1 = arith.constant 0 : i32
    return %c0_i32, %c0_i32_0 : i32, i32
  }
  func.func @transform_2(%arg0: i32) -> (i32, i32) {
    %c0_i32 = arith.constant 0 : i32
    %c0_i32_0 = arith.constant 0 : i32
    %c0_i32_1 = arith.constant 0 : i32
    return %c0_i32, %c0_i32_0 : i32, i32
  }
  func.func @transform_3(%arg0: i32) -> (i32, i32) {
    %c0_i32 = arith.constant 0 : i32
    %c0_i32_0 = arith.constant 0 : i32
    return %arg0, %c0_i32 : i32, i32
  }
}

module attributes {stable_mosaic.version = 11 : i64} {
  func.func @_gemm_fused_kernel(%arg0: i32, %arg1: memref<32x288xbf16, #tpu.memory_space<vmem>>, %arg2: memref<288x32xbf16, #tpu.memory_space<vmem>>, %arg3: memref<1x32xf32, #tpu.memory_space<vmem>>, %arg4: memref<32x32xbf16, #tpu.memory_space<vmem>>) attributes {dimension_semantics = [#tpu.dimension_semantics<parallel>], iteration_bounds = array<i64: 1>, scalar_prefetch = 0 : i64, scratch_operands = 0 : i64, tpu.core_type = #tpu.core_type<tc>, window_params = [{transform_indices = @transform_0, window_bounds = array<i64: 32, 288>}, {pipeline_mode = #tpu.pipeline_mode<synchronous>, transform_indices = @transform_1, window_bounds = array<i64: 288, 32>}, {pipeline_mode = #tpu.pipeline_mode<synchronous>, transform_indices = @transform_2, window_bounds = array<i64: 1, 32>}, {transform_indices = @transform_3, window_bounds = array<i64: 32, 32>}]} {
    %c0 = arith.constant 0 : index
    %c0_0 = arith.constant 0 : index
    %0 = vector.load %arg1[%c0, %c0_0] : memref<32x288xbf16, #tpu.memory_space<vmem>>, vector<32x288xbf16>
    %c0_1 = arith.constant 0 : index
    %c0_2 = arith.constant 0 : index
    %1 = vector.load %arg2[%c0_1, %c0_2] : memref<288x32xbf16, #tpu.memory_space<vmem>>, vector<288x32xbf16>
    %cst = arith.constant dense<0.000000e+00> : vector<32x32xf32>
    %2 = tpu.matmul %0, %1, %cst {dimension_numbers = #tpu.dot_dimension_numbers<[1], [0], [0], [1], [0, 0, 1, 1], [], []>} : vector<32x288xbf16>, vector<288x32xbf16>, vector<32x32xf32> -> vector<32x32xf32>
    %c0_3 = arith.constant 0 : index
    %c0_4 = arith.constant 0 : index
    %3 = vector.load %arg3[%c0_3, %c0_4] : memref<1x32xf32, #tpu.memory_space<vmem>>, vector<1x32xf32>
    %4 = vector.broadcast %3 : vector<1x32xf32> to vector<32x32xf32>
    %5 = arith.addf %2, %4 : vector<32x32xf32>
    %6 = arith.truncf %5 : vector<32x32xf32> to vector<32x32xbf16>
    %c0_5 = arith.constant 0 : index
    %c0_6 = arith.constant 0 : index
    %7 = vector.load %arg4[%c0_5, %c0_6] : memref<32x32xbf16, #tpu.memory_space<vmem>>, vector<32x32xbf16>
    tpu.vector_store %arg4[%c0_5, %c0_6], %6 {strides = array<i32>} : memref<32x32xbf16, #tpu.memory_space<vmem>>, vector<32x32xbf16>,
    return
  }
  func.func @transform_0(%arg0: i32) -> (i32, i32) {
    %c0_i32 = arith.constant 0 : i32
    %c0_i32_0 = arith.constant 0 : i32
    return %arg0, %c0_i32 : i32, i32
  }
  func.func @transform_1(%arg0: i32) -> (i32, i32) {
    %c0_i32 = arith.constant 0 : i32
    %c0_i32_0 = arith.constant 0 : i32
    %c0_i32_1 = arith.constant 0 : i32
    return %c0_i32, %c0_i32_0 : i32, i32
  }
  func.func @transform_2(%arg0: i32) -> (i32, i32) {
    %c0_i32 = arith.constant 0 : i32
    %c0_i32_0 = arith.constant 0 : i32
    %c0_i32_1 = arith.constant 0 : i32
    return %c0_i32, %c0_i32_0 : i32, i32
  }
  func.func @transform_3(%arg0: i32) -> (i32, i32) {
    %c0_i32 = arith.constant 0 : i32
    %c0_i32_0 = arith.constant 0 : i32
    return %arg0, %c0_i32 : i32, i32
  }
}

module attributes {stable_mosaic.version = 11 : i64} {
  func.func @_gemm_fused_kernel(%arg0: i32, %arg1: memref<32x288xbf16, #tpu.memory_space<vmem>>, %arg2: memref<288x16xbf16, #tpu.memory_space<vmem>>, %arg3: memref<1x16xf32, #tpu.memory_space<vmem>>, %arg4: memref<32x16xbf16, #tpu.memory_space<vmem>>) attributes {dimension_semantics = [#tpu.dimension_semantics<parallel>], iteration_bounds = array<i64: 1>, scalar_prefetch = 0 : i64, scratch_operands = 0 : i64, tpu.core_type = #tpu.core_type<tc>, window_params = [{transform_indices = @transform_0, window_bounds = array<i64: 32, 288>}, {pipeline_mode = #tpu.pipeline_mode<synchronous>, transform_indices = @transform_1, window_bounds = array<i64: 288, 16>}, {pipeline_mode = #tpu.pipeline_mode<synchronous>, transform_indices = @transform_2, window_bounds = array<i64: 1, 16>}, {transform_indices = @transform_3, window_bounds = array<i64: 32, 16>}]} {
    %c0 = arith.constant 0 : index
    %c0_0 = arith.constant 0 : index
    %0 = vector.load %arg1[%c0, %c0_0] : memref<32x288xbf16, #tpu.memory_space<vmem>>, vector<32x288xbf16>
    %cst = arith.constant 0.000000e+00 : bf16
    %1 = vector.broadcast %cst : bf16 to vector<32x288xbf16>
    %2 = arith.maximumf %0, %1 : vector<32x288xbf16>
    %c0_1 = arith.constant 0 : index
    %c0_2 = arith.constant 0 : index
    %3 = vector.load %arg2[%c0_1, %c0_2] : memref<288x16xbf16, #tpu.memory_space<vmem>>, vector<288x16xbf16>
    %cst_3 = arith.constant dense<0.000000e+00> : vector<32x16xf32>
    %4 = tpu.matmul %2, %3, %cst_3 {dimension_numbers = #tpu.dot_dimension_numbers<[1], [0], [0], [1], [0, 0, 1, 1], [], []>} : vector<32x288xbf16>, vector<288x16xbf16>, vector<32x16xf32> -> vector<32x16xf32>
    %c0_4 = arith.constant 0 : index
    %c0_5 = arith.constant 0 : index
    %5 = vector.load %arg3[%c0_4, %c0_5] : memref<1x16xf32, #tpu.memory_space<vmem>>, vector<1x16xf32>
    %6 = vector.broadcast %5 : vector<1x16xf32> to vector<32x16xf32>
    %7 = arith.addf %4, %6 : vector<32x16xf32>
    %cst_6 = arith.constant 0.000000e+00 : f32
    %8 = vector.broadcast %cst_6 : f32 to vector<32x16xf32>
    %9 = arith.maximumf %7, %8 : vector<32x16xf32>
    %10 = arith.truncf %9 : vector<32x16xf32> to vector<32x16xbf16>
    %c0_7 = arith.constant 0 : index
    %c0_8 = arith.constant 0 : index
    %11 = vector.load %arg4[%c0_7, %c0_8] : memref<32x16xbf16, #tpu.memory_space<vmem>>, vector<32x16xbf16>
    tpu.vector_store %arg4[%c0_7, %c0_8], %10 {strides = array<i32>} : memref<32x16xbf16, #tpu.memory_space<vmem>>, vector<32x16xbf16>,
    return
  }
  func.func @transform_0(%arg0: i32) -> (i32, i32) {
    %c0_i32 = arith.constant 0 : i32
    %c0_i32_0 = arith.constant 0 : i32
    return %arg0, %c0_i32 : i32, i32
  }
  func.func @transform_1(%arg0: i32) -> (i32, i32) {
    %c0_i32 = arith.constant 0 : i32
    %c0_i32_0 = arith.constant 0 : i32
    %c0_i32_1 = arith.constant 0 : i32
    return %c0_i32, %c0_i32_0 : i32, i32
  }
  func.func @transform_2(%arg0: i32) -> (i32, i32) {
    %c0_i32 = arith.constant 0 : i32
    %c0_i32_0 = arith.constant 0 : i32
    %c0_i32_1 = arith.constant 0 : i32
    return %c0_i32, %c0_i32_0 : i32, i32
  }
  func.func @transform_3(%arg0: i32) -> (i32, i32) {
    %c0_i32 = arith.constant 0 : i32
    %c0_i32_0 = arith.constant 0 : i32
    return %arg0, %c0_i32 : i32, i32
  }
}

module attributes {stable_mosaic.version = 11 : i64} {
  func.func @_gemm_fused_kernel(%arg0: i32, %arg1: memref<32x16xbf16, #tpu.memory_space<vmem>>, %arg2: memref<16x32xbf16, #tpu.memory_space<vmem>>, %arg3: memref<1x32xf32, #tpu.memory_space<vmem>>, %arg4: memref<32x32xbf16, #tpu.memory_space<vmem>>, %arg5: memref<32x32xbf16, #tpu.memory_space<vmem>>) attributes {dimension_semantics = [#tpu.dimension_semantics<parallel>], iteration_bounds = array<i64: 1>, scalar_prefetch = 0 : i64, scratch_operands = 0 : i64, tpu.core_type = #tpu.core_type<tc>, window_params = [{transform_indices = @transform_0, window_bounds = array<i64: 32, 16>}, {pipeline_mode = #tpu.pipeline_mode<synchronous>, transform_indices = @transform_1, window_bounds = array<i64: 16, 32>}, {pipeline_mode = #tpu.pipeline_mode<synchronous>, transform_indices = @transform_2, window_bounds = array<i64: 1, 32>}, {transform_indices = @transform_3, window_bounds = array<i64: 32, 32>}, {transform_indices = @transform_4, window_bounds = array<i64: 32, 32>}]} {
    %c0 = arith.constant 0 : index
    %c0_0 = arith.constant 0 : index
    %0 = vector.load %arg1[%c0, %c0_0] : memref<32x16xbf16, #tpu.memory_space<vmem>>, vector<32x16xbf16>
    %c0_1 = arith.constant 0 : index
    %c0_2 = arith.constant 0 : index
    %1 = vector.load %arg2[%c0_1, %c0_2] : memref<16x32xbf16, #tpu.memory_space<vmem>>, vector<16x32xbf16>
    %cst = arith.constant dense<0.000000e+00> : vector<32x32xf32>
    %2 = tpu.matmul %0, %1, %cst {dimension_numbers = #tpu.dot_dimension_numbers<[1], [0], [0], [1], [0, 0, 1, 1], [], []>} : vector<32x16xbf16>, vector<16x32xbf16>, vector<32x32xf32> -> vector<32x32xf32>
    %c0_3 = arith.constant 0 : index
    %c0_4 = arith.constant 0 : index
    %3 = vector.load %arg3[%c0_3, %c0_4] : memref<1x32xf32, #tpu.memory_space<vmem>>, vector<1x32xf32>
    %4 = vector.broadcast %3 : vector<1x32xf32> to vector<32x32xf32>
    %5 = arith.addf %2, %4 : vector<32x32xf32>
    %c0_5 = arith.constant 0 : index
    %c0_6 = arith.constant 0 : index
    %6 = vector.load %arg4[%c0_5, %c0_6] : memref<32x32xbf16, #tpu.memory_space<vmem>>, vector<32x32xbf16>
    %7 = arith.extf %6 : vector<32x32xbf16> to vector<32x32xf32>
    %8 = arith.addf %5, %7 : vector<32x32xf32>
    %9 = arith.truncf %8 : vector<32x32xf32> to vector<32x32xbf16>
    %c0_7 = arith.constant 0 : index
    %c0_8 = arith.constant 0 : index
    %10 = vector.load %arg5[%c0_7, %c0_8] : memref<32x32xbf16, #tpu.memory_space<vmem>>, vector<32x32xbf16>
    tpu.vector_store %arg5[%c0_7, %c0_8], %9 {strides = array<i32>} : memref<32x32xbf16, #tpu.memory_space<vmem>>, vector<32x32xbf16>,
    return
  }
  func.func @transform_0(%arg0: i32) -> (i32, i32) {
    %c0_i32 = arith.constant 0 : i32
    %c0_i32_0 = arith.constant 0 : i32
    return %arg0, %c0_i32 : i32, i32
  }
  func.func @transform_1(%arg0: i32) -> (i32, i32) {
    %c0_i32 = arith.constant 0 : i32
    %c0_i32_0 = arith.constant 0 : i32
    %c0_i32_1 = arith.constant 0 : i32
    return %c0_i32, %c0_i32_0 : i32, i32
  }
  func.func @transform_2(%arg0: i32) -> (i32, i32) {
    %c0_i32 = arith.constant 0 : i32
    %c0_i32_0 = arith.constant 0 : i32
    %c0_i32_1 = arith.constant 0 : i32
    return %c0_i32, %c0_i32_0 : i32, i32
  }
  func.func @transform_3(%arg0: i32) -> (i32, i32) {
    %c0_i32 = arith.constant 0 : i32
    %c0_i32_0 = arith.constant 0 : i32
    return %arg0, %c0_i32 : i32, i32
  }
  func.func @transform_4(%arg0: i32) -> (i32, i32) {
    %c0_i32 = arith.constant 0 : i32
    %c0_i32_0 = arith.constant 0 : i32
    return %arg0, %c0_i32 : i32, i32
  }
}

module attributes {stable_mosaic.version = 11 : i64} {
  func.func @_prequant_quantize_kernel(%arg0: i32, %arg1: memref<32x32xbf16, #tpu.memory_space<vmem>>, %arg2: memref<32x8xbf16, #tpu.memory_space<vmem>>, %arg3: memref<1x8xf32, #tpu.memory_space<vmem>>, %arg4: memref<8x32xf32, #tpu.memory_space<vmem>>, %arg5: memref<32x8xf32, #tpu.memory_space<vmem>>, %arg6: memref<32x8xf32, #tpu.memory_space<vmem>>) attributes {dimension_semantics = [#tpu.dimension_semantics<parallel>], iteration_bounds = array<i64: 1>, scalar_prefetch = 0 : i64, scratch_operands = 0 : i64, tpu.core_type = #tpu.core_type<tc>, window_params = [{transform_indices = @transform_0, window_bounds = array<i64: 32, 32>}, {pipeline_mode = #tpu.pipeline_mode<synchronous>, transform_indices = @transform_1, window_bounds = array<i64: 32, 8>}, {pipeline_mode = #tpu.pipeline_mode<synchronous>, transform_indices = @transform_2, window_bounds = array<i64: 1, 8>}, {pipeline_mode = #tpu.pipeline_mode<synchronous>, transform_indices = @transform_3, window_bounds = array<i64: 8, 32>}, {transform_indices = @transform_4, window_bounds = array<i64: 32, 8>}, {transform_indices = @transform_5, window_bounds = array<i64: 32, 8>}]} {
    %c0 = arith.constant 0 : index
    %c0_0 = arith.constant 0 : index
    %0 = vector.load %arg1[%c0, %c0_0] : memref<32x32xbf16, #tpu.memory_space<vmem>>, vector<32x32xbf16>
    %cst = arith.constant 0.000000e+00 : bf16
    %1 = vector.broadcast %cst : bf16 to vector<32x32xbf16>
    %2 = arith.maximumf %0, %1 : vector<32x32xbf16>
    %c0_1 = arith.constant 0 : index
    %c0_2 = arith.constant 0 : index
    %3 = vector.load %arg2[%c0_1, %c0_2] : memref<32x8xbf16, #tpu.memory_space<vmem>>, vector<32x8xbf16>
    %cst_3 = arith.constant dense<0.000000e+00> : vector<32x8xf32>
    %4 = tpu.matmul %2, %3, %cst_3 {dimension_numbers = #tpu.dot_dimension_numbers<[1], [0], [0], [1], [0, 0, 1, 1], [], []>} : vector<32x32xbf16>, vector<32x8xbf16>, vector<32x8xf32> -> vector<32x8xf32>
    %c0_4 = arith.constant 0 : index
    %c0_5 = arith.constant 0 : index
    %5 = vector.load %arg3[%c0_4, %c0_5] : memref<1x8xf32, #tpu.memory_space<vmem>>, vector<1x8xf32>
    %6 = vector.broadcast %5 : vector<1x8xf32> to vector<32x8xf32>
    %7 = arith.addf %4, %6 : vector<32x8xf32>
    %c0_6 = arith.constant 0 : index
    %c0_7 = arith.constant 0 : index
    %8 = vector.load %arg4[%c0_6, %c0_7] : memref<8x32xf32, #tpu.memory_space<vmem>>, vector<8x32xf32>
    %9 = arith.mulf %7, %7 : vector<32x8xf32>
    %cst_8 = arith.constant dense<0.000000e+00> : vector<32xf32>
    %10 = vector.multi_reduction <add>, %9, %cst_8 [1] : vector<32x8xf32> to vector<32xf32>
    %11 = vector.shape_cast %10 : vector<32xf32> to vector<32x1xf32>
    %12 = arith.mulf %8, %8 : vector<8x32xf32>
    %cst_9 = arith.constant dense<0.000000e+00> : vector<32xf32>
    %13 = vector.multi_reduction <add>, %12, %cst_9 [0] : vector<8x32xf32> to vector<32xf32>
    %14 = vector.shape_cast %13 : vector<32xf32> to vector<1x32xf32>
    %cst_10 = arith.constant dense<0.000000e+00> : vector<32x32xf32>
    %15 = tpu.matmul %7, %8, %cst_10 {dimension_numbers = #tpu.dot_dimension_numbers<[1], [0], [0], [1], [0, 0, 1, 1], [], []>} : vector<32x8xf32>, vector<8x32xf32>, vector<32x32xf32> -> vector<32x32xf32>
    %cst_11 = arith.constant 2.000000e+00 : f32
    %16 = vector.broadcast %cst_11 : f32 to vector<32x32xf32>
    %17 = arith.mulf %16, %15 : vector<32x32xf32>
    %18 = vector.broadcast %11 : vector<32x1xf32> to vector<32x32xf32>
    %19 = arith.subf %18, %17 : vector<32x32xf32>
    %20 = vector.broadcast %14 : vector<1x32xf32> to vector<32x32xf32>
    %21 = arith.addf %19, %20 : vector<32x32xf32>
    %22 = tpu.iota {dimensions = array<i32: 1>} : vector<32x32xi32>
    %cst_12 = arith.constant dense<0x7F800000> : vector<32xf32>
    %23 = vector.multi_reduction <minimumf>, %21, %cst_12 [1] : vector<32x32xf32> to vector<32xf32>
    %24 = vector.shape_cast %23 : vector<32xf32> to vector<32x1xf32>
    %25 = vector.broadcast %24 : vector<32x1xf32> to vector<32x32xf32>
    %26 = arith.cmpf oeq, %21, %25 : vector<32x32xf32>
    %c32_i32 = arith.constant 32 : i32
    %27 = vector.broadcast %c32_i32 : i32 to vector<32x32xi32>
    %28 = arith.select %26, %22, %27 : vector<32x32xi1>, vector<32x32xi32>
    %cst_13 = arith.constant dense<2147483647> : vector<32xi32>
    %29 = vector.multi_reduction <minsi>, %28, %cst_13 [1] : vector<32x32xi32> to vector<32xi32>
    %30 = vector.shape_cast %29 : vector<32xi32> to vector<32x1xi32>
    %31 = vector.broadcast %30 : vector<32x1xi32> to vector<32x32xi32>
    %32 = arith.cmpi eq, %22, %31 : vector<32x32xi32>
    %33 = arith.extui %32 : vector<32x32xi1> to vector<32x32xi32>
    %34 = arith.sitofp %33 : vector<32x32xi32> to vector<32x32xf32>
    %cst_14 = arith.constant dense<0.000000e+00> : vector<32x8xf32>
    %35 = tpu.matmul %34, %8, %cst_14 {dimension_numbers = #tpu.dot_dimension_numbers<[1], [1], [0], [0], [0, 0, 1, 0], [], []>} : vector<32x32xf32>, vector<8x32xf32>, vector<32x8xf32> -> vector<32x8xf32>
    %c0_15 = arith.constant 0 : index
    %c0_16 = arith.constant 0 : index
    %36 = vector.load %arg5[%c0_15, %c0_16] : memref<32x8xf32, #tpu.memory_space<vmem>>, vector<32x8xf32>
    tpu.vector_store %arg5[%c0_15, %c0_16], %7 {strides = array<i32>} : memref<32x8xf32, #tpu.memory_space<vmem>>, vector<32x8xf32>,
    %c0_17 = arith.constant 0 : index
    %c0_18 = arith.constant 0 : index
    %37 = vector.load %arg6[%c0_17, %c0_18] : memref<32x8xf32, #tpu.memory_space<vmem>>, vector<32x8xf32>
    tpu.vector_store %arg6[%c0_17, %c0_18], %35 {strides = array<i32>} : memref<32x8xf32, #tpu.memory_space<vmem>>, vector<32x8xf32>,
    return
  }
  func.func @transform_0(%arg0: i32) -> (i32, i32) {
    %c0_i32 = arith.constant 0 : i32
    %c0_i32_0 = arith.constant 0 : i32
    return %arg0, %c0_i32 : i32, i32
  }
  func.func @transform_1(%arg0: i32) -> (i32, i32) {
    %c0_i32 = arith.constant 0 : i32
    %c0_i32_0 = arith.constant 0 : i32
    %c0_i32_1 = arith.constant 0 : i32
    return %c0_i32, %c0_i32_0 : i32, i32
  }
  func.func @transform_2(%arg0: i32) -> (i32, i32) {
    %c0_i32 = arith.constant 0 : i32
    %c0_i32_0 = arith.constant 0 : i32
    %c0_i32_1 = arith.constant 0 : i32
    return %c0_i32, %c0_i32_0 : i32, i32
  }
  func.func @transform_3(%arg0: i32) -> (i32, i32) {
    %c0_i32 = arith.constant 0 : i32
    %c0_i32_0 = arith.constant 0 : i32
    %c0_i32_1 = arith.constant 0 : i32
    return %c0_i32, %c0_i32_0 : i32, i32
  }
  func.func @transform_4(%arg0: i32) -> (i32, i32) {
    %c0_i32 = arith.constant 0 : i32
    %c0_i32_0 = arith.constant 0 : i32
    return %arg0, %c0_i32 : i32, i32
  }
  func.func @transform_5(%arg0: i32) -> (i32, i32) {
    %c0_i32 = arith.constant 0 : i32
    %c0_i32_0 = arith.constant 0 : i32
    return %arg0, %c0_i32 : i32, i32
  }
}

module attributes {stable_mosaic.version = 11 : i64} {
  func.func @_gemm_fused_kernel(%arg0: i32, %arg1: memref<32x72xbf16, #tpu.memory_space<vmem>>, %arg2: memref<72x32xbf16, #tpu.memory_space<vmem>>, %arg3: memref<1x32xf32, #tpu.memory_space<vmem>>, %arg4: memref<32x32xbf16, #tpu.memory_space<vmem>>) attributes {dimension_semantics = [#tpu.dimension_semantics<parallel>], iteration_bounds = array<i64: 1>, scalar_prefetch = 0 : i64, scratch_operands = 0 : i64, tpu.core_type = #tpu.core_type<tc>, window_params = [{transform_indices = @transform_0, window_bounds = array<i64: 32, 72>}, {pipeline_mode = #tpu.pipeline_mode<synchronous>, transform_indices = @transform_1, window_bounds = array<i64: 72, 32>}, {pipeline_mode = #tpu.pipeline_mode<synchronous>, transform_indices = @transform_2, window_bounds = array<i64: 1, 32>}, {transform_indices = @transform_3, window_bounds = array<i64: 32, 32>}]} {
    %c0 = arith.constant 0 : index
    %c0_0 = arith.constant 0 : index
    %0 = vector.load %arg1[%c0, %c0_0] : memref<32x72xbf16, #tpu.memory_space<vmem>>, vector<32x72xbf16>
    %c0_1 = arith.constant 0 : index
    %c0_2 = arith.constant 0 : index
    %1 = vector.load %arg2[%c0_1, %c0_2] : memref<72x32xbf16, #tpu.memory_space<vmem>>, vector<72x32xbf16>
    %cst = arith.constant dense<0.000000e+00> : vector<32x32xf32>
    %2 = tpu.matmul %0, %1, %cst {dimension_numbers = #tpu.dot_dimension_numbers<[1], [0], [0], [1], [0, 0, 1, 1], [], []>} : vector<32x72xbf16>, vector<72x32xbf16>, vector<32x32xf32> -> vector<32x32xf32>
    %c0_3 = arith.constant 0 : index
    %c0_4 = arith.constant 0 : index
    %3 = vector.load %arg3[%c0_3, %c0_4] : memref<1x32xf32, #tpu.memory_space<vmem>>, vector<1x32xf32>
    %4 = vector.broadcast %3 : vector<1x32xf32> to vector<32x32xf32>
    %5 = arith.addf %2, %4 : vector<32x32xf32>
    %6 = arith.truncf %5 : vector<32x32xf32> to vector<32x32xbf16>
    %c0_5 = arith.constant 0 : index
    %c0_6 = arith.constant 0 : index
    %7 = vector.load %arg4[%c0_5, %c0_6] : memref<32x32xbf16, #tpu.memory_space<vmem>>, vector<32x32xbf16>
    tpu.vector_store %arg4[%c0_5, %c0_6], %6 {strides = array<i32>} : memref<32x32xbf16, #tpu.memory_space<vmem>>, vector<32x32xbf16>,
    return
  }
  func.func @transform_0(%arg0: i32) -> (i32, i32) {
    %c0_i32 = arith.constant 0 : i32
    %c0_i32_0 = arith.constant 0 : i32
    return %arg0, %c0_i32 : i32, i32
  }
  func.func @transform_1(%arg0: i32) -> (i32, i32) {
    %c0_i32 = arith.constant 0 : i32
    %c0_i32_0 = arith.constant 0 : i32
    %c0_i32_1 = arith.constant 0 : i32
    return %c0_i32, %c0_i32_0 : i32, i32
  }
  func.func @transform_2(%arg0: i32) -> (i32, i32) {
    %c0_i32 = arith.constant 0 : i32
    %c0_i32_0 = arith.constant 0 : i32
    %c0_i32_1 = arith.constant 0 : i32
    return %c0_i32, %c0_i32_0 : i32, i32
  }
  func.func @transform_3(%arg0: i32) -> (i32, i32) {
    %c0_i32 = arith.constant 0 : i32
    %c0_i32_0 = arith.constant 0 : i32
    return %arg0, %c0_i32 : i32, i32
  }
}

module attributes {stable_mosaic.version = 11 : i64} {
  func.func @_gemm_fused_kernel(%arg0: i32, %arg1: memref<128x512xbf16, #tpu.memory_space<vmem>>, %arg2: memref<512x16xbf16, #tpu.memory_space<vmem>>, %arg3: memref<1x16xf32, #tpu.memory_space<vmem>>, %arg4: memref<128x16xbf16, #tpu.memory_space<vmem>>) attributes {dimension_semantics = [#tpu.dimension_semantics<parallel>], iteration_bounds = array<i64: 1>, scalar_prefetch = 0 : i64, scratch_operands = 0 : i64, tpu.core_type = #tpu.core_type<tc>, window_params = [{transform_indices = @transform_0, window_bounds = array<i64: 128, 512>}, {pipeline_mode = #tpu.pipeline_mode<synchronous>, transform_indices = @transform_1, window_bounds = array<i64: 512, 16>}, {pipeline_mode = #tpu.pipeline_mode<synchronous>, transform_indices = @transform_2, window_bounds = array<i64: 1, 16>}, {transform_indices = @transform_3, window_bounds = array<i64: 128, 16>}]} {
    %c0 = arith.constant 0 : index
    %c0_0 = arith.constant 0 : index
    %0 = vector.load %arg1[%c0, %c0_0] : memref<128x512xbf16, #tpu.memory_space<vmem>>, vector<128x512xbf16>
    %cst = arith.constant 0.000000e+00 : bf16
    %1 = vector.broadcast %cst : bf16 to vector<128x512xbf16>
    %2 = arith.maximumf %0, %1 : vector<128x512xbf16>
    %c0_1 = arith.constant 0 : index
    %c0_2 = arith.constant 0 : index
    %3 = vector.load %arg2[%c0_1, %c0_2] : memref<512x16xbf16, #tpu.memory_space<vmem>>, vector<512x16xbf16>
    %cst_3 = arith.constant dense<0.000000e+00> : vector<128x16xf32>
    %4 = tpu.matmul %2, %3, %cst_3 {dimension_numbers = #tpu.dot_dimension_numbers<[1], [0], [0], [1], [0, 0, 1, 1], [], []>} : vector<128x512xbf16>, vector<512x16xbf16>, vector<128x16xf32> -> vector<128x16xf32>
    %c0_4 = arith.constant 0 : index
    %c0_5 = arith.constant 0 : index
    %5 = vector.load %arg3[%c0_4, %c0_5] : memref<1x16xf32, #tpu.memory_space<vmem>>, vector<1x16xf32>
    %6 = vector.broadcast %5 : vector<1x16xf32> to vector<128x16xf32>
    %7 = arith.addf %4, %6 : vector<128x16xf32>
    %cst_6 = arith.constant 0.000000e+00 : f32
    %8 = vector.broadcast %cst_6 : f32 to vector<128x16xf32>
    %9 = arith.maximumf %7, %8 : vector<128x16xf32>
    %10 = arith.truncf %9 : vector<128x16xf32> to vector<128x16xbf16>
    %c0_7 = arith.constant 0 : index
    %c0_8 = arith.constant 0 : index
    %11 = vector.load %arg4[%c0_7, %c0_8] : memref<128x16xbf16, #tpu.memory_space<vmem>>, vector<128x16xbf16>
    tpu.vector_store %arg4[%c0_7, %c0_8], %10 {strides = array<i32>} : memref<128x16xbf16, #tpu.memory_space<vmem>>, vector<128x16xbf16>,
    return
  }
  func.func @transform_0(%arg0: i32) -> (i32, i32) {
    %c0_i32 = arith.constant 0 : i32
    %c0_i32_0 = arith.constant 0 : i32
    return %arg0, %c0_i32 : i32, i32
  }
  func.func @transform_1(%arg0: i32) -> (i32, i32) {
    %c0_i32 = arith.constant 0 : i32
    %c0_i32_0 = arith.constant 0 : i32
    %c0_i32_1 = arith.constant 0 : i32
    return %c0_i32, %c0_i32_0 : i32, i32
  }
  func.func @transform_2(%arg0: i32) -> (i32, i32) {
    %c0_i32 = arith.constant 0 : i32
    %c0_i32_0 = arith.constant 0 : i32
    %c0_i32_1 = arith.constant 0 : i32
    return %c0_i32, %c0_i32_0 : i32, i32
  }
  func.func @transform_3(%arg0: i32) -> (i32, i32) {
    %c0_i32 = arith.constant 0 : i32
    %c0_i32_0 = arith.constant 0 : i32
    return %arg0, %c0_i32 : i32, i32
  }
}

module attributes {stable_mosaic.version = 11 : i64} {
  func.func @_gemm_fused_kernel(%arg0: i32, %arg1: memref<256x256xbf16, #tpu.memory_space<vmem>>, %arg2: memref<256x3xbf16, #tpu.memory_space<vmem>>, %arg3: memref<1x3xf32, #tpu.memory_space<vmem>>, %arg4: memref<256x3xf32, #tpu.memory_space<vmem>>) attributes {dimension_semantics = [#tpu.dimension_semantics<parallel>], iteration_bounds = array<i64: 2>, scalar_prefetch = 0 : i64, scratch_operands = 0 : i64, tpu.core_type = #tpu.core_type<tc>, window_params = [{transform_indices = @transform_0, window_bounds = array<i64: 256, 256>}, {pipeline_mode = #tpu.pipeline_mode<synchronous>, transform_indices = @transform_1, window_bounds = array<i64: 256, 3>}, {pipeline_mode = #tpu.pipeline_mode<synchronous>, transform_indices = @transform_2, window_bounds = array<i64: 1, 3>}, {transform_indices = @transform_3, window_bounds = array<i64: 256, 3>}]} {
    %c0 = arith.constant 0 : index
    %c0_0 = arith.constant 0 : index
    %0 = vector.load %arg1[%c0, %c0_0] : memref<256x256xbf16, #tpu.memory_space<vmem>>, vector<256x256xbf16>
    %c0_1 = arith.constant 0 : index
    %c0_2 = arith.constant 0 : index
    %1 = vector.load %arg2[%c0_1, %c0_2] : memref<256x3xbf16, #tpu.memory_space<vmem>>, vector<256x3xbf16>
    %cst = arith.constant dense<0.000000e+00> : vector<256x3xf32>
    %2 = tpu.matmul %0, %1, %cst {dimension_numbers = #tpu.dot_dimension_numbers<[1], [0], [0], [1], [0, 0, 1, 1], [], []>} : vector<256x256xbf16>, vector<256x3xbf16>, vector<256x3xf32> -> vector<256x3xf32>
    %c0_3 = arith.constant 0 : index
    %c0_4 = arith.constant 0 : index
    %3 = vector.load %arg3[%c0_3, %c0_4] : memref<1x3xf32, #tpu.memory_space<vmem>>, vector<1x3xf32>
    %4 = vector.broadcast %3 : vector<1x3xf32> to vector<256x3xf32>
    %5 = arith.addf %2, %4 : vector<256x3xf32>
    %6 = arith.negf %5 : vector<256x3xf32>
    %7 = math.exp %6 : vector<256x3xf32>
    %cst_5 = arith.constant 1.000000e+00 : f32
    %8 = vector.broadcast %cst_5 : f32 to vector<256x3xf32>
    %9 = arith.addf %8, %7 : vector<256x3xf32>
    %10 = arith.divf %8, %9 : vector<256x3xf32>
    %c0_6 = arith.constant 0 : index
    %c0_7 = arith.constant 0 : index
    %11 = vector.load %arg4[%c0_6, %c0_7] : memref<256x3xf32, #tpu.memory_space<vmem>>, vector<256x3xf32>
    tpu.vector_store %arg4[%c0_6, %c0_7], %10 {strides = array<i32>} : memref<256x3xf32, #tpu.memory_space<vmem>>, vector<256x3xf32>,
    return
  }
  func.func @transform_0(%arg0: i32) -> (i32, i32) {
    %c0_i32 = arith.constant 0 : i32
    %c0_i32_0 = arith.constant 0 : i32
    return %arg0, %c0_i32 : i32, i32
  }
  func.func @transform_1(%arg0: i32) -> (i32, i32) {
    %c0_i32 = arith.constant 0 : i32
    %c0_i32_0 = arith.constant 0 : i32
    %c0_i32_1 = arith.constant 0 : i32
    return %c0_i32, %c0_i32_0 : i32, i32
  }
  func.func @transform_2(%arg0: i32) -> (i32, i32) {
    %c0_i32 = arith.constant 0 : i32
    %c0_i32_0 = arith.constant 0 : i32
    %c0_i32_1 = arith.constant 0 : i32
    return %c0_i32, %c0_i32_0 : i32, i32
  }
  func.func @transform_3(%arg0: i32) -> (i32, i32) {
    %c0_i32 = arith.constant 0 : i32
    %c0_i32_0 = arith.constant 0 : i32
    return %arg0, %c0_i32 : i32, i32
  }
}

</mosaic_0001>

<llo_original>
// kernel: qvae_forward.15
$region0: #{qvae_forward.15}
  #allocation0 [shape = 'u32[]', space=smem, size = 0x4, offset = 0x4, fixed_abs, tag = 'smem constant byte address 0x4 - core index']
  #allocation1 [shape = 'u32[144,128]{1,0:T(1,128)}', space=vmem, size = 0x12000, scoped, tag = 'internal scratch']
  %s0 = inlined_call_operand.vmem [shape: bf16[128,48], index: 0, kind: input, shape index: {}]
  %s1 = inlined_call_operand.vmem [shape: bf16[48,16], index: 1, kind: input, shape index: {}]
  %s2 = inlined_call_operand.vmem [shape: f32[1,16], index: 2, kind: input, shape index: {}]
  %s3 = inlined_call_operand.vmem [shape: bf16[128,16], index: 3, kind: output, shape index: {}]
  %s4 = sld [smem:[#allocation0]]
  $region22: #{qvae_forward.15} parent=0
    _
  %s6 = ssub.s32 1, %s4
  %s7 = scalar_select 0, %s6, %s4
  // Predicated region
  $region2: #{qvae_forward.15} parent=0 // pred_check
    _
  $region3: #{qvae_forward.15} parent=0 // pred_check_branch
    %9 = sbr.rel (0) target = $region5
  $region4: #{qvae_forward.15} parent=0 // pred_region
    _
  $region5: #{qvae_forward.15} parent=0 // pred_fallthru
    _
  // Predicated region
  $region6: #{qvae_forward.15} parent=0 // pred_check
    _
  $region7: #{qvae_forward.15} parent=0 // pred_check_branch
    %11 = sbr.rel (0) target = $region9
  $region8: #{qvae_forward.15} parent=0 // pred_region
    _
  $region9: #{qvae_forward.15} parent=0 // pred_fallthru
    _
  // Predicated region
  $region10: #{qvae_forward.15} parent=0 // pred_check
    _
  $region11: #{qvae_forward.15} parent=0 // pred_check_branch
    %13 = sbr.rel (0) target = $region13
  $region12: #{qvae_forward.15} parent=0 // pred_region
    _
  $region13: #{qvae_forward.15} parent=0 // pred_fallthru
    _
  %v15 = vld [vmem:[%s0] sm:$0xf]
  %v16 = vld [vmem:[%s0 + $0x4] sm:$0xf]
  %v17 = vld [vmem:[%s0 + $0x8] sm:$0xf]
  %v18 = vld [vmem:[%s0 + $0xc] sm:$0xf]
  %v19 = vld [vmem:[%s0 + $0x10] sm:$0xf]
  %v20 = vld [vmem:[%s0 + $0x14] sm:$0xf]
  %v21 = vld [vmem:[%s0 + $0x18] sm:$0xf]
  %v22 = vld [vmem:[%s0 + $0x1c] sm:$0xf]
  %v23 = vld [vmem:[%s0 + $0x20] sm:$0xf]
  %v24 = vld [vmem:[%s0 + $0x24] sm:$0xf]
  %v25 = vld [vmem:[%s0 + $0x28] sm:$0xf]
  %v26 = vld [vmem:[%s0 + $0x2c] sm:$0xf]
  %v27 = vld [vmem:[%s0 + $0x30] sm:$0xf]
  %v28 = vld [vmem:[%s0 + $0x34] sm:$0xf]
  %v29 = vld [vmem:[%s0 + $0x38] sm:$0xf]
  %v30 = vld [vmem:[%s0 + $0x3c] sm:$0xf]
  %v31 = vld [vmem:[%s1] sm:$0xf]
  %v32 = vld [vmem:[%s1 + $0x4] sm:$0xf]
  %v33 = vld [vmem:[%s1 + $0x8] sm:$0xf]
  %v34 = vld [vmem:[%s1 + $0xc] sm:$0xf]
  %v35 = vld [vmem:[%s1 + $0x10] sm:$0xf]
  %v36 = vld [vmem:[%s1 + $0x14] sm:$0xf]
  %v37 = vld [vmem:[%s2] sm:$0x1]
  %v39 = vlaneseq
  %v40 = vshrl.u32 %v39, 7
  %v41 = vsub.s32 0, %v40
  %v42 = vrot.slane %v37, %v41
  %v60 = vunpack.c.l.b16 %v15
  %v61 = vunpack.c.l.b16 %v16
  %v62 = vunpack.c.l.b16 %v17
  %v63 = vunpack.c.l.b16 %v18
  %v64 = vunpack.c.l.b16 %v19
  %v65 = vunpack.c.l.b16 %v20
  %v66 = vunpack.c.l.b16 %v21
  %v67 = vunpack.c.l.b16 %v22
  %v68 = vunpack.c.l.b16 %v23
  %v69 = vunpack.c.l.b16 %v24
  %v70 = vunpack.c.l.b16 %v25
  %v71 = vunpack.c.l.b16 %v26
  %v72 = vunpack.c.l.b16 %v27
  %v73 = vunpack.c.l.b16 %v28
  %v74 = vunpack.c.l.b16 %v29
  %v75 = vunpack.c.l.b16 %v30
  %v76 = vpack.c.b16 %v61, %v60
  %v77 = vpack.c.b16 %v63, %v62
  %v78 = vpack.c.b16 %v65, %v64
  %v79 = vpack.c.b16 %v67, %v66
  %v80 = vpack.c.b16 %v69, %v68
  %v81 = vpack.c.b16 %v71, %v70
  %v82 = vpack.c.b16 %v73, %v72
  %v83 = vpack.c.b16 %v75, %v74
  %v90 = vunpack.c.l.b16 %v31
  %v91 = vunpack.c.l.b16 %v32
  %v92 = vunpack.c.l.b16 %v33
  %v93 = vunpack.c.l.b16 %v34
  %v94 = vunpack.c.l.b16 %v35
  %v95 = vunpack.c.l.b16 %v36
  %v96 = vpack.c.b16 %v91, %v90
  %v97 = vpack.c.b16 %v93, %v92
  %v98 = vpack.c.b16 %v95, %v94
  %vm102 = vcmask 392192
  %v104 = vsel %vm102, %v76, 0
  %v107 = vsel %vm102, %v77, 0
  %v110 = vsel %vm102, %v78, 0
  %v113 = vsel %vm102, %v79, 0
  %v116 = vsel %vm102, %v80, 0
  %v119 = vsel %vm102, %v81, 0
  %v122 = vsel %vm102, %v82, 0
  %v125 = vsel %vm102, %v83, 0
  %127 = vmatprep.subr.bf16.mxu0 0
  %128 = vmatpush1.bf16.msra.mxu0 %v96
  %129 = vmatprep.subr.bf16.mxu0 0
  %130 = vmatpush1.bf16.msra.mxu0 %v97
  %131 = vmatprep.subr.bf16.mxu0 0
  %132 = vmatpush1.bf16.msra.mxu0 %v98
  %133 = vmatprep.subr.bf16.mxu0 0
  %134 = vmatpush1.bf16.msra.mxu0 0
  %135 = vmatprep.subr.bf16.mxu0 0
  %136 = vmatpush1.bf16.msra.mxu0 0
  %137 = vmatprep.subr.bf16.mxu0 0
  %138 = vmatpush1.bf16.msra.mxu0 0
  %139 = vmatprep.subr.bf16.mxu0 0
  %140 = vmatpush1.bf16.msra.mxu0 0
  %141 = vmatprep.subr.bf16.mxu0 0
  %142 = vmatpush1.bf16.msra.mxu0 0
  %143 = vmatprep.subr.bf16.mxu0 0
  %144 = vmatpush1.bf16.msra.mxu0 0
  %145 = vmatprep.subr.bf16.mxu0 0
  %146 = vmatpush1.bf16.msra.mxu0 0
  %147 = vmatprep.subr.bf16.mxu0 0
  %148 = vmatpush1.bf16.msra.mxu0 0
  %149 = vmatprep.subr.bf16.mxu0 0
  %150 = vmatpush1.bf16.msra.mxu0 0
  %151 = vmatprep.subr.bf16.mxu0 0
  %152 = vmatpush1.bf16.msra.mxu0 0
  %153 = vmatprep.subr.bf16.mxu0 0
  %154 = vmatpush1.bf16.msra.mxu0 0
  %155 = vmatprep.subr.bf16.mxu0 0
  %156 = vmatpush1.bf16.msra.mxu0 0
  %157 = vmatprep.subr.bf16.mxu0 0
  %158 = vmatpush1.bf16.msra.mxu0 0
  %159 = vmatprep.mubr.bf16.mxu0 0
  %160 = vmatmul.mubr.bf16.gmra.mrb[0].mxu0 %v104
  %v161 = vpop.f32.mrb[0].mxu0
  %v162 = vadd.f32 %v42, %v161
  %v163 = vpop.f32.mrb[0].mxu0
  %v164 = vpop.f32.mrb[0].mxu0
  %v165 = vadd.f32 %v42, %v164
  %v166 = vpop.f32.mrb[0].mxu0
  %167 = vmatprep.mubr.bf16.mxu0 0
  %168 = vmatmul.mubr.bf16.gmra.mrb[0].mxu0 %v107
  %v169 = vpop.f32.mrb[0].mxu0
  %v170 = vadd.f32 %v42, %v169
  %v171 = vpop.f32.mrb[0].mxu0
  %v172 = vpop.f32.mrb[0].mxu0
  %v173 = vadd.f32 %v42, %v172
  %v174 = vpop.f32.mrb[0].mxu0
  %175 = vmatprep.mubr.bf16.mxu0 0
  %176 = vmatmul.mubr.bf16.gmra.mrb[0].mxu0 %v110
  %v177 = vpop.f32.mrb[0].mxu0
  %v178 = vadd.f32 %v42, %v177
  %v179 = vpop.f32.mrb[0].mxu0
  %v180 = vpop.f32.mrb[0].mxu0
  %v181 = vadd.f32 %v42, %v180
  %v182 = vpop.f32.mrb[0].mxu0
  %183 = vmatprep.mubr.bf16.mxu0 0
  %184 = vmatmul.mubr.bf16.gmra.mrb[0].mxu0 %v113
  %v185 = vpop.f32.mrb[0].mxu0
  %v186 = vadd.f32 %v42, %v185
  %v187 = vpop.f32.mrb[0].mxu0
  %v188 = vpop.f32.mrb[0].mxu0
  %v189 = vadd.f32 %v42, %v188
  %v190 = vpop.f32.mrb[0].mxu0
  %191 = vmatprep.mubr.bf16.mxu0 0
  %192 = vmatmul.mubr.bf16.gmra.mrb[0].mxu0 %v116
  %v193 = vpop.f32.mrb[0].mxu0
  %v194 = vadd.f32 %v42, %v193
  %v195 = vpop.f32.mrb[0].mxu0
  %v196 = vpop.f32.mrb[0].mxu0
  %v197 = vadd.f32 %v42, %v196
  %v198 = vpop.f32.mrb[0].mxu0
  %199 = vmatprep.mubr.bf16.mxu0 0
  %200 = vmatmul.mubr.bf16.gmra.mrb[0].mxu0 %v119
  %v201 = vpop.f32.mrb[0].mxu0
  %v202 = vadd.f32 %v42, %v201
  %v203 = vpop.f32.mrb[0].mxu0
  %v204 = vpop.f32.mrb[0].mxu0
  %v205 = vadd.f32 %v42, %v204
  %v206 = vpop.f32.mrb[0].mxu0
  %207 = vmatprep.mubr.bf16.mxu0 0
  %208 = vmatmul.mubr.bf16.gmra.mrb[0].mxu0 %v122
  %v209 = vpop.f32.mrb[0].mxu0
  %v210 = vadd.f32 %v42, %v209
  %v211 = vpop.f32.mrb[0].mxu0
  %v212 = vpop.f32.mrb[0].mxu0
  %v213 = vadd.f32 %v42, %v212
  %v214 = vpop.f32.mrb[0].mxu0
  %215 = vmatprep.mubr.bf16.mxu0 0
  %216 = vmatmul.mubr.bf16.gmra.mrb[0].mxu0 %v125
  %v217 = vpop.f32.mrb[0].mxu0
  %v218 = vadd.f32 %v42, %v217
  %v219 = vpop.f32.mrb[0].mxu0
  %v220 = vpop.f32.mrb[0].mxu0
  %v221 = vadd.f32 %v42, %v220
  %v222 = vpop.f32.mrb[0].mxu0
  %223 = vdwg.mxu0
  %v224 = vmax.f32 %v162, 0.0
  %v225 = vmax.f32 %v165, 0.0
  %v226 = vmax.f32 %v170, 0.0
  %v227 = vmax.f32 %v173, 0.0
  %v228 = vmax.f32 %v178, 0.0
  %v229 = vmax.f32 %v181, 0.0
  %v230 = vmax.f32 %v186, 0.0
  %v231 = vmax.f32 %v189, 0.0
  %v232 = vmax.f32 %v194, 0.0
  %v233 = vmax.f32 %v197, 0.0
  %v234 = vmax.f32 %v202, 0.0
  %v235 = vmax.f32 %v205, 0.0
  %v236 = vmax.f32 %v210, 0.0
  %v237 = vmax.f32 %v213, 0.0
  %v238 = vmax.f32 %v218, 0.0
  %v239 = vmax.f32 %v221, 0.0
  %v240 = vpack.c.bf16 %v225, %v224
  %v241 = vpack.c.bf16 %v227, %v226
  %v242 = vpack.c.bf16 %v229, %v228
  %v243 = vpack.c.bf16 %v231, %v230
  %v244 = vpack.c.bf16 %v233, %v232
  %v245 = vpack.c.bf16 %v235, %v234
  %v246 = vpack.c.bf16 %v237, %v236
  %v247 = vpack.c.bf16 %v239, %v238
  %v256 = vunpack.c.l.b16 %v240
  %v257 = vunpack.c.h.b16 %v240
  %v258 = vunpack.c.l.b16 %v241
  %v259 = vunpack.c.h.b16 %v241
  %v260 = vunpack.c.l.b16 %v242
  %v261 = vunpack.c.h.b16 %v242
  %v262 = vunpack.c.l.b16 %v243
  %v263 = vunpack.c.h.b16 %v243
  %v264 = vunpack.c.l.b16 %v244
  %v265 = vunpack.c.h.b16 %v244
  %v266 = vunpack.c.l.b16 %v245
  %v267 = vunpack.c.h.b16 %v245
  %v268 = vunpack.c.l.b16 %v246
  %v269 = vunpack.c.h.b16 %v246
  %v270 = vunpack.c.l.b16 %v247
  %v271 = vunpack.c.h.b16 %v247
  %v272 = vpack.c.b16 %v256, %v256
  %v273 = vpack.c.b16 %v257, %v257
  %v274 = vpack.c.b16 %v258, %v258
  %v275 = vpack.c.b16 %v259, %v259
  %v276 = vpack.c.b16 %v260, %v260
  %v277 = vpack.c.b16 %v261, %v261
  %v278 = vpack.c.b16 %v262, %v262
  %v279 = vpack.c.b16 %v263, %v263
  %v280 = vpack.c.b16 %v264, %v264
  %v281 = vpack.c.b16 %v265, %v265
  %v282 = vpack.c.b16 %v266, %v266
  %v283 = vpack.c.b16 %v267, %v267
  %v284 = vpack.c.b16 %v268, %v268
  %v285 = vpack.c.b16 %v269, %v269
  %v286 = vpack.c.b16 %v270, %v270
  %v287 = vpack.c.b16 %v271, %v271
  %vm304 = vcmask 125952
  %305 = vst.msk [vmem:[%s3] sm:$0xf] %vm304, %v272
  %306 = vst.msk [vmem:[%s3 + $0x4] sm:$0xf] %vm304, %v273
  %307 = vst.msk [vmem:[%s3 + $0x8] sm:$0xf] %vm304, %v274
  %308 = vst.msk [vmem:[%s3 + $0xc] sm:$0xf] %vm304, %v275
  %309 = vst.msk [vmem:[%s3 + $0x10] sm:$0xf] %vm304, %v276
  %310 = vst.msk [vmem:[%s3 + $0x14] sm:$0xf] %vm304, %v277
  %311 = vst.msk [vmem:[%s3 + $0x18] sm:$0xf] %vm304, %v278
  %312 = vst.msk [vmem:[%s3 + $0x1c] sm:$0xf] %vm304, %v279
  %313 = vst.msk [vmem:[%s3 + $0x20] sm:$0xf] %vm304, %v280
  %314 = vst.msk [vmem:[%s3 + $0x24] sm:$0xf] %vm304, %v281
  %315 = vst.msk [vmem:[%s3 + $0x28] sm:$0xf] %vm304, %v282
  %316 = vst.msk [vmem:[%s3 + $0x2c] sm:$0xf] %vm304, %v283
  %317 = vst.msk [vmem:[%s3 + $0x30] sm:$0xf] %vm304, %v284
  %318 = vst.msk [vmem:[%s3 + $0x34] sm:$0xf] %vm304, %v285
  %319 = vst.msk [vmem:[%s3 + $0x38] sm:$0xf] %vm304, %v286
  %320 = vst.msk [vmem:[%s3 + $0x3c] sm:$0xf] %vm304, %v287
  // Predicated region
  $region14: #{qvae_forward.15} parent=0 // pred_check
    _
  $region15: #{qvae_forward.15} parent=0 // pred_check_branch
    %322 = sbr.rel (0) target = $region17
  $region16: #{qvae_forward.15} parent=0 // pred_region
    _
  $region17: #{qvae_forward.15} parent=0 // pred_fallthru
    _
  // Predicated region
  $region18: #{qvae_forward.15} parent=0 // pred_check
    _
  $region19: #{qvae_forward.15} parent=0 // pred_check_branch
    %324 = sbr.rel (0) target = $region21
  $region20: #{qvae_forward.15} parent=0 // pred_region
    _
  $region21: #{qvae_forward.15} parent=0 // pred_fallthru
    _

// kernel: qvae_forward.16
$region0: #{qvae_forward.16}
  #allocation0 [shape = 'u32[]', space=smem, size = 0x4, offset = 0x4, fixed_abs, tag = 'smem constant byte address 0x4 - core index']
  #allocation1 [shape = 'u32[144,128]{1,0:T(1,128)}', space=vmem, size = 0x12000, scoped, tag = 'internal scratch']
  %s0 = inlined_call_operand.vmem [shape: bf16[32,256], index: 0, kind: input, shape index: {}]
  %s1 = inlined_call_operand.vmem [shape: bf16[256,32], index: 1, kind: input, shape index: {}]
  %s2 = inlined_call_operand.vmem [shape: f32[1,32], index: 2, kind: input, shape index: {}]
  %s3 = inlined_call_operand.vmem [shape: bf16[32,32], index: 3, kind: output, shape index: {}]
  %s4 = sld [smem:[#allocation0]]
  $region22: #{qvae_forward.16} parent=0
    _
  %s6 = ssub.s32 1, %s4
  %s7 = scalar_select 0, %s6, %s4
  // Predicated region
  $region2: #{qvae_forward.16} parent=0 // pred_check
    _
  $region3: #{qvae_forward.16} parent=0 // pred_check_branch
    %9 = sbr.rel (0) target = $region5
  $region4: #{qvae_forward.16} parent=0 // pred_region
    _
  $region5: #{qvae_forward.16} parent=0 // pred_fallthru
    _
  // Predicated region
  $region6: #{qvae_forward.16} parent=0 // pred_check
    _
  $region7: #{qvae_forward.16} parent=0 // pred_check_branch
    %11 = sbr.rel (0) target = $region9
  $region8: #{qvae_forward.16} parent=0 // pred_region
    _
  $region9: #{qvae_forward.16} parent=0 // pred_fallthru
    _
  // Predicated region
  $region10: #{qvae_forward.16} parent=0 // pred_check
    _
  $region11: #{qvae_forward.16} parent=0 // pred_check_branch
    %13 = sbr.rel (0) target = $region13
  $region12: #{qvae_forward.16} parent=0 // pred_region
    _
  $region13: #{qvae_forward.16} parent=0 // pred_fallthru
    _
  %v15 = vld [vmem:[%s0] sm:$0xff]
  %v16 = vld [vmem:[%s0 + $0x8] sm:$0xff]
  %v17 = vld [vmem:[%s0 + $0x10] sm:$0xff]
  %v18 = vld [vmem:[%s0 + $0x18] sm:$0xff]
  %v19 = vld [vmem:[%s1] sm:$0xf]
  %v20 = vld [vmem:[%s1 + $0x4] sm:$0xf]
  %v21 = vld [vmem:[%s1 + $0x8] sm:$0xf]
  %v22 = vld [vmem:[%s1 + $0xc] sm:$0xf]
  %v23 = vld [vmem:[%s1 + $0x10] sm:$0xf]
  %v24 = vld [vmem:[%s1 + $0x14] sm:$0xf]
  %v25 = vld [vmem:[%s1 + $0x18] sm:$0xf]
  %v26 = vld [vmem:[%s1 + $0x1c] sm:$0xf]
  %v27 = vld [vmem:[%s1 + $0x20] sm:$0xf]
  %v28 = vld [vmem:[%s1 + $0x24] sm:$0xf]
  %v29 = vld [vmem:[%s1 + $0x28] sm:$0xf]
  %v30 = vld [vmem:[%s1 + $0x2c] sm:$0xf]
  %v31 = vld [vmem:[%s1 + $0x30] sm:$0xf]
  %v32 = vld [vmem:[%s1 + $0x34] sm:$0xf]
  %v33 = vld [vmem:[%s1 + $0x38] sm:$0xf]
  %v34 = vld [vmem:[%s1 + $0x3c] sm:$0xf]
  %v35 = vld [vmem:[%s1 + $0x40] sm:$0xf]
  %v36 = vld [vmem:[%s1 + $0x44] sm:$0xf]
  %v37 = vld [vmem:[%s1 + $0x48] sm:$0xf]
  %v38 = vld [vmem:[%s1 + $0x4c] sm:$0xf]
  %v39 = vld [vmem:[%s1 + $0x50] sm:$0xf]
  %v40 = vld [vmem:[%s1 + $0x54] sm:$0xf]
  %v41 = vld [vmem:[%s1 + $0x58] sm:$0xf]
  %v42 = vld [vmem:[%s1 + $0x5c] sm:$0xf]
  %v43 = vld [vmem:[%s1 + $0x60] sm:$0xf]
  %v44 = vld [vmem:[%s1 + $0x64] sm:$0xf]
  %v45 = vld [vmem:[%s1 + $0x68] sm:$0xf]
  %v46 = vld [vmem:[%s1 + $0x6c] sm:$0xf]
  %v47 = vld [vmem:[%s1 + $0x70] sm:$0xf]
  %v48 = vld [vmem:[%s1 + $0x74] sm:$0xf]
  %v49 = vld [vmem:[%s1 + $0x78] sm:$0xf]
  %v50 = vld [vmem:[%s1 + $0x7c] sm:$0xf]
  %v51 = vld [vmem:[%s2] sm:$0x1]
  %v53 = vlaneseq
  %v54 = vshrl.u32 %v53, 7
  %v55 = vsub.s32 0, %v54
  %v56 = vrot.slane %v51, %v55
  %v62 = vunpack.c.l.b16 %v15
  %v63 = vunpack.c.h.b16 %v15
  %v64 = vunpack.c.l.b16 %v16
  %v65 = vunpack.c.h.b16 %v16
  %v66 = vunpack.c.l.b16 %v17
  %v67 = vunpack.c.h.b16 %v17
  %v68 = vunpack.c.l.b16 %v18
  %v69 = vunpack.c.h.b16 %v18
  %v70 = vpack.c.b16 %v64, %v62
  %v71 = vpack.c.b16 %v65, %v63
  %v72 = vpack.c.b16 %v68, %v66
  %v73 = vpack.c.b16 %v69, %v67
  %v110 = vunpack.c.l.b16 %v19
  %v111 = vunpack.c.l.b16 %v20
  %v112 = vunpack.c.l.b16 %v21
  %v113 = vunpack.c.l.b16 %v22
  %v114 = vunpack.c.l.b16 %v23
  %v115 = vunpack.c.l.b16 %v24
  %v116 = vunpack.c.l.b16 %v25
  %v117 = vunpack.c.l.b16 %v26
  %v118 = vunpack.c.l.b16 %v27
  %v119 = vunpack.c.l.b16 %v28
  %v120 = vunpack.c.l.b16 %v29
  %v121 = vunpack.c.l.b16 %v30
  %v122 = vunpack.c.l.b16 %v31
  %v123 = vunpack.c.l.b16 %v32
  %v124 = vunpack.c.l.b16 %v33
  %v125 = vunpack.c.l.b16 %v34
  %v126 = vunpack.c.l.b16 %v35
  %v127 = vunpack.c.l.b16 %v36
  %v128 = vunpack.c.l.b16 %v37
  %v129 = vunpack.c.l.b16 %v38
  %v130 = vunpack.c.l.b16 %v39
  %v131 = vunpack.c.l.b16 %v40
  %v132 = vunpack.c.l.b16 %v41
  %v133 = vunpack.c.l.b16 %v42
  %v134 = vunpack.c.l.b16 %v43
  %v135 = vunpack.c.l.b16 %v44
  %v136 = vunpack.c.l.b16 %v45
  %v137 = vunpack.c.l.b16 %v46
  %v138 = vunpack.c.l.b16 %v47
  %v139 = vunpack.c.l.b16 %v48
  %v140 = vunpack.c.l.b16 %v49
  %v141 = vunpack.c.l.b16 %v50
  %v142 = vpack.c.b16 %v111, %v110
  %v143 = vpack.c.b16 %v113, %v112
  %v144 = vpack.c.b16 %v115, %v114
  %v145 = vpack.c.b16 %v117, %v116
  %v146 = vpack.c.b16 %v119, %v118
  %v147 = vpack.c.b16 %v121, %v120
  %v148 = vpack.c.b16 %v123, %v122
  %v149 = vpack.c.b16 %v125, %v124
  %v150 = vpack.c.b16 %v127, %v126
  %v151 = vpack.c.b16 %v129, %v128
  %v152 = vpack.c.b16 %v131, %v130
  %v153 = vpack.c.b16 %v133, %v132
  %v154 = vpack.c.b16 %v135, %v134
  %v155 = vpack.c.b16 %v137, %v136
  %v156 = vpack.c.b16 %v139, %v138
  %v157 = vpack.c.b16 %v141, %v140
  %174 = vmatprep.subr.bf16.mxu0 0
  %175 = vmatpush1.bf16.msra.mxu0 %v142
  %176 = vmatprep.subr.bf16.mxu0 0
  %177 = vmatpush1.bf16.msra.mxu0 %v143
  %178 = vmatprep.subr.bf16.mxu0 0
  %179 = vmatpush1.bf16.msra.mxu0 %v144
  %180 = vmatprep.subr.bf16.mxu0 0
  %181 = vmatpush1.bf16.msra.mxu0 %v145
  %182 = vmatprep.subr.bf16.mxu0 0
  %183 = vmatpush1.bf16.msra.mxu0 %v146
  %184 = vmatprep.subr.bf16.mxu0 0
  %185 = vmatpush1.bf16.msra.mxu0 %v147
  %186 = vmatprep.subr.bf16.mxu0 0
  %187 = vmatpush1.bf16.msra.mxu0 %v148
  %188 = vmatprep.subr.bf16.mxu0 0
  %189 = vmatpush1.bf16.msra.mxu0 %v149
  %190 = vmatprep.subr.bf16.mxu0 0
  %191 = vmatpush1.bf16.msra.mxu0 %v150
  %192 = vmatprep.subr.bf16.mxu0 0
  %193 = vmatpush1.bf16.msra.mxu0 %v151
  %194 = vmatprep.subr.bf16.mxu0 0
  %195 = vmatpush1.bf16.msra.mxu0 %v152
  %196 = vmatprep.subr.bf16.mxu0 0
  %197 = vmatpush1.bf16.msra.mxu0 %v153
  %198 = vmatprep.subr.bf16.mxu0 0
  %199 = vmatpush1.bf16.msra.mxu0 %v154
  %200 = vmatprep.subr.bf16.mxu0 0
  %201 = vmatpush1.bf16.msra.mxu0 %v155
  %202 = vmatprep.subr.bf16.mxu0 0
  %203 = vmatpush1.bf16.msra.mxu0 %v156
  %204 = vmatprep.subr.bf16.mxu0 0
  %205 = vmatpush1.bf16.msra.mxu0 %v157
  %206 = vmatprep.mubr.bf16.mxu0 %v71
  %207 = vmatmul.mubr.bf16.gmra.mrb[0].mxu0 %v70
  %v208 = vpop.f32.mrb[0].mxu0
  %v209 = vadd.f32 %v56, %v208
  %v210 = vpop.f32.mrb[0].mxu0
  %v211 = vpop.f32.mrb[0].mxu0
  %v212 = vadd.f32 %v56, %v211
  %v213 = vpop.f32.mrb[0].mxu0
  %214 = vmatprep.mubr.bf16.mxu0 %v73
  %215 = vmatmul.mubr.bf16.gmra.mrb[0].mxu0 %v72
  %v216 = vpop.f32.mrb[0].mxu0
  %v217 = vadd.f32 %v56, %v216
  %v218 = vpop.f32.mrb[0].mxu0
  %v219 = vpop.f32.mrb[0].mxu0
  %v220 = vadd.f32 %v56, %v219
  %v221 = vpop.f32.mrb[0].mxu0
  %222 = vdwg.mxu0
  %v223 = vmax.f32 %v209, 0.0
  %v224 = vmax.f32 %v212, 0.0
  %v225 = vmax.f32 %v217, 0.0
  %v226 = vmax.f32 %v220, 0.0
  %v227 = vpack.c.bf16 %v224, %v223
  %v228 = vpack.c.bf16 %v226, %v225
  %v231 = vunpack.c.l.b16 %v227
  %v232 = vunpack.c.h.b16 %v227
  %v233 = vunpack.c.l.b16 %v228
  %v234 = vunpack.c.h.b16 %v228
  %v235 = vpack.c.b16 %v231, %v231
  %v236 = vpack.c.b16 %v232, %v232
  %v237 = vpack.c.b16 %v233, %v233
  %v238 = vpack.c.b16 %v234, %v234
  %vm243 = vcmask 257024
  %244 = vst.msk [vmem:[%s3] sm:$0xf] %vm243, %v235
  %245 = vst.msk [vmem:[%s3 + $0x4] sm:$0xf] %vm243, %v236
  %246 = vst.msk [vmem:[%s3 + $0x8] sm:$0xf] %vm243, %v237
  %247 = vst.msk [vmem:[%s3 + $0xc] sm:$0xf] %vm243, %v238
  // Predicated region
  $region14: #{qvae_forward.16} parent=0 // pred_check
    _
  $region15: #{qvae_forward.16} parent=0 // pred_check_branch
    %249 = sbr.rel (0) target = $region17
  $region16: #{qvae_forward.16} parent=0 // pred_region
    _
  $region17: #{qvae_forward.16} parent=0 // pred_fallthru
    _
  // Predicated region
  $region18: #{qvae_forward.16} parent=0 // pred_check
    _
  $region19: #{qvae_forward.16} parent=0 // pred_check_branch
    %251 = sbr.rel (0) target = $region21
  $region20: #{qvae_forward.16} parent=0 // pred_region
    _
  $region21: #{qvae_forward.16} parent=0 // pred_fallthru
    _

// kernel: qvae_forward.17
$region0: #{qvae_forward.17}
  #allocation0 [shape = 'u32[]', space=smem, size = 0x4, offset = 0x4, fixed_abs, tag = 'smem constant byte address 0x4 - core index']
  #allocation1 [shape = 'u32[144,128]{1,0:T(1,128)}', space=vmem, size = 0x12000, scoped, tag = 'internal scratch']
  %s0 = inlined_call_operand.vmem [shape: bf16[32,288], index: 0, kind: input, shape index: {}]
  %s1 = inlined_call_operand.vmem [shape: bf16[288,32], index: 1, kind: input, shape index: {}]
  %s2 = inlined_call_operand.vmem [shape: f32[1,32], index: 2, kind: input, shape index: {}]
  %s3 = inlined_call_operand.vmem [shape: bf16[32,32], index: 3, kind: output, shape index: {}]
  %s4 = sld [smem:[#allocation0]]
  $region22: #{qvae_forward.17} parent=0
    _
  %s6 = ssub.s32 1, %s4
  %s7 = scalar_select 0, %s6, %s4
  // Predicated region
  $region2: #{qvae_forward.17} parent=0 // pred_check
    _
  $region3: #{qvae_forward.17} parent=0 // pred_check_branch
    %9 = sbr.rel (0) target = $region5
  $region4: #{qvae_forward.17} parent=0 // pred_region
    _
  $region5: #{qvae_forward.17} parent=0 // pred_fallthru
    _
  // Predicated region
  $region6: #{qvae_forward.17} parent=0 // pred_check
    _
  $region7: #{qvae_forward.17} parent=0 // pred_check_branch
    %11 = sbr.rel (0) target = $region9
  $region8: #{qvae_forward.17} parent=0 // pred_region
    _
  $region9: #{qvae_forward.17} parent=0 // pred_fallthru
    _
  // Predicated region
  $region10: #{qvae_forward.17} parent=0 // pred_check
    _
  $region11: #{qvae_forward.17} parent=0 // pred_check_branch
    %13 = sbr.rel (0) target = $region13
  $region12: #{qvae_forward.17} parent=0 // pred_region
    _
  $region13: #{qvae_forward.17} parent=0 // pred_fallthru
    _
  %v15 = vld [vmem:[%s0] sm:$0xff]
  %v16 = vld [vmem:[%s0 + $0x8] sm:$0xf]
  %v17 = vld [vmem:[%s0 + $0xc] sm:$0xff]
  %v18 = vld [vmem:[%s0 + $0x14] sm:$0xf]
  %v19 = vld [vmem:[%s0 + $0x18] sm:$0xff]
  %v20 = vld [vmem:[%s0 + $0x20] sm:$0xf]
  %v21 = vld [vmem:[%s0 + $0x24] sm:$0xff]
  %v22 = vld [vmem:[%s0 + $0x2c] sm:$0xf]
  %v23 = vld [vmem:[%s1] sm:$0xf]
  %v24 = vld [vmem:[%s1 + $0x4] sm:$0xf]
  %v25 = vld [vmem:[%s1 + $0x8] sm:$0xf]
  %v26 = vld [vmem:[%s1 + $0xc] sm:$0xf]
  %v27 = vld [vmem:[%s1 + $0x10] sm:$0xf]
  %v28 = vld [vmem:[%s1 + $0x14] sm:$0xf]
  %v29 = vld [vmem:[%s1 + $0x18] sm:$0xf]
  %v30 = vld [vmem:[%s1 + $0x1c] sm:$0xf]
  %v31 = vld [vmem:[%s1 + $0x20] sm:$0xf]
  %v32 = vld [vmem:[%s1 + $0x24] sm:$0xf]
  %v33 = vld [vmem:[%s1 + $0x28] sm:$0xf]
  %v34 = vld [vmem:[%s1 + $0x2c] sm:$0xf]
  %v35 = vld [vmem:[%s1 + $0x30] sm:$0xf]
  %v36 = vld [vmem:[%s1 + $0x34] sm:$0xf]
  %v37 = vld [vmem:[%s1 + $0x38] sm:$0xf]
  %v38 = vld [vmem:[%s1 + $0x3c] sm:$0xf]
  %v39 = vld [vmem:[%s1 + $0x40] sm:$0xf]
  %v40 = vld [vmem:[%s1 + $0x44] sm:$0xf]
  %v41 = vld [vmem:[%s1 + $0x48] sm:$0xf]
  %v42 = vld [vmem:[%s1 + $0x4c] sm:$0xf]
  %v43 = vld [vmem:[%s1 + $0x50] sm:$0xf]
  %v44 = vld [vmem:[%s1 + $0x54] sm:$0xf]
  %v45 = vld [vmem:[%s1 + $0x58] sm:$0xf]
  %v46 = vld [vmem:[%s1 + $0x5c] sm:$0xf]
  %v47 = vld [vmem:[%s1 + $0x60] sm:$0xf]
  %v48 = vld [vmem:[%s1 + $0x64] sm:$0xf]
  %v49 = vld [vmem:[%s1 + $0x68] sm:$0xf]
  %v50 = vld [vmem:[%s1 + $0x6c] sm:$0xf]
  %v51 = vld [vmem:[%s1 + $0x70] sm:$0xf]
  %v52 = vld [vmem:[%s1 + $0x74] sm:$0xf]
  %v53 = vld [vmem:[%s1 + $0x78] sm:$0xf]
  %v54 = vld [vmem:[%s1 + $0x7c] sm:$0xf]
  %v55 = vld [vmem:[%s1 + $0x80] sm:$0xf]
  %v56 = vld [vmem:[%s1 + $0x84] sm:$0xf]
  %v57 = vld [vmem:[%s1 + $0x88] sm:$0xf]
  %v58 = vld [vmem:[%s1 + $0x8c] sm:$0xf]
  %v59 = vld [vmem:[%s2] sm:$0x1]
  %v61 = vlaneseq
  %v62 = vshrl.u32 %v61, 7
  %v63 = vsub.s32 0, %v62
  %v64 = vrot.slane %v59, %v63
  %v74 = vunpack.c.l.b16 %v15
  %v75 = vunpack.c.h.b16 %v15
  %v76 = vunpack.c.l.b16 %v16
  %v77 = vunpack.c.l.b16 %v17
  %v78 = vunpack.c.h.b16 %v17
  %v79 = vunpack.c.l.b16 %v18
  %v80 = vunpack.c.l.b16 %v19
  %v81 = vunpack.c.h.b16 %v19
  %v82 = vunpack.c.l.b16 %v20
  %v83 = vunpack.c.l.b16 %v21
  %v84 = vunpack.c.h.b16 %v21
  %v85 = vunpack.c.l.b16 %v22
  %v86 = vpack.c.b16 %v77, %v74
  %v87 = vpack.c.b16 %v78, %v75
  %v88 = vpack.c.b16 %v79, %v76
  %v89 = vpack.c.b16 %v83, %v80
  %v90 = vpack.c.b16 %v84, %v81
  %v91 = vpack.c.b16 %v85, %v82
  %v132 = vunpack.c.l.b16 %v23
  %v133 = vunpack.c.l.b16 %v24
  %v134 = vunpack.c.l.b16 %v25
  %v135 = vunpack.c.l.b16 %v26
  %v136 = vunpack.c.l.b16 %v27
  %v137 = vunpack.c.l.b16 %v28
  %v138 = vunpack.c.l.b16 %v29
  %v139 = vunpack.c.l.b16 %v30
  %v140 = vunpack.c.l.b16 %v31
  %v141 = vunpack.c.l.b16 %v32
  %v142 = vunpack.c.l.b16 %v33
  %v143 = vunpack.c.l.b16 %v34
  %v144 = vunpack.c.l.b16 %v35
  %v145 = vunpack.c.l.b16 %v36
  %v146 = vunpack.c.l.b16 %v37
  %v147 = vunpack.c.l.b16 %v38
  %v148 = vunpack.c.l.b16 %v39
  %v149 = vunpack.c.l.b16 %v40
  %v150 = vunpack.c.l.b16 %v41
  %v151 = vunpack.c.l.b16 %v42
  %v152 = vunpack.c.l.b16 %v43
  %v153 = vunpack.c.l.b16 %v44
  %v154 = vunpack.c.l.b16 %v45
  %v155 = vunpack.c.l.b16 %v46
  %v156 = vunpack.c.l.b16 %v47
  %v157 = vunpack.c.l.b16 %v48
  %v158 = vunpack.c.l.b16 %v49
  %v159 = vunpack.c.l.b16 %v50
  %v160 = vunpack.c.l.b16 %v51
  %v161 = vunpack.c.l.b16 %v52
  %v162 = vunpack.c.l.b16 %v53
  %v163 = vunpack.c.l.b16 %v54
  %v164 = vunpack.c.l.b16 %v55
  %v165 = vunpack.c.l.b16 %v56
  %v166 = vunpack.c.l.b16 %v57
  %v167 = vunpack.c.l.b16 %v58
  %v168 = vpack.c.b16 %v133, %v132
  %v169 = vpack.c.b16 %v135, %v134
  %v170 = vpack.c.b16 %v137, %v136
  %v171 = vpack.c.b16 %v139, %v138
  %v172 = vpack.c.b16 %v141, %v140
  %v173 = vpack.c.b16 %v143, %v142
  %v174 = vpack.c.b16 %v145, %v144
  %v175 = vpack.c.b16 %v147, %v146
  %v176 = vpack.c.b16 %v149, %v148
  %v177 = vpack.c.b16 %v151, %v150
  %v178 = vpack.c.b16 %v153, %v152
  %v179 = vpack.c.b16 %v155, %v154
  %v180 = vpack.c.b16 %v157, %v156
  %v181 = vpack.c.b16 %v159, %v158
  %v182 = vpack.c.b16 %v161, %v160
  %v183 = vpack.c.b16 %v163, %v162
  %v184 = vpack.c.b16 %v165, %v164
  %v185 = vpack.c.b16 %v167, %v166
  %vm204 = vcmask 261120
  %v206 = vsel %vm204, %v88, 0
  %v209 = vsel %vm204, %v91, 0
  %211 = vmatprep.subr.bf16.mxu0 0
  %212 = vmatpush1.bf16.msra.mxu0 %v168
  %213 = vmatprep.subr.bf16.mxu0 0
  %214 = vmatpush1.bf16.msra.mxu0 %v169
  %215 = vmatprep.subr.bf16.mxu0 0
  %216 = vmatpush1.bf16.msra.mxu0 %v170
  %217 = vmatprep.subr.bf16.mxu0 0
  %218 = vmatpush1.bf16.msra.mxu0 %v171
  %219 = vmatprep.subr.bf16.mxu0 0
  %220 = vmatpush1.bf16.msra.mxu0 %v172
  %221 = vmatprep.subr.bf16.mxu0 0
  %222 = vmatpush1.bf16.msra.mxu0 %v173
  %223 = vmatprep.subr.bf16.mxu0 0
  %224 = vmatpush1.bf16.msra.mxu0 %v174
  %225 = vmatprep.subr.bf16.mxu0 0
  %226 = vmatpush1.bf16.msra.mxu0 %v175
  %227 = vmatprep.subr.bf16.mxu0 0
  %228 = vmatpush1.bf16.msra.mxu0 %v176
  %229 = vmatprep.subr.bf16.mxu0 0
  %230 = vmatpush1.bf16.msra.mxu0 %v177
  %231 = vmatprep.subr.bf16.mxu0 0
  %232 = vmatpush1.bf16.msra.mxu0 %v178
  %233 = vmatprep.subr.bf16.mxu0 0
  %234 = vmatpush1.bf16.msra.mxu0 %v179
  %235 = vmatprep.subr.bf16.mxu0 0
  %236 = vmatpush1.bf16.msra.mxu0 %v180
  %237 = vmatprep.subr.bf16.mxu0 0
  %238 = vmatpush1.bf16.msra.mxu0 %v181
  %239 = vmatprep.subr.bf16.mxu0 0
  %240 = vmatpush1.bf16.msra.mxu0 %v182
  %241 = vmatprep.subr.bf16.mxu0 0
  %242 = vmatpush1.bf16.msra.mxu0 %v183
  %243 = vmatprep.mubr.bf16.mxu0 %v87
  %244 = vmatmul.mubr.bf16.gmra.mrb[0].mxu0 %v86
  %v245 = vpop.f32.mrb[0].mxu0
  %v246 = vadd.f32 %v64, %v245
  %v247 = vpop.f32.mrb[0].mxu0
  %v248 = vpop.f32.mrb[0].mxu0
  %v249 = vadd.f32 %v64, %v248
  %v250 = vpop.f32.mrb[0].mxu0
  %251 = vmatprep.mubr.bf16.mxu0 %v90
  %252 = vmatmul.mubr.bf16.gmra.mrb[0].mxu0 %v89
  %v253 = vpop.f32.mrb[0].mxu0
  %v254 = vadd.f32 %v64, %v253
  %v255 = vpop.f32.mrb[0].mxu0
  %v256 = vpop.f32.mrb[0].mxu0
  %v257 = vadd.f32 %v64, %v256
  %v258 = vpop.f32.mrb[0].mxu0
  %259 = vdwg.mxu0
  %260 = vmatprep.subr.bf16.mxu0 0
  %261 = vmatpush1.bf16.msra.mxu0 %v184
  %262 = vmatprep.subr.bf16.mxu0 0
  %263 = vmatpush1.bf16.msra.mxu0 %v185
  %264 = vmatprep.subr.bf16.mxu0 0
  %265 = vmatpush1.bf16.msra.mxu0 0
  %266 = vmatprep.subr.bf16.mxu0 0
  %267 = vmatpush1.bf16.msra.mxu0 0
  %268 = vmatprep.subr.bf16.mxu0 0
  %269 = vmatpush1.bf16.msra.mxu0 0
  %270 = vmatprep.subr.bf16.mxu0 0
  %271 = vmatpush1.bf16.msra.mxu0 0
  %272 = vmatprep.subr.bf16.mxu0 0
  %273 = vmatpush1.bf16.msra.mxu0 0
  %274 = vmatprep.subr.bf16.mxu0 0
  %275 = vmatpush1.bf16.msra.mxu0 0
  %276 = vmatprep.subr.bf16.mxu0 0
  %277 = vmatpush1.bf16.msra.mxu0 0
  %278 = vmatprep.subr.bf16.mxu0 0
  %279 = vmatpush1.bf16.msra.mxu0 0
  %280 = vmatprep.subr.bf16.mxu0 0
  %281 = vmatpush1.bf16.msra.mxu0 0
  %282 = vmatprep.subr.bf16.mxu0 0
  %283 = vmatpush1.bf16.msra.mxu0 0
  %284 = vmatprep.subr.bf16.mxu0 0
  %285 = vmatpush1.bf16.msra.mxu0 0
  %286 = vmatprep.subr.bf16.mxu0 0
  %287 = vmatpush1.bf16.msra.mxu0 0
  %288 = vmatprep.subr.bf16.mxu0 0
  %289 = vmatpush1.bf16.msra.mxu0 0
  %290 = vmatprep.subr.bf16.mxu0 0
  %291 = vmatpush1.bf16.msra.mxu0 0
  %292 = vmatprep.mubr.bf16.mxu0 0
  %293 = vmatmul.mubr.bf16.gmra.mrb[0].mxu0 %v206
  %v294 = vpop.f32.mrb[0].mxu0
  %v295 = vadd.f32 %v246, %v294
  %v296 = vpop.f32.mrb[0].mxu0
  %v297 = vpop.f32.mrb[0].mxu0
  %v298 = vadd.f32 %v249, %v297
  %v299 = vpop.f32.mrb[0].mxu0
  %300 = vmatprep.mubr.bf16.mxu0 0
  %301 = vmatmul.mubr.bf16.gmra.mrb[0].mxu0 %v209
  %v302 = vpop.f32.mrb[0].mxu0
  %v303 = vadd.f32 %v254, %v302
  %v304 = vpop.f32.mrb[0].mxu0
  %v305 = vpop.f32.mrb[0].mxu0
  %v306 = vadd.f32 %v257, %v305
  %v307 = vpop.f32.mrb[0].mxu0
  %308 = vdwg.mxu0
  %v309 = vpack.c.bf16 %v298, %v295
  %v310 = vpack.c.bf16 %v306, %v303
  %v313 = vunpack.c.l.b16 %v309
  %v314 = vunpack.c.h.b16 %v309
  %v315 = vunpack.c.l.b16 %v310
  %v316 = vunpack.c.h.b16 %v310
  %v317 = vpack.c.b16 %v313, %v313
  %v318 = vpack.c.b16 %v314, %v314
  %v319 = vpack.c.b16 %v315, %v315
  %v320 = vpack.c.b16 %v316, %v316
  %vm325 = vcmask 257024
  %326 = vst.msk [vmem:[%s3] sm:$0xf] %vm325, %v317
  %327 = vst.msk [vmem:[%s3 + $0x4] sm:$0xf] %vm325, %v318
  %328 = vst.msk [vmem:[%s3 + $0x8] sm:$0xf] %vm325, %v319
  %329 = vst.msk [vmem:[%s3 + $0xc] sm:$0xf] %vm325, %v320
  // Predicated region
  $region14: #{qvae_forward.17} parent=0 // pred_check
    _
  $region15: #{qvae_forward.17} parent=0 // pred_check_branch
    %331 = sbr.rel (0) target = $region17
  $region16: #{qvae_forward.17} parent=0 // pred_region
    _
  $region17: #{qvae_forward.17} parent=0 // pred_fallthru
    _
  // Predicated region
  $region18: #{qvae_forward.17} parent=0 // pred_check
    _
  $region19: #{qvae_forward.17} parent=0 // pred_check_branch
    %333 = sbr.rel (0) target = $region21
  $region20: #{qvae_forward.17} parent=0 // pred_region
    _
  $region21: #{qvae_forward.17} parent=0 // pred_fallthru
    _

// kernel: qvae_forward.18
$region0: #{qvae_forward.18}
  #allocation0 [shape = 'u32[]', space=smem, size = 0x4, offset = 0x4, fixed_abs, tag = 'smem constant byte address 0x4 - core index']
  #allocation1 [shape = 'u32[144,128]{1,0:T(1,128)}', space=vmem, size = 0x12000, scoped, tag = 'internal scratch']
  %s0 = inlined_call_operand.vmem [shape: bf16[32,288], index: 0, kind: input, shape index: {}]
  %s1 = inlined_call_operand.vmem [shape: bf16[288,16], index: 1, kind: input, shape index: {}]
  %s2 = inlined_call_operand.vmem [shape: f32[1,16], index: 2, kind: input, shape index: {}]
  %s3 = inlined_call_operand.vmem [shape: bf16[32,16], index: 3, kind: output, shape index: {}]
  %s4 = sld [smem:[#allocation0]]
  $region22: #{qvae_forward.18} parent=0
    _
  %s6 = ssub.s32 1, %s4
  %s7 = scalar_select 0, %s6, %s4
  // Predicated region
  $region2: #{qvae_forward.18} parent=0 // pred_check
    _
  $region3: #{qvae_forward.18} parent=0 // pred_check_branch
    %9 = sbr.rel (0) target = $region5
  $region4: #{qvae_forward.18} parent=0 // pred_region
    _
  $region5: #{qvae_forward.18} parent=0 // pred_fallthru
    _
  // Predicated region
  $region6: #{qvae_forward.18} parent=0 // pred_check
    _
  $region7: #{qvae_forward.18} parent=0 // pred_check_branch
    %11 = sbr.rel (0) target = $region9
  $region8: #{qvae_forward.18} parent=0 // pred_region
    _
  $region9: #{qvae_forward.18} parent=0 // pred_fallthru
    _
  // Predicated region
  $region10: #{qvae_forward.18} parent=0 // pred_check
    _
  $region11: #{qvae_forward.18} parent=0 // pred_check_branch
    %13 = sbr.rel (0) target = $region13
  $region12: #{qvae_forward.18} parent=0 // pred_region
    _
  $region13: #{qvae_forward.18} parent=0 // pred_fallthru
    _
  %v15 = vld [vmem:[%s0] sm:$0xff]
  %v16 = vld [vmem:[%s0 + $0x8] sm:$0xf]
  %v17 = vld [vmem:[%s0 + $0xc] sm:$0xff]
  %v18 = vld [vmem:[%s0 + $0x14] sm:$0xf]
  %v19 = vld [vmem:[%s0 + $0x18] sm:$0xff]
  %v20 = vld [vmem:[%s0 + $0x20] sm:$0xf]
  %v21 = vld [vmem:[%s0 + $0x24] sm:$0xff]
  %v22 = vld [vmem:[%s0 + $0x2c] sm:$0xf]
  %v23 = vmax.bf16 %v15, 0
  %v24 = vmax.bf16 %v16, 0
  %v25 = vmax.bf16 %v17, 0
  %v26 = vmax.bf16 %v18, 0
  %v27 = vmax.bf16 %v19, 0
  %v28 = vmax.bf16 %v20, 0
  %v29 = vmax.bf16 %v21, 0
  %v30 = vmax.bf16 %v22, 0
  %v31 = vld [vmem:[%s1] sm:$0xf]
  %v32 = vld [vmem:[%s1 + $0x4] sm:$0xf]
  %v33 = vld [vmem:[%s1 + $0x8] sm:$0xf]
  %v34 = vld [vmem:[%s1 + $0xc] sm:$0xf]
  %v35 = vld [vmem:[%s1 + $0x10] sm:$0xf]
  %v36 = vld [vmem:[%s1 + $0x14] sm:$0xf]
  %v37 = vld [vmem:[%s1 + $0x18] sm:$0xf]
  %v38 = vld [vmem:[%s1 + $0x1c] sm:$0xf]
  %v39 = vld [vmem:[%s1 + $0x20] sm:$0xf]
  %v40 = vld [vmem:[%s1 + $0x24] sm:$0xf]
  %v41 = vld [vmem:[%s1 + $0x28] sm:$0xf]
  %v42 = vld [vmem:[%s1 + $0x2c] sm:$0xf]
  %v43 = vld [vmem:[%s1 + $0x30] sm:$0xf]
  %v44 = vld [vmem:[%s1 + $0x34] sm:$0xf]
  %v45 = vld [vmem:[%s1 + $0x38] sm:$0xf]
  %v46 = vld [vmem:[%s1 + $0x3c] sm:$0xf]
  %v47 = vld [vmem:[%s1 + $0x40] sm:$0xf]
  %v48 = vld [vmem:[%s1 + $0x44] sm:$0xf]
  %v49 = vld [vmem:[%s1 + $0x48] sm:$0xf]
  %v50 = vld [vmem:[%s1 + $0x4c] sm:$0xf]
  %v51 = vld [vmem:[%s1 + $0x50] sm:$0xf]
  %v52 = vld [vmem:[%s1 + $0x54] sm:$0xf]
  %v53 = vld [vmem:[%s1 + $0x58] sm:$0xf]
  %v54 = vld [vmem:[%s1 + $0x5c] sm:$0xf]
  %v55 = vld [vmem:[%s1 + $0x60] sm:$0xf]
  %v56 = vld [vmem:[%s1 + $0x64] sm:$0xf]
  %v57 = vld [vmem:[%s1 + $0x68] sm:$0xf]
  %v58 = vld [vmem:[%s1 + $0x6c] sm:$0xf]
  %v59 = vld [vmem:[%s1 + $0x70] sm:$0xf]
  %v60 = vld [vmem:[%s1 + $0x74] sm:$0xf]
  %v61 = vld [vmem:[%s1 + $0x78] sm:$0xf]
  %v62 = vld [vmem:[%s1 + $0x7c] sm:$0xf]
  %v63 = vld [vmem:[%s1 + $0x80] sm:$0xf]
  %v64 = vld [vmem:[%s1 + $0x84] sm:$0xf]
  %v65 = vld [vmem:[%s1 + $0x88] sm:$0xf]
  %v66 = vld [vmem:[%s1 + $0x8c] sm:$0xf]
  %v67 = vld [vmem:[%s2] sm:$0x1]
  %v69 = vlaneseq
  %v70 = vshrl.u32 %v69, 7
  %v71 = vsub.s32 0, %v70
  %v72 = vrot.slane %v67, %v71
  %v82 = vunpack.c.l.b16 %v23
  %v83 = vunpack.c.h.b16 %v23
  %v84 = vunpack.c.l.b16 %v24
  %v85 = vunpack.c.l.b16 %v25
  %v86 = vunpack.c.h.b16 %v25
  %v87 = vunpack.c.l.b16 %v26
  %v88 = vunpack.c.l.b16 %v27
  %v89 = vunpack.c.h.b16 %v27
  %v90 = vunpack.c.l.b16 %v28
  %v91 = vunpack.c.l.b16 %v29
  %v92 = vunpack.c.h.b16 %v29
  %v93 = vunpack.c.l.b16 %v30
  %v94 = vpack.c.b16 %v85, %v82
  %v95 = vpack.c.b16 %v86, %v83
  %v96 = vpack.c.b16 %v87, %v84
  %v97 = vpack.c.b16 %v91, %v88
  %v98 = vpack.c.b16 %v92, %v89
  %v99 = vpack.c.b16 %v93, %v90
  %v140 = vunpack.c.l.b16 %v31
  %v141 = vunpack.c.l.b16 %v32
  %v142 = vunpack.c.l.b16 %v33
  %v143 = vunpack.c.l.b16 %v34
  %v144 = vunpack.c.l.b16 %v35
  %v145 = vunpack.c.l.b16 %v36
  %v146 = vunpack.c.l.b16 %v37
  %v147 = vunpack.c.l.b16 %v38
  %v148 = vunpack.c.l.b16 %v39
  %v149 = vunpack.c.l.b16 %v40
  %v150 = vunpack.c.l.b16 %v41
  %v151 = vunpack.c.l.b16 %v42
  %v152 = vunpack.c.l.b16 %v43
  %v153 = vunpack.c.l.b16 %v44
  %v154 = vunpack.c.l.b16 %v45
  %v155 = vunpack.c.l.b16 %v46
  %v156 = vunpack.c.l.b16 %v47
  %v157 = vunpack.c.l.b16 %v48
  %v158 = vunpack.c.l.b16 %v49
  %v159 = vunpack.c.l.b16 %v50
  %v160 = vunpack.c.l.b16 %v51
  %v161 = vunpack.c.l.b16 %v52
  %v162 = vunpack.c.l.b16 %v53
  %v163 = vunpack.c.l.b16 %v54
  %v164 = vunpack.c.l.b16 %v55
  %v165 = vunpack.c.l.b16 %v56
  %v166 = vunpack.c.l.b16 %v57
  %v167 = vunpack.c.l.b16 %v58
  %v168 = vunpack.c.l.b16 %v59
  %v169 = vunpack.c.l.b16 %v60
  %v170 = vunpack.c.l.b16 %v61
  %v171 = vunpack.c.l.b16 %v62
  %v172 = vunpack.c.l.b16 %v63
  %v173 = vunpack.c.l.b16 %v64
  %v174 = vunpack.c.l.b16 %v65
  %v175 = vunpack.c.l.b16 %v66
  %v176 = vpack.c.b16 %v141, %v140
  %v177 = vpack.c.b16 %v143, %v142
  %v178 = vpack.c.b16 %v145, %v144
  %v179 = vpack.c.b16 %v147, %v146
  %v180 = vpack.c.b16 %v149, %v148
  %v181 = vpack.c.b16 %v151, %v150
  %v182 = vpack.c.b16 %v153, %v152
  %v183 = vpack.c.b16 %v155, %v154
  %v184 = vpack.c.b16 %v157, %v156
  %v185 = vpack.c.b16 %v159, %v158
  %v186 = vpack.c.b16 %v161, %v160
  %v187 = vpack.c.b16 %v163, %v162
  %v188 = vpack.c.b16 %v165, %v164
  %v189 = vpack.c.b16 %v167, %v166
  %v190 = vpack.c.b16 %v169, %v168
  %v191 = vpack.c.b16 %v171, %v170
  %v192 = vpack.c.b16 %v173, %v172
  %v193 = vpack.c.b16 %v175, %v174
  %vm212 = vcmask 261120
  %v214 = vsel %vm212, %v96, 0
  %v217 = vsel %vm212, %v99, 0
  %219 = vmatprep.subr.bf16.mxu0 0
  %220 = vmatpush1.bf16.msra.mxu0 %v176
  %221 = vmatprep.subr.bf16.mxu0 0
  %222 = vmatpush1.bf16.msra.mxu0 %v177
  %223 = vmatprep.subr.bf16.mxu0 0
  %224 = vmatpush1.bf16.msra.mxu0 %v178
  %225 = vmatprep.subr.bf16.mxu0 0
  %226 = vmatpush1.bf16.msra.mxu0 %v179
  %227 = vmatprep.subr.bf16.mxu0 0
  %228 = vmatpush1.bf16.msra.mxu0 %v180
  %229 = vmatprep.subr.bf16.mxu0 0
  %230 = vmatpush1.bf16.msra.mxu0 %v181
  %231 = vmatprep.subr.bf16.mxu0 0
  %232 = vmatpush1.bf16.msra.mxu0 %v182
  %233 = vmatprep.subr.bf16.mxu0 0
  %234 = vmatpush1.bf16.msra.mxu0 %v183
  %235 = vmatprep.subr.bf16.mxu0 0
  %236 = vmatpush1.bf16.msra.mxu0 %v184
  %237 = vmatprep.subr.bf16.mxu0 0
  %238 = vmatpush1.bf16.msra.mxu0 %v185
  %239 = vmatprep.subr.bf16.mxu0 0
  %240 = vmatpush1.bf16.msra.mxu0 %v186
  %241 = vmatprep.subr.bf16.mxu0 0
  %242 = vmatpush1.bf16.msra.mxu0 %v187
  %243 = vmatprep.subr.bf16.mxu0 0
  %244 = vmatpush1.bf16.msra.mxu0 %v188
  %245 = vmatprep.subr.bf16.mxu0 0
  %246 = vmatpush1.bf16.msra.mxu0 %v189
  %247 = vmatprep.subr.bf16.mxu0 0
  %248 = vmatpush1.bf16.msra.mxu0 %v190
  %249 = vmatprep.subr.bf16.mxu0 0
  %250 = vmatpush1.bf16.msra.mxu0 %v191
  %251 = vmatprep.mubr.bf16.mxu0 %v95
  %252 = vmatmul.mubr.bf16.gmra.mrb[0].mxu0 %v94
  %v253 = vpop.f32.mrb[0].mxu0
  %v254 = vadd.f32 %v72, %v253
  %v255 = vpop.f32.mrb[0].mxu0
  %v256 = vpop.f32.mrb[0].mxu0
  %v257 = vadd.f32 %v72, %v256
  %v258 = vpop.f32.mrb[0].mxu0
  %259 = vmatprep.mubr.bf16.mxu0 %v98
  %260 = vmatmul.mubr.bf16.gmra.mrb[0].mxu0 %v97
  %v261 = vpop.f32.mrb[0].mxu0
  %v262 = vadd.f32 %v72, %v261
  %v263 = vpop.f32.mrb[0].mxu0
  %v264 = vpop.f32.mrb[0].mxu0
  %v265 = vadd.f32 %v72, %v264
  %v266 = vpop.f32.mrb[0].mxu0
  %267 = vdwg.mxu0
  %268 = vmatprep.subr.bf16.mxu0 0
  %269 = vmatpush1.bf16.msra.mxu0 %v192
  %270 = vmatprep.subr.bf16.mxu0 0
  %271 = vmatpush1.bf16.msra.mxu0 %v193
  %272 = vmatprep.subr.bf16.mxu0 0
  %273 = vmatpush1.bf16.msra.mxu0 0
  %274 = vmatprep.subr.bf16.mxu0 0
  %275 = vmatpush1.bf16.msra.mxu0 0
  %276 = vmatprep.subr.bf16.mxu0 0
  %277 = vmatpush1.bf16.msra.mxu0 0
  %278 = vmatprep.subr.bf16.mxu0 0
  %279 = vmatpush1.bf16.msra.mxu0 0
  %280 = vmatprep.subr.bf16.mxu0 0
  %281 = vmatpush1.bf16.msra.mxu0 0
  %282 = vmatprep.subr.bf16.mxu0 0
  %283 = vmatpush1.bf16.msra.mxu0 0
  %284 = vmatprep.subr.bf16.mxu0 0
  %285 = vmatpush1.bf16.msra.mxu0 0
  %286 = vmatprep.subr.bf16.mxu0 0
  %287 = vmatpush1.bf16.msra.mxu0 0
  %288 = vmatprep.subr.bf16.mxu0 0
  %289 = vmatpush1.bf16.msra.mxu0 0
  %290 = vmatprep.subr.bf16.mxu0 0
  %291 = vmatpush1.bf16.msra.mxu0 0
  %292 = vmatprep.subr.bf16.mxu0 0
  %293 = vmatpush1.bf16.msra.mxu0 0
  %294 = vmatprep.subr.bf16.mxu0 0
  %295 = vmatpush1.bf16.msra.mxu0 0
  %296 = vmatprep.subr.bf16.mxu0 0
  %297 = vmatpush1.bf16.msra.mxu0 0
  %298 = vmatprep.subr.bf16.mxu0 0
  %299 = vmatpush1.bf16.msra.mxu0 0
  %300 = vmatprep.mubr.bf16.mxu0 0
  %301 = vmatmul.mubr.bf16.gmra.mrb[0].mxu0 %v214
  %v302 = vpop.f32.mrb[0].mxu0
  %v303 = vadd.f32 %v254, %v302
  %v304 = vpop.f32.mrb[0].mxu0
  %v305 = vpop.f32.mrb[0].mxu0
  %v306 = vadd.f32 %v257, %v305
  %v307 = vpop.f32.mrb[0].mxu0
  %308 = vmatprep.mubr.bf16.mxu0 0
  %309 = vmatmul.mubr.bf16.gmra.mrb[0].mxu0 %v217
  %v310 = vpop.f32.mrb[0].mxu0
  %v311 = vadd.f32 %v262, %v310
  %v312 = vpop.f32.mrb[0].mxu0
  %v313 = vpop.f32.mrb[0].mxu0
  %v314 = vadd.f32 %v265, %v313
  %v315 = vpop.f32.mrb[0].mxu0
  %316 = vdwg.mxu0
  %v317 = vmax.f32 %v303, 0.0
  %v318 = vmax.f32 %v306, 0.0
  %v319 = vmax.f32 %v311, 0.0
  %v320 = vmax.f32 %v314, 0.0
  %v321 = vpack.c.bf16 %v318, %v317
  %v322 = vpack.c.bf16 %v320, %v319
  %v325 = vunpack.c.l.b16 %v321
  %v326 = vunpack.c.h.b16 %v321
  %v327 = vunpack.c.l.b16 %v322
  %v328 = vunpack.c.h.b16 %v322
  %v329 = vpack.c.b16 %v325, %v325
  %v330 = vpack.c.b16 %v326, %v326
  %v331 = vpack.c.b16 %v327, %v327
  %v332 = vpack.c.b16 %v328, %v328
  %vm337 = vcmask 125952
  %338 = vst.msk [vmem:[%s3] sm:$0xf] %vm337, %v329
  %339 = vst.msk [vmem:[%s3 + $0x4] sm:$0xf] %vm337, %v330
  %340 = vst.msk [vmem:[%s3 + $0x8] sm:$0xf] %vm337, %v331
  %341 = vst.msk [vmem:[%s3 + $0xc] sm:$0xf] %vm337, %v332
  // Predicated region
  $region14: #{qvae_forward.18} parent=0 // pred_check
    _
  $region15: #{qvae_forward.18} parent=0 // pred_check_branch
    %343 = sbr.rel (0) target = $region17
  $region16: #{qvae_forward.18} parent=0 // pred_region
    _
  $region17: #{qvae_forward.18} parent=0 // pred_fallthru
    _
  // Predicated region
  $region18: #{qvae_forward.18} parent=0 // pred_check
    _
  $region19: #{qvae_forward.18} parent=0 // pred_check_branch
    %345 = sbr.rel (0) target = $region21
  $region20: #{qvae_forward.18} parent=0 // pred_region
    _
  $region21: #{qvae_forward.18} parent=0 // pred_fallthru
    _

// kernel: qvae_forward.19
$region0: #{qvae_forward.19}
  #allocation0 [shape = 'u32[]', space=smem, size = 0x4, offset = 0x4, fixed_abs, tag = 'smem constant byte address 0x4 - core index']
  #allocation1 [shape = 'u32[144,128]{1,0:T(1,128)}', space=vmem, size = 0x12000, scoped, tag = 'internal scratch']
  %s0 = inlined_call_operand.vmem [shape: bf16[32,16], index: 0, kind: input, shape index: {}]
  %s1 = inlined_call_operand.vmem [shape: bf16[16,32], index: 1, kind: input, shape index: {}]
  %s2 = inlined_call_operand.vmem [shape: f32[1,32], index: 2, kind: input, shape index: {}]
  %s3 = inlined_call_operand.vmem [shape: bf16[32,32], index: 3, kind: input, shape index: {}]
  %s4 = inlined_call_operand.vmem [shape: bf16[32,32], index: 4, kind: output, shape index: {}]
  %s5 = sld [smem:[#allocation0]]
  $region26: #{qvae_forward.19} parent=0
    _
  %s7 = ssub.s32 1, %s5
  %s8 = scalar_select 0, %s7, %s5
  // Predicated region
  $region2: #{qvae_forward.19} parent=0 // pred_check
    _
  $region3: #{qvae_forward.19} parent=0 // pred_check_branch
    %10 = sbr.rel (0) target = $region5
  $region4: #{qvae_forward.19} parent=0 // pred_region
    _
  $region5: #{qvae_forward.19} parent=0 // pred_fallthru
    _
  // Predicated region
  $region6: #{qvae_forward.19} parent=0 // pred_check
    _
  $region7: #{qvae_forward.19} parent=0 // pred_check_branch
    %12 = sbr.rel (0) target = $region9
  $region8: #{qvae_forward.19} parent=0 // pred_region
    _
  $region9: #{qvae_forward.19} parent=0 // pred_fallthru
    _
  // Predicated region
  $region10: #{qvae_forward.19} parent=0 // pred_check
    _
  $region11: #{qvae_forward.19} parent=0 // pred_check_branch
    %14 = sbr.rel (0) target = $region13
  $region12: #{qvae_forward.19} parent=0 // pred_region
    _
  $region13: #{qvae_forward.19} parent=0 // pred_fallthru
    _
  // Predicated region
  $region14: #{qvae_forward.19} parent=0 // pred_check
    _
  $region15: #{qvae_forward.19} parent=0 // pred_check_branch
    %16 = sbr.rel (0) target = $region17
  $region16: #{qvae_forward.19} parent=0 // pred_region
    _
  $region17: #{qvae_forward.19} parent=0 // pred_fallthru
    _
  %v18 = vld [vmem:[%s0] sm:$0xf]
  %v19 = vld [vmem:[%s0 + $0x4] sm:$0xf]
  %v20 = vld [vmem:[%s0 + $0x8] sm:$0xf]
  %v21 = vld [vmem:[%s0 + $0xc] sm:$0xf]
  %v22 = vld [vmem:[%s1] sm:$0xf]
  %v23 = vld [vmem:[%s1 + $0x4] sm:$0xf]
  %v24 = vld [vmem:[%s2] sm:$0x1]
  %v26 = vlaneseq
  %v27 = vshrl.u32 %v26, 7
  %v28 = vsub.s32 0, %v27
  %v29 = vrot.slane %v24, %v28
  %v35 = vunpack.c.l.b16 %v18
  %v36 = vunpack.c.l.b16 %v19
  %v37 = vunpack.c.l.b16 %v20
  %v38 = vunpack.c.l.b16 %v21
  %v39 = vpack.c.b16 %v36, %v35
  %v40 = vpack.c.b16 %v38, %v37
  %v43 = vunpack.c.l.b16 %v22
  %v44 = vunpack.c.l.b16 %v23
  %v45 = vpack.c.b16 %v44, %v43
  %vm47 = vcmask 130048
  %v49 = vsel %vm47, %v39, 0
  %v52 = vsel %vm47, %v40, 0
  %54 = vmatprep.subr.bf16.mxu0 0
  %55 = vmatpush1.bf16.msra.mxu0 %v45
  %56 = vmatprep.subr.bf16.mxu0 0
  %57 = vmatpush1.bf16.msra.mxu0 0
  %58 = vmatprep.subr.bf16.mxu0 0
  %59 = vmatpush1.bf16.msra.mxu0 0
  %60 = vmatprep.subr.bf16.mxu0 0
  %61 = vmatpush1.bf16.msra.mxu0 0
  %62 = vmatprep.subr.bf16.mxu0 0
  %63 = vmatpush1.bf16.msra.mxu0 0
  %64 = vmatprep.subr.bf16.mxu0 0
  %65 = vmatpush1.bf16.msra.mxu0 0
  %66 = vmatprep.subr.bf16.mxu0 0
  %67 = vmatpush1.bf16.msra.mxu0 0
  %68 = vmatprep.subr.bf16.mxu0 0
  %69 = vmatpush1.bf16.msra.mxu0 0
  %70 = vmatprep.subr.bf16.mxu0 0
  %71 = vmatpush1.bf16.msra.mxu0 0
  %72 = vmatprep.subr.bf16.mxu0 0
  %73 = vmatpush1.bf16.msra.mxu0 0
  %74 = vmatprep.subr.bf16.mxu0 0
  %75 = vmatpush1.bf16.msra.mxu0 0
  %76 = vmatprep.subr.bf16.mxu0 0
  %77 = vmatpush1.bf16.msra.mxu0 0
  %78 = vmatprep.subr.bf16.mxu0 0
  %79 = vmatpush1.bf16.msra.mxu0 0
  %80 = vmatprep.subr.bf16.mxu0 0
  %81 = vmatpush1.bf16.msra.mxu0 0
  %82 = vmatprep.subr.bf16.mxu0 0
  %83 = vmatpush1.bf16.msra.mxu0 0
  %84 = vmatprep.subr.bf16.mxu0 0
  %85 = vmatpush1.bf16.msra.mxu0 0
  %86 = vmatprep.mubr.bf16.mxu0 0
  %87 = vmatmul.mubr.bf16.gmra.mrb[0].mxu0 %v49
  %v88 = vpop.f32.mrb[0].mxu0
  %v89 = vadd.f32 %v29, %v88
  %v90 = vpop.f32.mrb[0].mxu0
  %v91 = vpop.f32.mrb[0].mxu0
  %v92 = vadd.f32 %v29, %v91
  %v93 = vpop.f32.mrb[0].mxu0
  %94 = vmatprep.mubr.bf16.mxu0 0
  %95 = vmatmul.mubr.bf16.gmra.mrb[0].mxu0 %v52
  %v96 = vpop.f32.mrb[0].mxu0
  %v97 = vadd.f32 %v29, %v96
  %v98 = vpop.f32.mrb[0].mxu0
  %v99 = vpop.f32.mrb[0].mxu0
  %v100 = vadd.f32 %v29, %v99
  %v101 = vpop.f32.mrb[0].mxu0
  %102 = vdwg.mxu0
  %v103 = vld [vmem:[%s3] sm:$0xf]
  %v104 = vld [vmem:[%s3 + $0x4] sm:$0xf]
  %v105 = vld [vmem:[%s3 + $0x8] sm:$0xf]
  %v106 = vld [vmem:[%s3 + $0xc] sm:$0xf]
  %v107 = vunpack.c.l.bf16 %v103
  %v108 = vunpack.c.l.bf16 %v104
  %v109 = vunpack.c.l.bf16 %v105
  %v110 = vunpack.c.l.bf16 %v106
  %v111 = vadd.f32 %v89, %v107
  %v112 = vadd.f32 %v92, %v108
  %v113 = vadd.f32 %v97, %v109
  %v114 = vadd.f32 %v100, %v110
  %v115 = vpack.c.bf16 %v112, %v111
  %v116 = vpack.c.bf16 %v114, %v113
  %v119 = vunpack.c.l.b16 %v115
  %v120 = vunpack.c.h.b16 %v115
  %v121 = vunpack.c.l.b16 %v116
  %v122 = vunpack.c.h.b16 %v116
  %v123 = vpack.c.b16 %v119, %v119
  %v124 = vpack.c.b16 %v120, %v120
  %v125 = vpack.c.b16 %v121, %v121
  %v126 = vpack.c.b16 %v122, %v122
  %vm131 = vcmask 257024
  %132 = vst.msk [vmem:[%s4] sm:$0xf] %vm131, %v123
  %133 = vst.msk [vmem:[%s4 + $0x4] sm:$0xf] %vm131, %v124
  %134 = vst.msk [vmem:[%s4 + $0x8] sm:$0xf] %vm131, %v125
  %135 = vst.msk [vmem:[%s4 + $0xc] sm:$0xf] %vm131, %v126
  // Predicated region
  $region18: #{qvae_forward.19} parent=0 // pred_check
    _
  $region19: #{qvae_forward.19} parent=0 // pred_check_branch
    %137 = sbr.rel (0) target = $region21
  $region20: #{qvae_forward.19} parent=0 // pred_region
    _
  $region21: #{qvae_forward.19} parent=0 // pred_fallthru
    _
  // Predicated region
  $region22: #{qvae_forward.19} parent=0 // pred_check
    _
  $region23: #{qvae_forward.19} parent=0 // pred_check_branch
    %139 = sbr.rel (0) target = $region25
  $region24: #{qvae_forward.19} parent=0 // pred_region
    _
  $region25: #{qvae_forward.19} parent=0 // pred_fallthru
    _

// kernel: qvae_forward.22
$region0: #{qvae_forward.22}
  #allocation0 [shape = 'u32[]', space=smem, size = 0x4, offset = 0x4, fixed_abs, tag = 'smem constant byte address 0x4 - core index']
  #allocation1 [shape = 'u32[144,128]{1,0:T(1,128)}', space=vmem, size = 0x12000, scoped, tag = 'internal scratch']
  %s0 = inlined_call_operand.vmem [shape: bf16[32,32], index: 0, kind: input, shape index: {}]
  %s1 = inlined_call_operand.vmem [shape: bf16[32,8], index: 1, kind: input, shape index: {}]
  %s2 = inlined_call_operand.vmem [shape: f32[1,8], index: 2, kind: input, shape index: {}]
  %s3 = inlined_call_operand.vmem [shape: f32[8,32], index: 3, kind: input, shape index: {}]
  %s4 = inlined_call_operand.vmem [shape: f32[32,8], index: 4, kind: output, shape index: {0}]
  %s5 = inlined_call_operand.vmem [shape: f32[32,8], index: 5, kind: output, shape index: {1}]
  %6 = xla_tuple %s4, %s5
  %s7 = sld [smem:[#allocation0]]
  $region34: #{qvae_forward.22} parent=0
    _
  %s9 = ssub.s32 1, %s7
  %s10 = scalar_select 0, %s9, %s7
  // Predicated region
  $region2: #{qvae_forward.22} parent=0 // pred_check
    _
  $region3: #{qvae_forward.22} parent=0 // pred_check_branch
    %12 = sbr.rel (0) target = $region5
  $region4: #{qvae_forward.22} parent=0 // pred_region
    _
  $region5: #{qvae_forward.22} parent=0 // pred_fallthru
    _
  // Predicated region
  $region6: #{qvae_forward.22} parent=0 // pred_check
    _
  $region7: #{qvae_forward.22} parent=0 // pred_check_branch
    %14 = sbr.rel (0) target = $region9
  $region8: #{qvae_forward.22} parent=0 // pred_region
    _
  $region9: #{qvae_forward.22} parent=0 // pred_fallthru
    _
  // Predicated region
  $region10: #{qvae_forward.22} parent=0 // pred_check
    _
  $region11: #{qvae_forward.22} parent=0 // pred_check_branch
    %16 = sbr.rel (0) target = $region13
  $region12: #{qvae_forward.22} parent=0 // pred_region
    _
  $region13: #{qvae_forward.22} parent=0 // pred_fallthru
    _
  // Predicated region
  $region14: #{qvae_forward.22} parent=0 // pred_check
    _
  $region15: #{qvae_forward.22} parent=0 // pred_check_branch
    %18 = sbr.rel (0) target = $region17
  $region16: #{qvae_forward.22} parent=0 // pred_region
    _
  $region17: #{qvae_forward.22} parent=0 // pred_fallthru
    _
  %v20 = vld [vmem:[%s0] sm:$0xf]
  %v21 = vld [vmem:[%s0 + $0x4] sm:$0xf]
  %v22 = vld [vmem:[%s0 + $0x8] sm:$0xf]
  %v23 = vld [vmem:[%s0 + $0xc] sm:$0xf]
  %v24 = vmax.bf16 %v20, 0
  %v25 = vmax.bf16 %v21, 0
  %v26 = vmax.bf16 %v22, 0
  %v27 = vmax.bf16 %v23, 0
  %v28 = vld [vmem:[%s1] sm:$0xf]
  %v29 = vld [vmem:[%s1 + $0x4] sm:$0xf]
  %v30 = vld [vmem:[%s1 + $0x8] sm:$0xf]
  %v31 = vld [vmem:[%s1 + $0xc] sm:$0xf]
  %v32 = vld [vmem:[%s2] sm:$0x1]
  %v34 = vlaneseq
  %v35 = vshrl.u32 %v34, 7
  %v36 = vsub.s32 0, %v35
  %v37 = vrot.slane %v32, %v36
  %v43 = vunpack.c.l.b16 %v24
  %v44 = vunpack.c.l.b16 %v25
  %v45 = vunpack.c.l.b16 %v26
  %v46 = vunpack.c.l.b16 %v27
  %v47 = vpack.c.b16 %v44, %v43
  %v48 = vpack.c.b16 %v46, %v45
  %v53 = vunpack.c.l.b16 %v28
  %v54 = vunpack.c.l.b16 %v29
  %v55 = vunpack.c.l.b16 %v30
  %v56 = vunpack.c.l.b16 %v31
  %v57 = vpack.c.b16 %v54, %v53
  %v58 = vpack.c.b16 %v56, %v55
  %vm61 = vcmask 261120
  %v63 = vsel %vm61, %v47, 0
  %v66 = vsel %vm61, %v48, 0
  %68 = vmatprep.subr.bf16.mxu0 0
  %69 = vmatpush1.bf16.msra.mxu0 %v57
  %70 = vmatprep.subr.bf16.mxu0 0
  %71 = vmatpush1.bf16.msra.mxu0 %v58
  %72 = vmatprep.subr.bf16.mxu0 0
  %73 = vmatpush1.bf16.msra.mxu0 0
  %74 = vmatprep.subr.bf16.mxu0 0
  %75 = vmatpush1.bf16.msra.mxu0 0
  %76 = vmatprep.subr.bf16.mxu0 0
  %77 = vmatpush1.bf16.msra.mxu0 0
  %78 = vmatprep.subr.bf16.mxu0 0
  %79 = vmatpush1.bf16.msra.mxu0 0
  %80 = vmatprep.subr.bf16.mxu0 0
  %81 = vmatpush1.bf16.msra.mxu0 0
  %82 = vmatprep.subr.bf16.mxu0 0
  %83 = vmatpush1.bf16.msra.mxu0 0
  %84 = vmatprep.subr.bf16.mxu0 0
  %85 = vmatpush1.bf16.msra.mxu0 0
  %86 = vmatprep.subr.bf16.mxu0 0
  %87 = vmatpush1.bf16.msra.mxu0 0
  %88 = vmatprep.subr.bf16.mxu0 0
  %89 = vmatpush1.bf16.msra.mxu0 0
  %90 = vmatprep.subr.bf16.mxu0 0
  %91 = vmatpush1.bf16.msra.mxu0 0
  %92 = vmatprep.subr.bf16.mxu0 0
  %93 = vmatpush1.bf16.msra.mxu0 0
  %94 = vmatprep.subr.bf16.mxu0 0
  %95 = vmatpush1.bf16.msra.mxu0 0
  %96 = vmatprep.subr.bf16.mxu0 0
  %97 = vmatpush1.bf16.msra.mxu0 0
  %98 = vmatprep.subr.bf16.mxu0 0
  %99 = vmatpush1.bf16.msra.mxu0 0
  %100 = vmatprep.mubr.bf16.mxu0 0
  %101 = vmatmul.mubr.bf16.gmra.mrb[0].mxu0 %v63
  %v102 = vpop.f32.mrb[0].mxu0
  %v103 = vadd.f32 %v37, %v102
  %v104 = vpop.f32.mrb[0].mxu0
  %v105 = vpop.f32.mrb[0].mxu0
  %v106 = vadd.f32 %v37, %v105
  %v107 = vpop.f32.mrb[0].mxu0
  %108 = vmatprep.mubr.bf16.mxu0 0
  %109 = vmatmul.mubr.bf16.gmra.mrb[0].mxu0 %v66
  %v110 = vpop.f32.mrb[0].mxu0
  %v111 = vadd.f32 %v37, %v110
  %v112 = vpop.f32.mrb[0].mxu0
  %v113 = vpop.f32.mrb[0].mxu0
  %v114 = vadd.f32 %v37, %v113
  %v115 = vpop.f32.mrb[0].mxu0
  %116 = vdwg.mxu0
  %v117 = vld [vmem:[%s3] sm:$0xff]
  %v118 = vmul.f32 %v103, %v103
  %v119 = vmul.f32 %v106, %v106
  %v120 = vmul.f32 %v111, %v111
  %v121 = vmul.f32 %v114, %v114
  %vm122 = vcmask 64512
  %v123 = vsel %vm122, %v118, 0.0
  %124 = vadd.xlane.f32.xlu0 %v123
  %v125 = vpop.xlane.xlu0 %124
  %v126 = vsel %vm122, %v119, 0.0
  %127 = vadd.xlane.f32.xlu0 %v126
  %v128 = vpop.xlane.xlu0 %127
  %v129 = vsel %vm122, %v120, 0.0
  %130 = vadd.xlane.f32.xlu0 %v129
  %v131 = vpop.xlane.xlu0 %130
  %v132 = vsel %vm122, %v121, 0.0
  %133 = vadd.xlane.f32.xlu0 %v132
  %v134 = vpop.xlane.xlu0 %133
  %v135 = vmul.f32 %v117, %v117
  %v136 = vsel %vm61, %v135, 0.0
  %v137 = vrot.slane %v136, 4
  %v138 = vadd.f32 %v136, %v137
  %v139 = vrot.slane %v138, 2
  %v140 = vadd.f32 %v138, %v139
  %v141 = vrot.slane %v140, 1
  %v142 = vadd.f32 %v140, %v141
  %v144 = vsel %vm122, %v103, 0
  %v147 = vsel %vm122, %v106, 0
  %v150 = vsel %vm122, %v111, 0
  %v153 = vsel %vm122, %v114, 0
  %155 = vmatprep.subr.mxu0 0.0
  %156 = vmatpush1.msra.mxu0 %v117
  %157 = vmatprep.subr.mxu0 0.0
  %158 = vmatpush1.msra.mxu0 0.0
  %159 = vmatprep.subr.mxu0 0.0
  %160 = vmatpush1.msra.mxu0 0.0
  %161 = vmatprep.subr.mxu0 0.0
  %162 = vmatpush1.msra.mxu0 0.0
  %163 = vmatprep.subr.mxu0 0.0
  %164 = vmatpush1.msra.mxu0 0.0
  %165 = vmatprep.subr.mxu0 0.0
  %166 = vmatpush1.msra.mxu0 0.0
  %167 = vmatprep.subr.mxu0 0.0
  %168 = vmatpush1.msra.mxu0 0.0
  %169 = vmatprep.subr.mxu0 0.0
  %170 = vmatpush1.msra.mxu0 0.0
  %171 = vmatprep.subr.mxu0 0.0
  %172 = vmatpush1.msra.mxu0 0.0
  %173 = vmatprep.subr.mxu0 0.0
  %174 = vmatpush1.msra.mxu0 0.0
  %175 = vmatprep.subr.mxu0 0.0
  %176 = vmatpush1.msra.mxu0 0.0
  %177 = vmatprep.subr.mxu0 0.0
  %178 = vmatpush1.msra.mxu0 0.0
  %179 = vmatprep.subr.mxu0 0.0
  %180 = vmatpush1.msra.mxu0 0.0
  %181 = vmatprep.subr.mxu0 0.0
  %182 = vmatpush1.msra.mxu0 0.0
  %183 = vmatprep.subr.mxu0 0.0
  %184 = vmatpush1.msra.mxu0 0.0
  %185 = vmatprep.subr.mxu0 0.0
  %186 = vmatpush1.msra.mxu0 0.0
  %187 = vmatprep.subr.mxu0 0.0
  %188 = vmatpush1.msra.mxu0 0.0
  %189 = vmatprep.subr.mxu0 0.0
  %190 = vmatpush1.msra.mxu0 0.0
  %191 = vmatprep.subr.mxu0 0.0
  %192 = vmatpush1.msra.mxu0 0.0
  %193 = vmatprep.subr.mxu0 0.0
  %194 = vmatpush1.msra.mxu0 0.0
  %195 = vmatprep.subr.mxu0 0.0
  %196 = vmatpush1.msra.mxu0 0.0
  %197 = vmatprep.subr.mxu0 0.0
  %198 = vmatpush1.msra.mxu0 0.0
  %199 = vmatprep.subr.mxu0 0.0
  %200 = vmatpush1.msra.mxu0 0.0
  %201 = vmatprep.subr.mxu0 0.0
  %202 = vmatpush1.msra.mxu0 0.0
  %203 = vmatprep.subr.mxu0 0.0
  %204 = vmatpush1.msra.mxu0 0.0
  %205 = vmatprep.subr.mxu0 0.0
  %206 = vmatpush1.msra.mxu0 0.0
  %207 = vmatprep.subr.mxu0 0.0
  %208 = vmatpush1.msra.mxu0 0.0
  %209 = vmatprep.subr.mxu0 0.0
  %210 = vmatpush1.msra.mxu0 0.0
  %211 = vmatprep.subr.mxu0 0.0
  %212 = vmatpush1.msra.mxu0 0.0
  %213 = vmatprep.subr.mxu0 0.0
  %214 = vmatpush1.msra.mxu0 0.0
  %215 = vmatprep.subr.mxu0 0.0
  %216 = vmatpush1.msra.mxu0 0.0
  %217 = vmatprep.subr.mxu0 0.0
  %218 = vmatpush1.msra.mxu0 0.0
  %219 = vmatprep.mubr.f32.mxu0 0.0
  %220 = vmatmul.mubr.f32.gmra.mrb[0].mxu0 %v144
  %v221 = vpop.f32.mrb[0].mxu0
  %v222 = vadd.f32 0.0, %v221
  %v223 = vpop.f32.mrb[0].mxu0
  %224 = vmatprep.mubr.f32.mxu0 0.0
  %225 = vmatmul.mubr.f32.gmra.mrb[0].mxu0 %v147
  %v226 = vpop.f32.mrb[0].mxu0
  %v227 = vadd.f32 0.0, %v226
  %v228 = vpop.f32.mrb[0].mxu0
  %229 = vmatprep.mubr.f32.mxu0 0.0
  %230 = vmatmul.mubr.f32.gmra.mrb[0].mxu0 %v150
  %v231 = vpop.f32.mrb[0].mxu0
  %v232 = vadd.f32 0.0, %v231
  %v233 = vpop.f32.mrb[0].mxu0
  %234 = vmatprep.mubr.f32.mxu0 0.0
  %235 = vmatmul.mubr.f32.gmra.mrb[0].mxu0 %v153
  %v236 = vpop.f32.mrb[0].mxu0
  %v237 = vadd.f32 0.0, %v236
  %v238 = vpop.f32.mrb[0].mxu0
  %239 = vdwg.mxu0
  %v240 = vmul.f32 %v222, 2.0
  %v241 = vmul.f32 %v227, 2.0
  %v242 = vmul.f32 %v232, 2.0
  %v243 = vmul.f32 %v237, 2.0
  %v244 = vsub.f32 %v125, %v240
  %v245 = vsub.f32 %v128, %v241
  %v246 = vsub.f32 %v131, %v242
  %v247 = vsub.f32 %v134, %v243
  %v248 = vadd.f32 %v244, %v142
  %v249 = vadd.f32 %v245, %v142
  %v250 = vadd.f32 %v246, %v142
  %v251 = vadd.f32 %v247, %v142
  %v252 = vlaneseq
  %v253 = vand.u32 %v252, 127
  %v254 = vsel %vm61, %v248, inf
  %255 = vmin.xlane.f32.xlu0 %v254
  %v256 = vpop.xlane.xlu0 %255
  %v257 = vsel %vm61, %v249, inf
  %258 = vmin.xlane.f32.xlu0 %v257
  %v259 = vpop.xlane.xlu0 %258
  %v260 = vsel %vm61, %v250, inf
  %261 = vmin.xlane.f32.xlu0 %v260
  %v262 = vpop.xlane.xlu0 %261
  %v263 = vsel %vm61, %v251, inf
  %264 = vmin.xlane.f32.xlu0 %v263
  %v265 = vpop.xlane.xlu0 %264
  %vm266 = vcmp.eq.f32.partialorder %v248, %v256
  %vm267 = vcmp.eq.f32.partialorder %v249, %v259
  %vm268 = vcmp.eq.f32.partialorder %v250, %v262
  %vm269 = vcmp.eq.f32.partialorder %v251, %v265
  %v270 = vsel %vm266, %v253, 32
  %v271 = vsel %vm267, %v253, 32
  %v272 = vsel %vm268, %v253, 32
  %v273 = vsel %vm269, %v253, 32
  %v274 = vsel %vm61, %v270, 2147483647
  %v275 = vand.u32 %v274, 65535
  %v276 = vshra.s32 %v274, 16
  %v277 = vcvt.s32.f32 %v275
  %v278 = vcvt.s32.f32 %v276
  %279 = vmin.xlane.f32.xlu0 %v278
  %v280 = vpop.xlane.xlu0 %279
  %vm281 = vcmp.eq.f32.partialorder %v278, %v280
  %v282 = vsel %vm281, %v277, inf
  %283 = vmin.xlane.f32.xlu0 %v282
  %v284 = vpop.xlane.xlu0 %283
  %v285 = vcvt.f32.s32 %v284
  %v286 = vcvt.f32.s32 %v280
  %v287 = vshll.u32 %v286, 16
  %v288 = vadd.s32 %v287, %v285
  %v289 = vsel %vm61, %v271, 2147483647
  %v290 = vand.u32 %v289, 65535
  %v291 = vshra.s32 %v289, 16
  %v292 = vcvt.s32.f32 %v290
  %v293 = vcvt.s32.f32 %v291
  %294 = vmin.xlane.f32.xlu0 %v293
  %v295 = vpop.xlane.xlu0 %294
  %vm296 = vcmp.eq.f32.partialorder %v293, %v295
  %v297 = vsel %vm296, %v292, inf
  %298 = vmin.xlane.f32.xlu0 %v297
  %v299 = vpop.xlane.xlu0 %298
  %v300 = vcvt.f32.s32 %v299
  %v301 = vcvt.f32.s32 %v295
  %v302 = vshll.u32 %v301, 16
  %v303 = vadd.s32 %v302, %v300
  %v304 = vsel %vm61, %v272, 2147483647
  %v305 = vand.u32 %v304, 65535
  %v306 = vshra.s32 %v304, 16
  %v307 = vcvt.s32.f32 %v305
  %v308 = vcvt.s32.f32 %v306
  %309 = vmin.xlane.f32.xlu0 %v308
  %v310 = vpop.xlane.xlu0 %309
  %vm311 = vcmp.eq.f32.partialorder %v308, %v310
  %v312 = vsel %vm311, %v307, inf
  %313 = vmin.xlane.f32.xlu0 %v312
  %v314 = vpop.xlane.xlu0 %313
  %v315 = vcvt.f32.s32 %v314
  %v316 = vcvt.f32.s32 %v310
  %v317 = vshll.u32 %v316, 16
  %v318 = vadd.s32 %v317, %v315
  %v319 = vsel %vm61, %v273, 2147483647
  %v320 = vand.u32 %v319, 65535
  %v321 = vshra.s32 %v319, 16
  %v322 = vcvt.s32.f32 %v320
  %v323 = vcvt.s32.f32 %v321
  %324 = vmin.xlane.f32.xlu0 %v323
  %v325 = vpop.xlane.xlu0 %324
  %vm326 = vcmp.eq.f32.partialorder %v323, %v325
  %v327 = vsel %vm326, %v322, inf
  %328 = vmin.xlane.f32.xlu0 %v327
  %v329 = vpop.xlane.xlu0 %328
  %v330 = vcvt.f32.s32 %v329
  %v331 = vcvt.f32.s32 %v325
  %v332 = vshll.u32 %v331, 16
  %v333 = vadd.s32 %v332, %v330
  %vm334 = vcmp.eq.s32.totalorder %v253, %v288
  %vm335 = vcmp.eq.s32.totalorder %v253, %v303
  %vm336 = vcmp.eq.s32.totalorder %v253, %v318
  %vm337 = vcmp.eq.s32.totalorder %v253, %v333
  %v338 = vsel %vm334, 1, 0
  %v339 = vsel %vm335, 1, 0
  %v340 = vsel %vm336, 1, 0
  %v341 = vsel %vm337, 1, 0
  %v342 = vcvt.s32.f32 %v338
  %v343 = vcvt.s32.f32 %v339
  %v344 = vcvt.s32.f32 %v340
  %v345 = vcvt.s32.f32 %v341
  %v347 = vsel %vm61, %v342, 0
  %v350 = vsel %vm61, %v343, 0
  %v353 = vsel %vm61, %v344, 0
  %v356 = vsel %vm61, %v345, 0
  %v359 = vsel %vm61, %v117, 0
  %361 = vmatprep.subr.mxu0 0.0
  %362 = vmatpush1.xpose.msra.mxu0 %v359
  %363 = vmatprep.subr.mxu0 0.0
  %364 = vmatpush1.xpose.msra.mxu0 0.0
  %365 = vmatprep.subr.mxu0 0.0
  %366 = vmatpush1.xpose.msra.mxu0 0.0
  %367 = vmatprep.subr.mxu0 0.0
  %368 = vmatpush1.xpose.msra.mxu0 0.0
  %369 = vmatprep.subr.mxu0 0.0
  %370 = vmatpush1.xpose.msra.mxu0 0.0
  %371 = vmatprep.subr.mxu0 0.0
  %372 = vmatpush1.xpose.msra.mxu0 0.0
  %373 = vmatprep.subr.mxu0 0.0
  %374 = vmatpush1.xpose.msra.mxu0 0.0
  %375 = vmatprep.subr.mxu0 0.0
  %376 = vmatpush1.xpose.msra.mxu0 0.0
  %377 = vmatprep.subr.mxu0 0.0
  %378 = vmatpush1.xpose.msra.mxu0 0.0
  %379 = vmatprep.subr.mxu0 0.0
  %380 = vmatpush1.xpose.msra.mxu0 0.0
  %381 = vmatprep.subr.mxu0 0.0
  %382 = vmatpush1.xpose.msra.mxu0 0.0
  %383 = vmatprep.subr.mxu0 0.0
  %384 = vmatpush1.xpose.msra.mxu0 0.0
  %385 = vmatprep.subr.mxu0 0.0
  %386 = vmatpush1.xpose.msra.mxu0 0.0
  %387 = vmatprep.subr.mxu0 0.0
  %388 = vmatpush1.xpose.msra.mxu0 0.0
  %389 = vmatprep.subr.mxu0 0.0
  %390 = vmatpush1.xpose.msra.mxu0 0.0
  %391 = vmatprep.subr.mxu0 0.0
  %392 = vmatpush1.xpose.msra.mxu0 0.0
  %393 = vmatprep.subr.mxu0 0.0
  %394 = vmatpush1.xpose.msra.mxu0 0.0
  %395 = vmatprep.subr.mxu0 0.0
  %396 = vmatpush1.xpose.msra.mxu0 0.0
  %397 = vmatprep.subr.mxu0 0.0
  %398 = vmatpush1.xpose.msra.mxu0 0.0
  %399 = vmatprep.subr.mxu0 0.0
  %400 = vmatpush1.xpose.msra.mxu0 0.0
  %401 = vmatprep.subr.mxu0 0.0
  %402 = vmatpush1.xpose.msra.mxu0 0.0
  %403 = vmatprep.subr.mxu0 0.0
  %404 = vmatpush1.xpose.msra.mxu0 0.0
  %405 = vmatprep.subr.mxu0 0.0
  %406 = vmatpush1.xpose.msra.mxu0 0.0
  %407 = vmatprep.subr.mxu0 0.0
  %408 = vmatpush1.xpose.msra.mxu0 0.0
  %409 = vmatprep.subr.mxu0 0.0
  %410 = vmatpush1.xpose.msra.mxu0 0.0
  %411 = vmatprep.subr.mxu0 0.0
  %412 = vmatpush1.xpose.msra.mxu0 0.0
  %413 = vmatprep.subr.mxu0 0.0
  %414 = vmatpush1.xpose.msra.mxu0 0.0
  %415 = vmatprep.subr.mxu0 0.0
  %416 = vmatpush1.xpose.msra.mxu0 0.0
  %417 = vmatprep.subr.mxu0 0.0
  %418 = vmatpush1.xpose.msra.mxu0 0.0
  %419 = vmatprep.subr.mxu0 0.0
  %420 = vmatpush1.xpose.msra.mxu0 0.0
  %421 = vmatprep.subr.mxu0 0.0
  %422 = vmatpush1.xpose.msra.mxu0 0.0
  %423 = vmatprep.subr.mxu0 0.0
  %424 = vmatpush1.xpose.msra.mxu0 0.0
  %425 = vmatprep.mubr.f32.mxu0 0.0
  %426 = vmatmul.mubr.f32.gmra.mrb[0].mxu0 %v347
  %v427 = vpop.f32.mrb[0].mxu0
  %v428 = vadd.f32 0.0, %v427
  %v429 = vpop.f32.mrb[0].mxu0
  %430 = vmatprep.mubr.f32.mxu0 0.0
  %431 = vmatmul.mubr.f32.gmra.mrb[0].mxu0 %v350
  %v432 = vpop.f32.mrb[0].mxu0
  %v433 = vadd.f32 0.0, %v432
  %v434 = vpop.f32.mrb[0].mxu0
  %435 = vmatprep.mubr.f32.mxu0 0.0
  %436 = vmatmul.mubr.f32.gmra.mrb[0].mxu0 %v353
  %v437 = vpop.f32.mrb[0].mxu0
  %v438 = vadd.f32 0.0, %v437
  %v439 = vpop.f32.mrb[0].mxu0
  %440 = vmatprep.mubr.f32.mxu0 0.0
  %441 = vmatmul.mubr.f32.gmra.mrb[0].mxu0 %v356
  %v442 = vpop.f32.mrb[0].mxu0
  %v443 = vadd.f32 0.0, %v442
  %v444 = vpop.f32.mrb[0].mxu0
  %445 = vdwg.mxu0
  %446 = vst.msk [vmem:[%s4] sm:$0xff] %vm122, %v103
  %447 = vst.msk [vmem:[%s4 + $0x8] sm:$0xff] %vm122, %v106
  %448 = vst.msk [vmem:[%s4 + $0x10] sm:$0xff] %vm122, %v111
  %449 = vst.msk [vmem:[%s4 + $0x18] sm:$0xff] %vm122, %v114
  %450 = vst.msk [vmem:[%s5] sm:$0xff] %vm122, %v428
  %451 = vst.msk [vmem:[%s5 + $0x8] sm:$0xff] %vm122, %v433
  %452 = vst.msk [vmem:[%s5 + $0x10] sm:$0xff] %vm122, %v438
  %453 = vst.msk [vmem:[%s5 + $0x18] sm:$0xff] %vm122, %v443
  // Predicated region
  $region18: #{qvae_forward.22} parent=0 // pred_check
    _
  $region19: #{qvae_forward.22} parent=0 // pred_check_branch
    %455 = sbr.rel (0) target = $region21
  $region20: #{qvae_forward.22} parent=0 // pred_region
    _
  $region21: #{qvae_forward.22} parent=0 // pred_fallthru
    _
  // Predicated region
  $region22: #{qvae_forward.22} parent=0 // pred_check
    _
  $region23: #{qvae_forward.22} parent=0 // pred_check_branch
    %457 = sbr.rel (0) target = $region25
  $region24: #{qvae_forward.22} parent=0 // pred_region
    _
  $region25: #{qvae_forward.22} parent=0 // pred_fallthru
    _
  // Predicated region
  $region26: #{qvae_forward.22} parent=0 // pred_check
    _
  $region27: #{qvae_forward.22} parent=0 // pred_check_branch
    %459 = sbr.rel (0) target = $region29
  $region28: #{qvae_forward.22} parent=0 // pred_region
    _
  $region29: #{qvae_forward.22} parent=0 // pred_fallthru
    _
  // Predicated region
  $region30: #{qvae_forward.22} parent=0 // pred_check
    _
  $region31: #{qvae_forward.22} parent=0 // pred_check_branch
    %461 = sbr.rel (0) target = $region33
  $region32: #{qvae_forward.22} parent=0 // pred_region
    _
  $region33: #{qvae_forward.22} parent=0 // pred_fallthru
    _

// kernel: qvae_forward.23
$region0: #{qvae_forward.23}
  #allocation0 [shape = 'u32[]', space=smem, size = 0x4, offset = 0x4, fixed_abs, tag = 'smem constant byte address 0x4 - core index']
  #allocation1 [shape = 'u32[144,128]{1,0:T(1,128)}', space=vmem, size = 0x12000, scoped, tag = 'internal scratch']
  %s0 = inlined_call_operand.vmem [shape: bf16[32,72], index: 0, kind: input, shape index: {}]
  %s1 = inlined_call_operand.vmem [shape: bf16[72,32], index: 1, kind: input, shape index: {}]
  %s2 = inlined_call_operand.vmem [shape: f32[1,32], index: 2, kind: input, shape index: {}]
  %s3 = inlined_call_operand.vmem [shape: bf16[32,32], index: 3, kind: output, shape index: {}]
  %s4 = sld [smem:[#allocation0]]
  $region22: #{qvae_forward.23} parent=0
    _
  %s6 = ssub.s32 1, %s4
  %s7 = scalar_select 0, %s6, %s4
  // Predicated region
  $region2: #{qvae_forward.23} parent=0 // pred_check
    _
  $region3: #{qvae_forward.23} parent=0 // pred_check_branch
    %9 = sbr.rel (0) target = $region5
  $region4: #{qvae_forward.23} parent=0 // pred_region
    _
  $region5: #{qvae_forward.23} parent=0 // pred_fallthru
    _
  // Predicated region
  $region6: #{qvae_forward.23} parent=0 // pred_check
    _
  $region7: #{qvae_forward.23} parent=0 // pred_check_branch
    %11 = sbr.rel (0) target = $region9
  $region8: #{qvae_forward.23} parent=0 // pred_region
    _
  $region9: #{qvae_forward.23} parent=0 // pred_fallthru
    _
  // Predicated region
  $region10: #{qvae_forward.23} parent=0 // pred_check
    _
  $region11: #{qvae_forward.23} parent=0 // pred_check_branch
    %13 = sbr.rel (0) target = $region13
  $region12: #{qvae_forward.23} parent=0 // pred_region
    _
  $region13: #{qvae_forward.23} parent=0 // pred_fallthru
    _
  %v15 = vld [vmem:[%s0] sm:$0xf]
  %v16 = vld [vmem:[%s0 + $0x4] sm:$0xf]
  %v17 = vld [vmem:[%s0 + $0x8] sm:$0xf]
  %v18 = vld [vmem:[%s0 + $0xc] sm:$0xf]
  %v19 = vld [vmem:[%s1] sm:$0xf]
  %v20 = vld [vmem:[%s1 + $0x4] sm:$0xf]
  %v21 = vld [vmem:[%s1 + $0x8] sm:$0xf]
  %v22 = vld [vmem:[%s1 + $0xc] sm:$0xf]
  %v23 = vld [vmem:[%s1 + $0x10] sm:$0xf]
  %v24 = vld [vmem:[%s1 + $0x14] sm:$0xf]
  %v25 = vld [vmem:[%s1 + $0x18] sm:$0xf]
  %v26 = vld [vmem:[%s1 + $0x1c] sm:$0xf]
  %v27 = vld [vmem:[%s1 + $0x20] sm:$0xf]
  %v28 = vld [vmem:[%s2] sm:$0x1]
  %v30 = vlaneseq
  %v31 = vshrl.u32 %v30, 7
  %v32 = vsub.s32 0, %v31
  %v33 = vrot.slane %v28, %v32
  %v39 = vunpack.c.l.b16 %v15
  %v40 = vunpack.c.l.b16 %v16
  %v41 = vunpack.c.l.b16 %v17
  %v42 = vunpack.c.l.b16 %v18
  %v43 = vpack.c.b16 %v40, %v39
  %v44 = vpack.c.b16 %v42, %v41
  %v54 = vunpack.c.l.b16 %v19
  %v55 = vunpack.c.l.b16 %v20
  %v56 = vunpack.c.l.b16 %v21
  %v57 = vunpack.c.l.b16 %v22
  %v58 = vunpack.c.l.b16 %v23
  %v59 = vunpack.c.l.b16 %v24
  %v60 = vunpack.c.l.b16 %v25
  %v61 = vunpack.c.l.b16 %v26
  %v62 = vunpack.c.l.b16 %v27
  %v63 = vpack.c.b16 %v55, %v54
  %v64 = vpack.c.b16 %v57, %v56
  %v65 = vpack.c.b16 %v59, %v58
  %v66 = vpack.c.b16 %v61, %v60
  %v67 = vpack.c.b16 %v62, %v62
  %vm72 = vcmask 588800
  %v74 = vsel %vm72, %v43, 0
  %v77 = vsel %vm72, %v44, 0
  %vm79 = vcmask 1043456
  %v81 = vsel %vm79, %v67, 0
  %83 = vmatprep.subr.bf16.mxu0 0
  %84 = vmatpush1.bf16.msra.mxu0 %v63
  %85 = vmatprep.subr.bf16.mxu0 0
  %86 = vmatpush1.bf16.msra.mxu0 %v64
  %87 = vmatprep.subr.bf16.mxu0 0
  %88 = vmatpush1.bf16.msra.mxu0 %v65
  %89 = vmatprep.subr.bf16.mxu0 0
  %90 = vmatpush1.bf16.msra.mxu0 %v66
  %91 = vmatprep.subr.bf16.mxu0 0
  %92 = vmatpush1.bf16.msra.mxu0 %v81
  %93 = vmatprep.subr.bf16.mxu0 0
  %94 = vmatpush1.bf16.msra.mxu0 0
  %95 = vmatprep.subr.bf16.mxu0 0
  %96 = vmatpush1.bf16.msra.mxu0 0
  %97 = vmatprep.subr.bf16.mxu0 0
  %98 = vmatpush1.bf16.msra.mxu0 0
  %99 = vmatprep.subr.bf16.mxu0 0
  %100 = vmatpush1.bf16.msra.mxu0 0
  %101 = vmatprep.subr.bf16.mxu0 0
  %102 = vmatpush1.bf16.msra.mxu0 0
  %103 = vmatprep.subr.bf16.mxu0 0
  %104 = vmatpush1.bf16.msra.mxu0 0
  %105 = vmatprep.subr.bf16.mxu0 0
  %106 = vmatpush1.bf16.msra.mxu0 0
  %107 = vmatprep.subr.bf16.mxu0 0
  %108 = vmatpush1.bf16.msra.mxu0 0
  %109 = vmatprep.subr.bf16.mxu0 0
  %110 = vmatpush1.bf16.msra.mxu0 0
  %111 = vmatprep.subr.bf16.mxu0 0
  %112 = vmatpush1.bf16.msra.mxu0 0
  %113 = vmatprep.subr.bf16.mxu0 0
  %114 = vmatpush1.bf16.msra.mxu0 0
  %115 = vmatprep.mubr.bf16.mxu0 0
  %116 = vmatmul.mubr.bf16.gmra.mrb[0].mxu0 %v74
  %v117 = vpop.f32.mrb[0].mxu0
  %v118 = vadd.f32 %v33, %v117
  %v119 = vpop.f32.mrb[0].mxu0
  %v120 = vpop.f32.mrb[0].mxu0
  %v121 = vadd.f32 %v33, %v120
  %v122 = vpop.f32.mrb[0].mxu0
  %123 = vmatprep.mubr.bf16.mxu0 0
  %124 = vmatmul.mubr.bf16.gmra.mrb[0].mxu0 %v77
  %v125 = vpop.f32.mrb[0].mxu0
  %v126 = vadd.f32 %v33, %v125
  %v127 = vpop.f32.mrb[0].mxu0
  %v128 = vpop.f32.mrb[0].mxu0
  %v129 = vadd.f32 %v33, %v128
  %v130 = vpop.f32.mrb[0].mxu0
  %131 = vdwg.mxu0
  %v132 = vpack.c.bf16 %v121, %v118
  %v133 = vpack.c.bf16 %v129, %v126
  %v136 = vunpack.c.l.b16 %v132
  %v137 = vunpack.c.h.b16 %v132
  %v138 = vunpack.c.l.b16 %v133
  %v139 = vunpack.c.h.b16 %v133
  %v140 = vpack.c.b16 %v136, %v136
  %v141 = vpack.c.b16 %v137, %v137
  %v142 = vpack.c.b16 %v138, %v138
  %v143 = vpack.c.b16 %v139, %v139
  %vm148 = vcmask 257024
  %149 = vst.msk [vmem:[%s3] sm:$0xf] %vm148, %v140
  %150 = vst.msk [vmem:[%s3 + $0x4] sm:$0xf] %vm148, %v141
  %151 = vst.msk [vmem:[%s3 + $0x8] sm:$0xf] %vm148, %v142
  %152 = vst.msk [vmem:[%s3 + $0xc] sm:$0xf] %vm148, %v143
  // Predicated region
  $region14: #{qvae_forward.23} parent=0 // pred_check
    _
  $region15: #{qvae_forward.23} parent=0 // pred_check_branch
    %154 = sbr.rel (0) target = $region17
  $region16: #{qvae_forward.23} parent=0 // pred_region
    _
  $region17: #{qvae_forward.23} parent=0 // pred_fallthru
    _
  // Predicated region
  $region18: #{qvae_forward.23} parent=0 // pred_check
    _
  $region19: #{qvae_forward.23} parent=0 // pred_check_branch
    %156 = sbr.rel (0) target = $region21
  $region20: #{qvae_forward.23} parent=0 // pred_region
    _
  $region21: #{qvae_forward.23} parent=0 // pred_fallthru
    _

// kernel: qvae_forward.28
$region0: #{qvae_forward.28}
  #allocation0 [shape = 'u32[]', space=smem, size = 0x4, offset = 0x4, fixed_abs, tag = 'smem constant byte address 0x4 - core index']
  #allocation1 [shape = 'u32[144,128]{1,0:T(1,128)}', space=vmem, size = 0x12000, scoped, tag = 'internal scratch']
  %s0 = inlined_call_operand.vmem [shape: bf16[128,512], index: 0, kind: input, shape index: {}]
  %s1 = inlined_call_operand.vmem [shape: bf16[512,16], index: 1, kind: input, shape index: {}]
  %s2 = inlined_call_operand.vmem [shape: f32[1,16], index: 2, kind: input, shape index: {}]
  %s3 = inlined_call_operand.vmem [shape: bf16[128,16], index: 3, kind: output, shape index: {}]
  %s4 = sld [smem:[#allocation0]]
  $region22: #{qvae_forward.28} parent=0
    _
  %s6 = ssub.s32 1, %s4
  %s7 = scalar_select 0, %s6, %s4
  // Predicated region
  $region2: #{qvae_forward.28} parent=0 // pred_check
    _
  $region3: #{qvae_forward.28} parent=0 // pred_check_branch
    %9 = sbr.rel (0) target = $region5
  $region4: #{qvae_forward.28} parent=0 // pred_region
    _
  $region5: #{qvae_forward.28} parent=0 // pred_fallthru
    _
  // Predicated region
  $region6: #{qvae_forward.28} parent=0 // pred_check
    _
  $region7: #{qvae_forward.28} parent=0 // pred_check_branch
    %11 = sbr.rel (0) target = $region9
  $region8: #{qvae_forward.28} parent=0 // pred_region
    _
  $region9: #{qvae_forward.28} parent=0 // pred_fallthru
    _
  // Predicated region
  $region10: #{qvae_forward.28} parent=0 // pred_check
    _
  $region11: #{qvae_forward.28} parent=0 // pred_check_branch
    %13 = sbr.rel (0) target = $region13
  $region12: #{qvae_forward.28} parent=0 // pred_region
    _
  $region13: #{qvae_forward.28} parent=0 // pred_fallthru
    _
  %v15 = vld [vmem:[%s0] sm:$0xff]
  %v16 = vld [vmem:[%s0 + $0x8] sm:$0xff]
  %v17 = vld [vmem:[%s0 + $0x10] sm:$0xff]
  %v18 = vld [vmem:[%s0 + $0x18] sm:$0xff]
  %v19 = vld [vmem:[%s0 + $0x20] sm:$0xff]
  %v20 = vld [vmem:[%s0 + $0x28] sm:$0xff]
  %v21 = vld [vmem:[%s0 + $0x30] sm:$0xff]
  %v22 = vld [vmem:[%s0 + $0x38] sm:$0xff]
  %v23 = vld [vmem:[%s0 + $0x40] sm:$0xff]
  %v24 = vld [vmem:[%s0 + $0x48] sm:$0xff]
  %v25 = vld [vmem:[%s0 + $0x50] sm:$0xff]
  %v26 = vld [vmem:[%s0 + $0x58] sm:$0xff]
  %v27 = vld [vmem:[%s0 + $0x60] sm:$0xff]
  %v28 = vld [vmem:[%s0 + $0x68] sm:$0xff]
  %v29 = vld [vmem:[%s0 + $0x70] sm:$0xff]
  %v30 = vld [vmem:[%s0 + $0x78] sm:$0xff]
  %v31 = vld [vmem:[%s0 + $0x80] sm:$0xff]
  %v32 = vld [vmem:[%s0 + $0x88] sm:$0xff]
  %v33 = vld [vmem:[%s0 + $0x90] sm:$0xff]
  %v34 = vld [vmem:[%s0 + $0x98] sm:$0xff]
  %v35 = vld [vmem:[%s0 + $0xa0] sm:$0xff]
  %v36 = vld [vmem:[%s0 + $0xa8] sm:$0xff]
  %v37 = vld [vmem:[%s0 + $0xb0] sm:$0xff]
  %v38 = vld [vmem:[%s0 + $0xb8] sm:$0xff]
  %v39 = vld [vmem:[%s0 + $0xc0] sm:$0xff]
  %v40 = vld [vmem:[%s0 + $0xc8] sm:$0xff]
  %v41 = vld [vmem:[%s0 + $0xd0] sm:$0xff]
  %v42 = vld [vmem:[%s0 + $0xd8] sm:$0xff]
  %v43 = vld [vmem:[%s0 + $0xe0] sm:$0xff]
  %v44 = vld [vmem:[%s0 + $0xe8] sm:$0xff]
  %v45 = vld [vmem:[%s0 + $0xf0] sm:$0xff]
  %v46 = vld [vmem:[%s0 + $0xf8] sm:$0xff]
  %v47 = vmax.bf16 %v15, 0
  %v48 = vmax.bf16 %v16, 0
  %v49 = vmax.bf16 %v17, 0
  %v50 = vmax.bf16 %v18, 0
  %v51 = vmax.bf16 %v19, 0
  %v52 = vmax.bf16 %v20, 0
  %v53 = vmax.bf16 %v21, 0
  %v54 = vmax.bf16 %v22, 0
  %v55 = vmax.bf16 %v23, 0
  %v56 = vmax.bf16 %v24, 0
  %v57 = vmax.bf16 %v25, 0
  %v58 = vmax.bf16 %v26, 0
  %v59 = vmax.bf16 %v27, 0
  %v60 = vmax.bf16 %v28, 0
  %v61 = vmax.bf16 %v29, 0
  %v62 = vmax.bf16 %v30, 0
  %v63 = vmax.bf16 %v31, 0
  %v64 = vmax.bf16 %v32, 0
  %v65 = vmax.bf16 %v33, 0
  %v66 = vmax.bf16 %v34, 0
  %v67 = vmax.bf16 %v35, 0
  %v68 = vmax.bf16 %v36, 0
  %v69 = vmax.bf16 %v37, 0
  %v70 = vmax.bf16 %v38, 0
  %v71 = vmax.bf16 %v39, 0
  %v72 = vmax.bf16 %v40, 0
  %v73 = vmax.bf16 %v41, 0
  %v74 = vmax.bf16 %v42, 0
  %v75 = vmax.bf16 %v43, 0
  %v76 = vmax.bf16 %v44, 0
  %v77 = vmax.bf16 %v45, 0
  %v78 = vmax.bf16 %v46, 0
  %v79 = vld [vmem:[%s1] sm:$0xf]
  %v80 = vld [vmem:[%s1 + $0x4] sm:$0xf]
  %v81 = vld [vmem:[%s1 + $0x8] sm:$0xf]
  %v82 = vld [vmem:[%s1 + $0xc] sm:$0xf]
  %v83 = vld [vmem:[%s1 + $0x10] sm:$0xf]
  %v84 = vld [vmem:[%s1 + $0x14] sm:$0xf]
  %v85 = vld [vmem:[%s1 + $0x18] sm:$0xf]
  %v86 = vld [vmem:[%s1 + $0x1c] sm:$0xf]
  %v87 = vld [vmem:[%s1 + $0x20] sm:$0xf]
  %v88 = vld [vmem:[%s1 + $0x24] sm:$0xf]
  %v89 = vld [vmem:[%s1 + $0x28] sm:$0xf]
  %v90 = vld [vmem:[%s1 + $0x2c] sm:$0xf]
  %v91 = vld [vmem:[%s1 + $0x30] sm:$0xf]
  %v92 = vld [vmem:[%s1 + $0x34] sm:$0xf]
  %v93 = vld [vmem:[%s1 + $0x38] sm:$0xf]
  %v94 = vld [vmem:[%s1 + $0x3c] sm:$0xf]
  %v95 = vld [vmem:[%s1 + $0x40] sm:$0xf]
  %v96 = vld [vmem:[%s1 + $0x44] sm:$0xf]
  %v97 = vld [vmem:[%s1 + $0x48] sm:$0xf]
  %v98 = vld [vmem:[%s1 + $0x4c] sm:$0xf]
  %v99 = vld [vmem:[%s1 + $0x50] sm:$0xf]
  %v100 = vld [vmem:[%s1 + $0x54] sm:$0xf]
  %v101 = vld [vmem:[%s1 + $0x58] sm:$0xf]
  %v102 = vld [vmem:[%s1 + $0x5c] sm:$0xf]
  %v103 = vld [vmem:[%s1 + $0x60] sm:$0xf]
  %v104 = vld [vmem:[%s1 + $0x64] sm:$0xf]
  %v105 = vld [vmem:[%s1 + $0x68] sm:$0xf]
  %v106 = vld [vmem:[%s1 + $0x6c] sm:$0xf]
  %v107 = vld [vmem:[%s1 + $0x70] sm:$0xf]
  %v108 = vld [vmem:[%s1 + $0x74] sm:$0xf]
  %v109 = vld [vmem:[%s1 + $0x78] sm:$0xf]
  %v110 = vld [vmem:[%s1 + $0x7c] sm:$0xf]
  %v111 = vld [vmem:[%s1 + $0x80] sm:$0xf]
  %v112 = vld [vmem:[%s1 + $0x84] sm:$0xf]
  %v113 = vld [vmem:[%s1 + $0x88] sm:$0xf]
  %v114 = vld [vmem:[%s1 + $0x8c] sm:$0xf]
  %v115 = vld [vmem:[%s1 + $0x90] sm:$0xf]
  %v116 = vld [vmem:[%s1 + $0x94] sm:$0xf]
  %v117 = vld [vmem:[%s1 + $0x98] sm:$0xf]
  %v118 = vld [vmem:[%s1 + $0x9c] sm:$0xf]
  %v119 = vld [vmem:[%s1 + $0xa0] sm:$0xf]
  %v120 = vld [vmem:[%s1 + $0xa4] sm:$0xf]
  %v121 = vld [vmem:[%s1 + $0xa8] sm:$0xf]
  %v122 = vld [vmem:[%s1 + $0xac] sm:$0xf]
  %v123 = vld [vmem:[%s1 + $0xb0] sm:$0xf]
  %v124 = vld [vmem:[%s1 + $0xb4] sm:$0xf]
  %v125 = vld [vmem:[%s1 + $0xb8] sm:$0xf]
  %v126 = vld [vmem:[%s1 + $0xbc] sm:$0xf]
  %v127 = vld [vmem:[%s1 + $0xc0] sm:$0xf]
  %v128 = vld [vmem:[%s1 + $0xc4] sm:$0xf]
  %v129 = vld [vmem:[%s1 + $0xc8] sm:$0xf]
  %v130 = vld [vmem:[%s1 + $0xcc] sm:$0xf]
  %v131 = vld [vmem:[%s1 + $0xd0] sm:$0xf]
  %v132 = vld [vmem:[%s1 + $0xd4] sm:$0xf]
  %v133 = vld [vmem:[%s1 + $0xd8] sm:$0xf]
  %v134 = vld [vmem:[%s1 + $0xdc] sm:$0xf]
  %v135 = vld [vmem:[%s1 + $0xe0] sm:$0xf]
  %v136 = vld [vmem:[%s1 + $0xe4] sm:$0xf]
  %v137 = vld [vmem:[%s1 + $0xe8] sm:$0xf]
  %v138 = vld [vmem:[%s1 + $0xec] sm:$0xf]
  %v139 = vld [vmem:[%s1 + $0xf0] sm:$0xf]
  %v140 = vld [vmem:[%s1 + $0xf4] sm:$0xf]
  %v141 = vld [vmem:[%s1 + $0xf8] sm:$0xf]
  %v142 = vld [vmem:[%s1 + $0xfc] sm:$0xf]
  %v143 = vld [vmem:[%s2] sm:$0x1]
  %v145 = vlaneseq
  %v146 = vshrl.u32 %v145, 7
  %v147 = vsub.s32 0, %v146
  %v148 = vrot.slane %v143, %v147
  %v182 = vunpack.c.l.b16 %v47
  %v183 = vunpack.c.h.b16 %v47
  %v184 = vunpack.c.l.b16 %v48
  %v185 = vunpack.c.h.b16 %v48
  %v186 = vunpack.c.l.b16 %v49
  %v187 = vunpack.c.h.b16 %v49
  %v188 = vunpack.c.l.b16 %v50
  %v189 = vunpack.c.h.b16 %v50
  %v190 = vunpack.c.l.b16 %v51
  %v191 = vunpack.c.h.b16 %v51
  %v192 = vunpack.c.l.b16 %v52
  %v193 = vunpack.c.h.b16 %v52
  %v194 = vunpack.c.l.b16 %v53
  %v195 = vunpack.c.h.b16 %v53
  %v196 = vunpack.c.l.b16 %v54
  %v197 = vunpack.c.h.b16 %v54
  %v198 = vunpack.c.l.b16 %v55
  %v199 = vunpack.c.h.b16 %v55
  %v200 = vunpack.c.l.b16 %v56
  %v201 = vunpack.c.h.b16 %v56
  %v202 = vunpack.c.l.b16 %v57
  %v203 = vunpack.c.h.b16 %v57
  %v204 = vunpack.c.l.b16 %v58
  %v205 = vunpack.c.h.b16 %v58
  %v206 = vunpack.c.l.b16 %v59
  %v207 = vunpack.c.h.b16 %v59
  %v208 = vunpack.c.l.b16 %v60
  %v209 = vunpack.c.h.b16 %v60
  %v210 = vunpack.c.l.b16 %v61
  %v211 = vunpack.c.h.b16 %v61
  %v212 = vunpack.c.l.b16 %v62
  %v213 = vunpack.c.h.b16 %v62
  %v214 = vunpack.c.l.b16 %v63
  %v215 = vunpack.c.h.b16 %v63
  %v216 = vunpack.c.l.b16 %v64
  %v217 = vunpack.c.h.b16 %v64
  %v218 = vunpack.c.l.b16 %v65
  %v219 = vunpack.c.h.b16 %v65
  %v220 = vunpack.c.l.b16 %v66
  %v221 = vunpack.c.h.b16 %v66
  %v222 = vunpack.c.l.b16 %v67
  %v223 = vunpack.c.h.b16 %v67
  %v224 = vunpack.c.l.b16 %v68
  %v225 = vunpack.c.h.b16 %v68
  %v226 = vunpack.c.l.b16 %v69
  %v227 = vunpack.c.h.b16 %v69
  %v228 = vunpack.c.l.b16 %v70
  %v229 = vunpack.c.h.b16 %v70
  %v230 = vunpack.c.l.b16 %v71
  %v231 = vunpack.c.h.b16 %v71
  %v232 = vunpack.c.l.b16 %v72
  %v233 = vunpack.c.h.b16 %v72
  %v234 = vunpack.c.l.b16 %v73
  %v235 = vunpack.c.h.b16 %v73
  %v236 = vunpack.c.l.b16 %v74
  %v237 = vunpack.c.h.b16 %v74
  %v238 = vunpack.c.l.b16 %v75
  %v239 = vunpack.c.h.b16 %v75
  %v240 = vunpack.c.l.b16 %v76
  %v241 = vunpack.c.h.b16 %v76
  %v242 = vunpack.c.l.b16 %v77
  %v243 = vunpack.c.h.b16 %v77
  %v244 = vunpack.c.l.b16 %v78
  %v245 = vunpack.c.h.b16 %v78
  %v246 = vpack.c.b16 %v186, %v182
  %v247 = vpack.c.b16 %v187, %v183
  %v248 = vpack.c.b16 %v188, %v184
  %v249 = vpack.c.b16 %v189, %v185
  %v250 = vpack.c.b16 %v194, %v190
  %v251 = vpack.c.b16 %v195, %v191
  %v252 = vpack.c.b16 %v196, %v192
  %v253 = vpack.c.b16 %v197, %v193
  %v254 = vpack.c.b16 %v202, %v198
  %v255 = vpack.c.b16 %v203, %v199
  %v256 = vpack.c.b16 %v204, %v200
  %v257 = vpack.c.b16 %v205, %v201
  %v258 = vpack.c.b16 %v210, %v206
  %v259 = vpack.c.b16 %v211, %v207
  %v260 = vpack.c.b16 %v212, %v208
  %v261 = vpack.c.b16 %v213, %v209
  %v262 = vpack.c.b16 %v218, %v214
  %v263 = vpack.c.b16 %v219, %v215
  %v264 = vpack.c.b16 %v220, %v216
  %v265 = vpack.c.b16 %v221, %v217
  %v266 = vpack.c.b16 %v226, %v222
  %v267 = vpack.c.b16 %v227, %v223
  %v268 = vpack.c.b16 %v228, %v224
  %v269 = vpack.c.b16 %v229, %v225
  %v270 = vpack.c.b16 %v234, %v230
  %v271 = vpack.c.b16 %v235, %v231
  %v272 = vpack.c.b16 %v236, %v232
  %v273 = vpack.c.b16 %v237, %v233
  %v274 = vpack.c.b16 %v242, %v238
  %v275 = vpack.c.b16 %v243, %v239
  %v276 = vpack.c.b16 %v244, %v240
  %v277 = vpack.c.b16 %v245, %v241
  %v374 = vunpack.c.l.b16 %v79
  %v375 = vunpack.c.l.b16 %v80
  %v376 = vunpack.c.l.b16 %v81
  %v377 = vunpack.c.l.b16 %v82
  %v378 = vunpack.c.l.b16 %v83
  %v379 = vunpack.c.l.b16 %v84
  %v380 = vunpack.c.l.b16 %v85
  %v381 = vunpack.c.l.b16 %v86
  %v382 = vunpack.c.l.b16 %v87
  %v383 = vunpack.c.l.b16 %v88
  %v384 = vunpack.c.l.b16 %v89
  %v385 = vunpack.c.l.b16 %v90
  %v386 = vunpack.c.l.b16 %v91
  %v387 = vunpack.c.l.b16 %v92
  %v388 = vunpack.c.l.b16 %v93
  %v389 = vunpack.c.l.b16 %v94
  %v390 = vunpack.c.l.b16 %v95
  %v391 = vunpack.c.l.b16 %v96
  %v392 = vunpack.c.l.b16 %v97
  %v393 = vunpack.c.l.b16 %v98
  %v394 = vunpack.c.l.b16 %v99
  %v395 = vunpack.c.l.b16 %v100
  %v396 = vunpack.c.l.b16 %v101
  %v397 = vunpack.c.l.b16 %v102
  %v398 = vunpack.c.l.b16 %v103
  %v399 = vunpack.c.l.b16 %v104
  %v400 = vunpack.c.l.b16 %v105
  %v401 = vunpack.c.l.b16 %v106
  %v402 = vunpack.c.l.b16 %v107
  %v403 = vunpack.c.l.b16 %v108
  %v404 = vunpack.c.l.b16 %v109
  %v405 = vunpack.c.l.b16 %v110
  %v406 = vunpack.c.l.b16 %v111
  %v407 = vunpack.c.l.b16 %v112
  %v408 = vunpack.c.l.b16 %v113
  %v409 = vunpack.c.l.b16 %v114
  %v410 = vunpack.c.l.b16 %v115
  %v411 = vunpack.c.l.b16 %v116
  %v412 = vunpack.c.l.b16 %v117
  %v413 = vunpack.c.l.b16 %v118
  %v414 = vunpack.c.l.b16 %v119
  %v415 = vunpack.c.l.b16 %v120
  %v416 = vunpack.c.l.b16 %v121
  %v417 = vunpack.c.l.b16 %v122
  %v418 = vunpack.c.l.b16 %v123
  %v419 = vunpack.c.l.b16 %v124
  %v420 = vunpack.c.l.b16 %v125
  %v421 = vunpack.c.l.b16 %v126
  %v422 = vunpack.c.l.b16 %v127
  %v423 = vunpack.c.l.b16 %v128
  %v424 = vunpack.c.l.b16 %v129
  %v425 = vunpack.c.l.b16 %v130
  %v426 = vunpack.c.l.b16 %v131
  %v427 = vunpack.c.l.b16 %v132
  %v428 = vunpack.c.l.b16 %v133
  %v429 = vunpack.c.l.b16 %v134
  %v430 = vunpack.c.l.b16 %v135
  %v431 = vunpack.c.l.b16 %v136
  %v432 = vunpack.c.l.b16 %v137
  %v433 = vunpack.c.l.b16 %v138
  %v434 = vunpack.c.l.b16 %v139
  %v435 = vunpack.c.l.b16 %v140
  %v436 = vunpack.c.l.b16 %v141
  %v437 = vunpack.c.l.b16 %v142
  %v438 = vpack.c.b16 %v375, %v374
  %v439 = vpack.c.b16 %v377, %v376
  %v440 = vpack.c.b16 %v379, %v378
  %v441 = vpack.c.b16 %v381, %v380
  %v442 = vpack.c.b16 %v383, %v382
  %v443 = vpack.c.b16 %v385, %v384
  %v444 = vpack.c.b16 %v387, %v386
  %v445 = vpack.c.b16 %v389, %v388
  %v446 = vpack.c.b16 %v391, %v390
  %v447 = vpack.c.b16 %v393, %v392
  %v448 = vpack.c.b16 %v395, %v394
  %v449 = vpack.c.b16 %v397, %v396
  %v450 = vpack.c.b16 %v399, %v398
  %v451 = vpack.c.b16 %v401, %v400
  %v452 = vpack.c.b16 %v403, %v402
  %v453 = vpack.c.b16 %v405, %v404
  %v454 = vpack.c.b16 %v407, %v406
  %v455 = vpack.c.b16 %v409, %v408
  %v456 = vpack.c.b16 %v411, %v410
  %v457 = vpack.c.b16 %v413, %v412
  %v458 = vpack.c.b16 %v415, %v414
  %v459 = vpack.c.b16 %v417, %v416
  %v460 = vpack.c.b16 %v419, %v418
  %v461 = vpack.c.b16 %v421, %v420
  %v462 = vpack.c.b16 %v423, %v422
  %v463 = vpack.c.b16 %v425, %v424
  %v464 = vpack.c.b16 %v427, %v426
  %v465 = vpack.c.b16 %v429, %v428
  %v466 = vpack.c.b16 %v431, %v430
  %v467 = vpack.c.b16 %v433, %v432
  %v468 = vpack.c.b16 %v435, %v434
  %v469 = vpack.c.b16 %v437, %v436
  %502 = vmatprep.subr.bf16.mxu0 0
  %503 = vmatpush1.bf16.msra.mxu0 %v438
  %504 = vmatprep.subr.bf16.mxu0 0
  %505 = vmatpush1.bf16.msra.mxu0 %v439
  %506 = vmatprep.subr.bf16.mxu0 0
  %507 = vmatpush1.bf16.msra.mxu0 %v440
  %508 = vmatprep.subr.bf16.mxu0 0
  %509 = vmatpush1.bf16.msra.mxu0 %v441
  %510 = vmatprep.subr.bf16.mxu0 0
  %511 = vmatpush1.bf16.msra.mxu0 %v442
  %512 = vmatprep.subr.bf16.mxu0 0
  %513 = vmatpush1.bf16.msra.mxu0 %v443
  %514 = vmatprep.subr.bf16.mxu0 0
  %515 = vmatpush1.bf16.msra.mxu0 %v444
  %516 = vmatprep.subr.bf16.mxu0 0
  %517 = vmatpush1.bf16.msra.mxu0 %v445
  %518 = vmatprep.subr.bf16.mxu0 0
  %519 = vmatpush1.bf16.msra.mxu0 %v446
  %520 = vmatprep.subr.bf16.mxu0 0
  %521 = vmatpush1.bf16.msra.mxu0 %v447
  %522 = vmatprep.subr.bf16.mxu0 0
  %523 = vmatpush1.bf16.msra.mxu0 %v448
  %524 = vmatprep.subr.bf16.mxu0 0
  %525 = vmatpush1.bf16.msra.mxu0 %v449
  %526 = vmatprep.subr.bf16.mxu0 0
  %527 = vmatpush1.bf16.msra.mxu0 %v450
  %528 = vmatprep.subr.bf16.mxu0 0
  %529 = vmatpush1.bf16.msra.mxu0 %v451
  %530 = vmatprep.subr.bf16.mxu0 0
  %531 = vmatpush1.bf16.msra.mxu0 %v452
  %532 = vmatprep.subr.bf16.mxu0 0
  %533 = vmatpush1.bf16.msra.mxu0 %v453
  %534 = vmatprep.mubr.bf16.mxu0 %v247
  %535 = vmatmul.mubr.bf16.gmra.mrb[0].mxu0 %v246
  %v536 = vpop.f32.mrb[0].mxu0
  %v537 = vadd.f32 %v148, %v536
  %v538 = vpop.f32.mrb[0].mxu0
  %v539 = vpop.f32.mrb[0].mxu0
  %v540 = vadd.f32 %v148, %v539
  %v541 = vpop.f32.mrb[0].mxu0
  %542 = vmatprep.mubr.bf16.mxu0 %v251
  %543 = vmatmul.mubr.bf16.gmra.mrb[0].mxu0 %v250
  %v544 = vpop.f32.mrb[0].mxu0
  %v545 = vadd.f32 %v148, %v544
  %v546 = vpop.f32.mrb[0].mxu0
  %v547 = vpop.f32.mrb[0].mxu0
  %v548 = vadd.f32 %v148, %v547
  %v549 = vpop.f32.mrb[0].mxu0
  %550 = vmatprep.mubr.bf16.mxu0 %v255
  %551 = vmatmul.mubr.bf16.gmra.mrb[0].mxu0 %v254
  %v552 = vpop.f32.mrb[0].mxu0
  %v553 = vadd.f32 %v148, %v552
  %v554 = vpop.f32.mrb[0].mxu0
  %v555 = vpop.f32.mrb[0].mxu0
  %v556 = vadd.f32 %v148, %v555
  %v557 = vpop.f32.mrb[0].mxu0
  %558 = vmatprep.mubr.bf16.mxu0 %v259
  %559 = vmatmul.mubr.bf16.gmra.mrb[0].mxu0 %v258
  %v560 = vpop.f32.mrb[0].mxu0
  %v561 = vadd.f32 %v148, %v560
  %v562 = vpop.f32.mrb[0].mxu0
  %v563 = vpop.f32.mrb[0].mxu0
  %v564 = vadd.f32 %v148, %v563
  %v565 = vpop.f32.mrb[0].mxu0
  %566 = vmatprep.mubr.bf16.mxu0 %v263
  %567 = vmatmul.mubr.bf16.gmra.mrb[0].mxu0 %v262
  %v568 = vpop.f32.mrb[0].mxu0
  %v569 = vadd.f32 %v148, %v568
  %v570 = vpop.f32.mrb[0].mxu0
  %v571 = vpop.f32.mrb[0].mxu0
  %v572 = vadd.f32 %v148, %v571
  %v573 = vpop.f32.mrb[0].mxu0
  %574 = vmatprep.mubr.bf16.mxu0 %v267
  %575 = vmatmul.mubr.bf16.gmra.mrb[0].mxu0 %v266
  %v576 = vpop.f32.mrb[0].mxu0
  %v577 = vadd.f32 %v148, %v576
  %v578 = vpop.f32.mrb[0].mxu0
  %v579 = vpop.f32.mrb[0].mxu0
  %v580 = vadd.f32 %v148, %v579
  %v581 = vpop.f32.mrb[0].mxu0
  %582 = vmatprep.mubr.bf16.mxu0 %v271
  %583 = vmatmul.mubr.bf16.gmra.mrb[0].mxu0 %v270
  %v584 = vpop.f32.mrb[0].mxu0
  %v585 = vadd.f32 %v148, %v584
  %v586 = vpop.f32.mrb[0].mxu0
  %v587 = vpop.f32.mrb[0].mxu0
  %v588 = vadd.f32 %v148, %v587
  %v589 = vpop.f32.mrb[0].mxu0
  %590 = vmatprep.mubr.bf16.mxu0 %v275
  %591 = vmatmul.mubr.bf16.gmra.mrb[0].mxu0 %v274
  %v592 = vpop.f32.mrb[0].mxu0
  %v593 = vadd.f32 %v148, %v592
  %v594 = vpop.f32.mrb[0].mxu0
  %v595 = vpop.f32.mrb[0].mxu0
  %v596 = vadd.f32 %v148, %v595
  %v597 = vpop.f32.mrb[0].mxu0
  %598 = vdwg.mxu0
  %599 = vmatprep.subr.bf16.mxu0 0
  %600 = vmatpush1.bf16.msra.mxu0 %v454
  %601 = vmatprep.subr.bf16.mxu0 0
  %602 = vmatpush1.bf16.msra.mxu0 %v455
  %603 = vmatprep.subr.bf16.mxu0 0
  %604 = vmatpush1.bf16.msra.mxu0 %v456
  %605 = vmatprep.subr.bf16.mxu0 0
  %606 = vmatpush1.bf16.msra.mxu0 %v457
  %607 = vmatprep.subr.bf16.mxu0 0
  %608 = vmatpush1.bf16.msra.mxu0 %v458
  %609 = vmatprep.subr.bf16.mxu0 0
  %610 = vmatpush1.bf16.msra.mxu0 %v459
  %611 = vmatprep.subr.bf16.mxu0 0
  %612 = vmatpush1.bf16.msra.mxu0 %v460
  %613 = vmatprep.subr.bf16.mxu0 0
  %614 = vmatpush1.bf16.msra.mxu0 %v461
  %615 = vmatprep.subr.bf16.mxu0 0
  %616 = vmatpush1.bf16.msra.mxu0 %v462
  %617 = vmatprep.subr.bf16.mxu0 0
  %618 = vmatpush1.bf16.msra.mxu0 %v463
  %619 = vmatprep.subr.bf16.mxu0 0
  %620 = vmatpush1.bf16.msra.mxu0 %v464
  %621 = vmatprep.subr.bf16.mxu0 0
  %622 = vmatpush1.bf16.msra.mxu0 %v465
  %623 = vmatprep.subr.bf16.mxu0 0
  %624 = vmatpush1.bf16.msra.mxu0 %v466
  %625 = vmatprep.subr.bf16.mxu0 0
  %626 = vmatpush1.bf16.msra.mxu0 %v467
  %627 = vmatprep.subr.bf16.mxu0 0
  %628 = vmatpush1.bf16.msra.mxu0 %v468
  %629 = vmatprep.subr.bf16.mxu0 0
  %630 = vmatpush1.bf16.msra.mxu0 %v469
  %631 = vmatprep.mubr.bf16.mxu0 %v249
  %632 = vmatmul.mubr.bf16.gmra.mrb[0].mxu0 %v248
  %v633 = vpop.f32.mrb[0].mxu0
  %v634 = vadd.f32 %v537, %v633
  %v635 = vpop.f32.mrb[0].mxu0
  %v636 = vpop.f32.mrb[0].mxu0
  %v637 = vadd.f32 %v540, %v636
  %v638 = vpop.f32.mrb[0].mxu0
  %639 = vmatprep.mubr.bf16.mxu0 %v253
  %640 = vmatmul.mubr.bf16.gmra.mrb[0].mxu0 %v252
  %v641 = vpop.f32.mrb[0].mxu0
  %v642 = vadd.f32 %v545, %v641
  %v643 = vpop.f32.mrb[0].mxu0
  %v644 = vpop.f32.mrb[0].mxu0
  %v645 = vadd.f32 %v548, %v644
  %v646 = vpop.f32.mrb[0].mxu0
  %647 = vmatprep.mubr.bf16.mxu0 %v257
  %648 = vmatmul.mubr.bf16.gmra.mrb[0].mxu0 %v256
  %v649 = vpop.f32.mrb[0].mxu0
  %v650 = vadd.f32 %v553, %v649
  %v651 = vpop.f32.mrb[0].mxu0
  %v652 = vpop.f32.mrb[0].mxu0
  %v653 = vadd.f32 %v556, %v652
  %v654 = vpop.f32.mrb[0].mxu0
  %655 = vmatprep.mubr.bf16.mxu0 %v261
  %656 = vmatmul.mubr.bf16.gmra.mrb[0].mxu0 %v260
  %v657 = vpop.f32.mrb[0].mxu0
  %v658 = vadd.f32 %v561, %v657
  %v659 = vpop.f32.mrb[0].mxu0
  %v660 = vpop.f32.mrb[0].mxu0
  %v661 = vadd.f32 %v564, %v660
  %v662 = vpop.f32.mrb[0].mxu0
  %663 = vmatprep.mubr.bf16.mxu0 %v265
  %664 = vmatmul.mubr.bf16.gmra.mrb[0].mxu0 %v264
  %v665 = vpop.f32.mrb[0].mxu0
  %v666 = vadd.f32 %v569, %v665
  %v667 = vpop.f32.mrb[0].mxu0
  %v668 = vpop.f32.mrb[0].mxu0
  %v669 = vadd.f32 %v572, %v668
  %v670 = vpop.f32.mrb[0].mxu0
  %671 = vmatprep.mubr.bf16.mxu0 %v269
  %672 = vmatmul.mubr.bf16.gmra.mrb[0].mxu0 %v268
  %v673 = vpop.f32.mrb[0].mxu0
  %v674 = vadd.f32 %v577, %v673
  %v675 = vpop.f32.mrb[0].mxu0
  %v676 = vpop.f32.mrb[0].mxu0
  %v677 = vadd.f32 %v580, %v676
  %v678 = vpop.f32.mrb[0].mxu0
  %679 = vmatprep.mubr.bf16.mxu0 %v273
  %680 = vmatmul.mubr.bf16.gmra.mrb[0].mxu0 %v272
  %v681 = vpop.f32.mrb[0].mxu0
  %v682 = vadd.f32 %v585, %v681
  %v683 = vpop.f32.mrb[0].mxu0
  %v684 = vpop.f32.mrb[0].mxu0
  %v685 = vadd.f32 %v588, %v684
  %v686 = vpop.f32.mrb[0].mxu0
  %687 = vmatprep.mubr.bf16.mxu0 %v277
  %688 = vmatmul.mubr.bf16.gmra.mrb[0].mxu0 %v276
  %v689 = vpop.f32.mrb[0].mxu0
  %v690 = vadd.f32 %v593, %v689
  %v691 = vpop.f32.mrb[0].mxu0
  %v692 = vpop.f32.mrb[0].mxu0
  %v693 = vadd.f32 %v596, %v692
  %v694 = vpop.f32.mrb[0].mxu0
  %695 = vdwg.mxu0
  %v696 = vmax.f32 %v634, 0.0
  %v697 = vmax.f32 %v637, 0.0
  %v698 = vmax.f32 %v642, 0.0
  %v699 = vmax.f32 %v645, 0.0
  %v700 = vmax.f32 %v650, 0.0
  %v701 = vmax.f32 %v653, 0.0
  %v702 = vmax.f32 %v658, 0.0
  %v703 = vmax.f32 %v661, 0.0
  %v704 = vmax.f32 %v666, 0.0
  %v705 = vmax.f32 %v669, 0.0
  %v706 = vmax.f32 %v674, 0.0
  %v707 = vmax.f32 %v677, 0.0
  %v708 = vmax.f32 %v682, 0.0
  %v709 = vmax.f32 %v685, 0.0
  %v710 = vmax.f32 %v690, 0.0
  %v711 = vmax.f32 %v693, 0.0
  %v712 = vpack.c.bf16 %v697, %v696
  %v713 = vpack.c.bf16 %v699, %v698
  %v714 = vpack.c.bf16 %v701, %v700
  %v715 = vpack.c.bf16 %v703, %v702
  %v716 = vpack.c.bf16 %v705, %v704
  %v717 = vpack.c.bf16 %v707, %v706
  %v718 = vpack.c.bf16 %v709, %v708
  %v719 = vpack.c.bf16 %v711, %v710
  %v728 = vunpack.c.l.b16 %v712
  %v729 = vunpack.c.h.b16 %v712
  %v730 = vunpack.c.l.b16 %v713
  %v731 = vunpack.c.h.b16 %v713
  %v732 = vunpack.c.l.b16 %v714
  %v733 = vunpack.c.h.b16 %v714
  %v734 = vunpack.c.l.b16 %v715
  %v735 = vunpack.c.h.b16 %v715
  %v736 = vunpack.c.l.b16 %v716
  %v737 = vunpack.c.h.b16 %v716
  %v738 = vunpack.c.l.b16 %v717
  %v739 = vunpack.c.h.b16 %v717
  %v740 = vunpack.c.l.b16 %v718
  %v741 = vunpack.c.h.b16 %v718
  %v742 = vunpack.c.l.b16 %v719
  %v743 = vunpack.c.h.b16 %v719
  %v744 = vpack.c.b16 %v728, %v728
  %v745 = vpack.c.b16 %v729, %v729
  %v746 = vpack.c.b16 %v730, %v730
  %v747 = vpack.c.b16 %v731, %v731
  %v748 = vpack.c.b16 %v732, %v732
  %v749 = vpack.c.b16 %v733, %v733
  %v750 = vpack.c.b16 %v734, %v734
  %v751 = vpack.c.b16 %v735, %v735
  %v752 = vpack.c.b16 %v736, %v736
  %v753 = vpack.c.b16 %v737, %v737
  %v754 = vpack.c.b16 %v738, %v738
  %v755 = vpack.c.b16 %v739, %v739
  %v756 = vpack.c.b16 %v740, %v740
  %v757 = vpack.c.b16 %v741, %v741
  %v758 = vpack.c.b16 %v742, %v742
  %v759 = vpack.c.b16 %v743, %v743
  %vm776 = vcmask 125952
  %777 = vst.msk [vmem:[%s3] sm:$0xf] %vm776, %v744
  %778 = vst.msk [vmem:[%s3 + $0x4] sm:$0xf] %vm776, %v745
  %779 = vst.msk [vmem:[%s3 + $0x8] sm:$0xf] %vm776, %v746
  %780 = vst.msk [vmem:[%s3 + $0xc] sm:$0xf] %vm776, %v747
  %781 = vst.msk [vmem:[%s3 + $0x10] sm:$0xf] %vm776, %v748
  %782 = vst.msk [vmem:[%s3 + $0x14] sm:$0xf] %vm776, %v749
  %783 = vst.msk [vmem:[%s3 + $0x18] sm:$0xf] %vm776, %v750
  %784 = vst.msk [vmem:[%s3 + $0x1c] sm:$0xf] %vm776, %v751
  %785 = vst.msk [vmem:[%s3 + $0x20] sm:$0xf] %vm776, %v752
  %786 = vst.msk [vmem:[%s3 + $0x24] sm:$0xf] %vm776, %v753
  %787 = vst.msk [vmem:[%s3 + $0x28] sm:$0xf] %vm776, %v754
  %788 = vst.msk [vmem:[%s3 + $0x2c] sm:$0xf] %vm776, %v755
  %789 = vst.msk [vmem:[%s3 + $0x30] sm:$0xf] %vm776, %v756
  %790 = vst.msk [vmem:[%s3 + $0x34] sm:$0xf] %vm776, %v757
  %791 = vst.msk [vmem:[%s3 + $0x38] sm:$0xf] %vm776, %v758
  %792 = vst.msk [vmem:[%s3 + $0x3c] sm:$0xf] %vm776, %v759
  // Predicated region
  $region14: #{qvae_forward.28} parent=0 // pred_check
    _
  $region15: #{qvae_forward.28} parent=0 // pred_check_branch
    %794 = sbr.rel (0) target = $region17
  $region16: #{qvae_forward.28} parent=0 // pred_region
    _
  $region17: #{qvae_forward.28} parent=0 // pred_fallthru
    _
  // Predicated region
  $region18: #{qvae_forward.28} parent=0 // pred_check
    _
  $region19: #{qvae_forward.28} parent=0 // pred_check_branch
    %796 = sbr.rel (0) target = $region21
  $region20: #{qvae_forward.28} parent=0 // pred_region
    _
  $region21: #{qvae_forward.28} parent=0 // pred_fallthru
    _

// kernel: qvae_forward.29
$region0: #{qvae_forward.29}
  #allocation0 [shape = 'u32[]', space=smem, size = 0x4, offset = 0x4, fixed_abs, tag = 'smem constant byte address 0x4 - core index']
  #allocation1 [shape = 'u32[144,128]{1,0:T(1,128)}', space=vmem, size = 0x12000, scoped, tag = 'internal scratch']
  %s0 = inlined_call_operand.vmem [shape: bf16[512,256], index: 0, kind: input, shape index: {}]
  %s1 = inlined_call_operand.vmem [shape: bf16[256,3], index: 1, kind: input, shape index: {}]
  %s2 = inlined_call_operand.vmem [shape: f32[1,3], index: 2, kind: input, shape index: {}]
  %s3 = inlined_call_operand.vmem [shape: f32[512,3], index: 3, kind: output, shape index: {}]
  %s4 = sld [smem:[#allocation0]]
  $region45: #{qvae_forward.29} parent=0
    _
  %s6 = ssub.s32 1, %s4
  %s7 = scalar_select 0, %s6, %s4
  loop: start=0, step=1, limit=4
  $region2: #{qvae_forward.29} parent=0 // loop_pre_header
    _
  $region3: #{qvae_forward.29} parent=0 // loop_header
    %s9 = sphi 0, %s13
    %p10 = scmp.ge.s32.totalorder %s9, 4
    %s19 = sphi 0, %s21
    %s22 = sphi 0, %s19
    %s23 = sphi 0, %s22
    %s39 = sphi 0, %s23
    %s43 = sphi 0, %s43
    %s45 = sphi 0, %s43
    %s46 = sphi 0, %s45
    %s60 = sphi 0, %s46
    %s64 = sphi 0, %s64
    %s66 = sphi 0, %s64
    %s67 = sphi 0, %s66
    %s81 = sphi 0, %s67
    %s87 = sphi 0, %s89
    %s90 = sphi 0, %s87
    %s91 = sphi 0, %s90
    %s107 = sphi 0, %s91
  $region4: #{qvae_forward.29} parent=0 // loop_header_branch
    %12 = sbr.rel (%p10) target = $region8
  $region5: #{qvae_forward.29} parent=0 // loop_body
    %s14 = ssub.s32 %s9, 1
    %s15 = ssub.s32 %s9, 2
    %s16 = sadd.s32 %s9, 1
    %s17 = ssub.s32 %s9, %s16
    %p18 = scmp.eq.s32.totalorder %s17, 0
    %s20 = sadd.s32 %s19, 1
    %s21 = scalar_select %p18, %s19, %s20
    %p24 = pneg %p18
    %p25 = scmp.eq.s32.totalorder %s9, 1
    %p26 = por %p24, %p25
    %p27 = scmp.ne.s32.totalorder %s19, %s22
    %p28 = scmp.eq.s32.totalorder %s9, 0
    %p29 = por %p27, %p28
    %p30 = scmp.ne.s32.totalorder %s19, %s22
    %p31 = scmp.eq.s32.totalorder %s14, 1
    %p32 = por %p30, %p31
    %p33 = scmp.ne.s32.totalorder %s22, %s23
    %p34 = scmp.eq.s32.totalorder %s14, 0
    %p35 = por %p33, %p34
    %p36 = scmp.ne.s32.totalorder %s22, %s23
    %p37 = scmp.eq.s32.totalorder %s15, 1
    %p38 = por %p36, %p37
    %p40 = scmp.ne.s32.totalorder %s23, %s39
    %p41 = scmp.eq.s32.totalorder %s15, 0
    %p42 = por %p40, %p41
    %s44 = sadd.s32 %s43, 1
    %p47 = scmp.eq.s32.totalorder %s9, 1
    %p48 = scmp.ne.s32.totalorder %s43, %s45
    %p49 = scmp.eq.s32.totalorder %s9, 0
    %p50 = por %p48, %p49
    %p51 = scmp.ne.s32.totalorder %s43, %s45
    %p52 = scmp.eq.s32.totalorder %s14, 1
    %p53 = por %p51, %p52
    %p54 = scmp.ne.s32.totalorder %s45, %s46
    %p55 = scmp.eq.s32.totalorder %s14, 0
    %p56 = por %p54, %p55
    %p57 = scmp.ne.s32.totalorder %s45, %s46
    %p58 = scmp.eq.s32.totalorder %s15, 1
    %p59 = por %p57, %p58
    %p61 = scmp.ne.s32.totalorder %s46, %s60
    %p62 = scmp.eq.s32.totalorder %s15, 0
    %p63 = por %p61, %p62
    %s65 = sadd.s32 %s64, 1
    %p68 = scmp.eq.s32.totalorder %s9, 1
    %p69 = scmp.ne.s32.totalorder %s64, %s66
    %p70 = scmp.eq.s32.totalorder %s9, 0
    %p71 = por %p69, %p70
    %p72 = scmp.ne.s32.totalorder %s64, %s66
    %p73 = scmp.eq.s32.totalorder %s14, 1
    %p74 = por %p72, %p73
    %p75 = scmp.ne.s32.totalorder %s66, %s67
    %p76 = scmp.eq.s32.totalorder %s14, 0
    %p77 = por %p75, %p76
    %p78 = scmp.ne.s32.totalorder %s66, %s67
    %p79 = scmp.eq.s32.totalorder %s15, 1
    %p80 = por %p78, %p79
    %p82 = scmp.ne.s32.totalorder %s67, %s81
    %p83 = scmp.eq.s32.totalorder %s15, 0
    %p84 = por %p82, %p83
    %s85 = ssub.s32 %s9, %s16
    %p86 = scmp.eq.s32.totalorder %s85, 0
    %s88 = sadd.s32 %s87, 1
    %s89 = scalar_select %p86, %s87, %s88
    %p92 = pneg %p86
    %p93 = scmp.eq.s32.totalorder %s9, 1
    %p94 = por %p92, %p93
    %p95 = scmp.ne.s32.totalorder %s87, %s90
    %p96 = scmp.eq.s32.totalorder %s9, 0
    %p97 = por %p95, %p96
    %p98 = scmp.ne.s32.totalorder %s87, %s90
    %p99 = scmp.eq.s32.totalorder %s14, 1
    %p100 = por %p98, %p99
    %p101 = scmp.ne.s32.totalorder %s90, %s91
    %p102 = scmp.eq.s32.totalorder %s14, 0
    %p103 = por %p101, %p102
    %p104 = scmp.ne.s32.totalorder %s90, %s91
    %p105 = scmp.eq.s32.totalorder %s15, 1
    %p106 = por %p104, %p105
    %p108 = scmp.ne.s32.totalorder %s91, %s107
    %p109 = scmp.eq.s32.totalorder %s15, 0
    %p110 = por %p108, %p109
    %p111 = scmp.le.s32.totalorder 1, %s9
    %p112 = scmp.lt.s32.totalorder %s9, 3
    %p113 = pnand %p111, %p112
    %p114 = pneg %p113
    // Predicated region
    $region9: #{qvae_forward.29} parent=5 // pred_check
      _
    $region10: #{qvae_forward.29} parent=5 // pred_check_branch
      %116 = sbr.rel (%p113) target = $region12
    $region11: #{qvae_forward.29} parent=5 // pred_region
      %s117 = ssub.s32 %s9, 1
      // Predicated region
      $region13: #{qvae_forward.29} parent=11 // pred_check
        %p118 = pneg %p56
      $region14: #{qvae_forward.29} parent=11 // pred_check_branch
        %120 = sbr.rel (%p118) target = $region16
      $region15: #{qvae_forward.29} parent=11 // pred_region
        _
      $region16: #{qvae_forward.29} parent=11 // pred_fallthru
        _
      // Predicated region
      $region17: #{qvae_forward.29} parent=11 // pred_check
        %p121 = pneg %p77
      $region18: #{qvae_forward.29} parent=11 // pred_check_branch
        %123 = sbr.rel (%p121) target = $region20
      $region19: #{qvae_forward.29} parent=11 // pred_region
        _
      $region20: #{qvae_forward.29} parent=11 // pred_fallthru
        _
    $region12: #{qvae_forward.29} parent=5 // pred_fallthru
      _
    %p124 = scmp.lt.s32.totalorder %s9, 2
    // Predicated region
    $region21: #{qvae_forward.29} parent=5 // pred_check
      %p125 = pneg %p124
    $region22: #{qvae_forward.29} parent=5 // pred_check_branch
      %127 = sbr.rel (%p125) target = $region24
    $region23: #{qvae_forward.29} parent=5 // pred_region
      // Predicated region
      $region25: #{qvae_forward.29} parent=23 // pred_check
        %p128 = pneg %p29
      $region26: #{qvae_forward.29} parent=23 // pred_check_branch
        %130 = sbr.rel (%p128) target = $region28
      $region27: #{qvae_forward.29} parent=23 // pred_region
        %s131 = smul.u32 32, %s9
        %p132 = scmp.lt.s32.totalorder %s131, 63
        %s133 = scalar_select %p132, %s131, 63
        %s134 = smul.addr %s133, 2
        %s135 = smul.addr %s134, 4
        %s136 = scalar_lea.vmem %s0, %s135
        %s137 = smul.u32 32, %s9
      $region28: #{qvae_forward.29} parent=23 // pred_fallthru
        _
    $region24: #{qvae_forward.29} parent=5 // pred_fallthru
      _
    %p138 = scmp.le.s32.totalorder 1, %s9
    %p139 = scmp.lt.s32.totalorder %s9, 3
    %p140 = pnand %p138, %p139
    %p141 = pneg %p140
    // Predicated region
    $region29: #{qvae_forward.29} parent=5 // pred_check
      _
    $region30: #{qvae_forward.29} parent=5 // pred_check_branch
      %143 = sbr.rel (%p140) target = $region32
    $region31: #{qvae_forward.29} parent=5 // pred_region
      %s144 = ssub.s32 %s9, 1
      %s145 = smul.u32 32, %s14
      %p146 = scmp.lt.s32.totalorder %s145, 63
      %s147 = scalar_select %p146, %s145, 63
      %s148 = smul.addr %s147, 2
      %s149 = smul.addr %s148, 4
      %s150 = scalar_lea.vmem %s0, %s149
      %p151 = pneg %p35
      %p152 = pneg %p32
      %p153 = pneg %p56
      %p154 = pneg %p53
      %p155 = pneg %p77
      %p156 = pneg %p74
      %p157 = pneg %p103
      %p158 = pneg %p100
      %s159 = smul.u32 32, %s14
      %p160 = scmp.lt.s32.totalorder %s159, 63
      %s161 = scalar_select %p160, %s159, 63
      %s162 = smul.addr %s161, 8
      %s163 = scalar_lea.vmem %s3, %s162
      %s164 = smul.u32 32, %s14
      %p165 = scmp.lt.s32.totalorder %s164, 63
      %s166 = scalar_select %p165, %s164, 63
      %s167 = smul.addr %s166, 2
      %s168 = smul.addr %s167, 4
      %s169 = scalar_lea.vmem %s0, %s168
      %s170 = smul.u32 32, %s14
      %s171 = smul.u32 32, %s14
      %p172 = scmp.lt.s32.totalorder %s171, 63
      %s173 = scalar_select %p172, %s171, 63
      %s174 = smul.addr %s173, 8
      %s175 = scalar_lea.vmem %s3, %s174
      %s176 = smul.u32 32, %s14
      %v178 = vld [vmem:[%s169] sm:$0xff]
      %v179 = vld [vmem:[%s169 + $0x8] sm:$0xff]
      %v180 = vld [vmem:[%s169 + $0x10] sm:$0xff]
      %v181 = vld [vmem:[%s169 + $0x18] sm:$0xff]
      %v182 = vld [vmem:[%s169 + $0x20] sm:$0xff]
      %v183 = vld [vmem:[%s169 + $0x28] sm:$0xff]
      %v184 = vld [vmem:[%s169 + $0x30] sm:$0xff]
      %v185 = vld [vmem:[%s169 + $0x38] sm:$0xff]
      %v186 = vld [vmem:[%s169 + $0x40] sm:$0xff]
      %v187 = vld [vmem:[%s169 + $0x48] sm:$0xff]
      %v188 = vld [vmem:[%s169 + $0x50] sm:$0xff]
      %v189 = vld [vmem:[%s169 + $0x58] sm:$0xff]
      %v190 = vld [vmem:[%s169 + $0x60] sm:$0xff]
      %v191 = vld [vmem:[%s169 + $0x68] sm:$0xff]
      %v192 = vld [vmem:[%s169 + $0x70] sm:$0xff]
      %v193 = vld [vmem:[%s169 + $0x78] sm:$0xff]
      %v194 = vld [vmem:[%s169 + $0x80] sm:$0xff]
      %v195 = vld [vmem:[%s169 + $0x88] sm:$0xff]
      %v196 = vld [vmem:[%s169 + $0x90] sm:$0xff]
      %v197 = vld [vmem:[%s169 + $0x98] sm:$0xff]
      %v198 = vld [vmem:[%s169 + $0xa0] sm:$0xff]
      %v199 = vld [vmem:[%s169 + $0xa8] sm:$0xff]
      %v200 = vld [vmem:[%s169 + $0xb0] sm:$0xff]
      %v201 = vld [vmem:[%s169 + $0xb8] sm:$0xff]
      %v202 = vld [vmem:[%s169 + $0xc0] sm:$0xff]
      %v203 = vld [vmem:[%s169 + $0xc8] sm:$0xff]
      %v204 = vld [vmem:[%s169 + $0xd0] sm:$0xff]
      %v205 = vld [vmem:[%s169 + $0xd8] sm:$0xff]
      %v206 = vld [vmem:[%s169 + $0xe0] sm:$0xff]
      %v207 = vld [vmem:[%s169 + $0xe8] sm:$0xff]
      %v208 = vld [vmem:[%s169 + $0xf0] sm:$0xff]
      %v209 = vld [vmem:[%s169 + $0xf8] sm:$0xff]
      %v210 = vld [vmem:[%s1] sm:$0xf]
      %v211 = vld [vmem:[%s1 + $0x4] sm:$0xf]
      %v212 = vld [vmem:[%s1 + $0x8] sm:$0xf]
      %v213 = vld [vmem:[%s1 + $0xc] sm:$0xf]
      %v214 = vld [vmem:[%s1 + $0x10] sm:$0xf]
      %v215 = vld [vmem:[%s1 + $0x14] sm:$0xf]
      %v216 = vld [vmem:[%s1 + $0x18] sm:$0xf]
      %v217 = vld [vmem:[%s1 + $0x1c] sm:$0xf]
      %v218 = vld [vmem:[%s1 + $0x20] sm:$0xf]
      %v219 = vld [vmem:[%s1 + $0x24] sm:$0xf]
      %v220 = vld [vmem:[%s1 + $0x28] sm:$0xf]
      %v221 = vld [vmem:[%s1 + $0x2c] sm:$0xf]
      %v222 = vld [vmem:[%s1 + $0x30] sm:$0xf]
      %v223 = vld [vmem:[%s1 + $0x34] sm:$0xf]
      %v224 = vld [vmem:[%s1 + $0x38] sm:$0xf]
      %v225 = vld [vmem:[%s1 + $0x3c] sm:$0xf]
      %v226 = vld [vmem:[%s1 + $0x40] sm:$0xf]
      %v227 = vld [vmem:[%s1 + $0x44] sm:$0xf]
      %v228 = vld [vmem:[%s1 + $0x48] sm:$0xf]
      %v229 = vld [vmem:[%s1 + $0x4c] sm:$0xf]
      %v230 = vld [vmem:[%s1 + $0x50] sm:$0xf]
      %v231 = vld [vmem:[%s1 + $0x54] sm:$0xf]
      %v232 = vld [vmem:[%s1 + $0x58] sm:$0xf]
      %v233 = vld [vmem:[%s1 + $0x5c] sm:$0xf]
      %v234 = vld [vmem:[%s1 + $0x60] sm:$0xf]
      %v235 = vld [vmem:[%s1 + $0x64] sm:$0xf]
      %v236 = vld [vmem:[%s1 + $0x68] sm:$0xf]
      %v237 = vld [vmem:[%s1 + $0x6c] sm:$0xf]
      %v238 = vld [vmem:[%s1 + $0x70] sm:$0xf]
      %v239 = vld [vmem:[%s1 + $0x74] sm:$0xf]
      %v240 = vld [vmem:[%s1 + $0x78] sm:$0xf]
      %v241 = vld [vmem:[%s1 + $0x7c] sm:$0xf]
      %v242 = vld [vmem:[%s2] sm:$0x1]
      %v244 = vlaneseq
      %v245 = vshrl.u32 %v244, 7
      %v246 = vsub.s32 0, %v245
      %v247 = vrot.slane %v242, %v246
      %v281 = vunpack.c.l.b16 %v178
      %v282 = vunpack.c.h.b16 %v178
      %v283 = vunpack.c.l.b16 %v179
      %v284 = vunpack.c.h.b16 %v179
      %v285 = vunpack.c.l.b16 %v180
      %v286 = vunpack.c.h.b16 %v180
      %v287 = vunpack.c.l.b16 %v181
      %v288 = vunpack.c.h.b16 %v181
      %v289 = vunpack.c.l.b16 %v182
      %v290 = vunpack.c.h.b16 %v182
      %v291 = vunpack.c.l.b16 %v183
      %v292 = vunpack.c.h.b16 %v183
      %v293 = vunpack.c.l.b16 %v184
      %v294 = vunpack.c.h.b16 %v184
      %v295 = vunpack.c.l.b16 %v185
      %v296 = vunpack.c.h.b16 %v185
      %v297 = vunpack.c.l.b16 %v186
      %v298 = vunpack.c.h.b16 %v186
      %v299 = vunpack.c.l.b16 %v187
      %v300 = vunpack.c.h.b16 %v187
      %v301 = vunpack.c.l.b16 %v188
      %v302 = vunpack.c.h.b16 %v188
      %v303 = vunpack.c.l.b16 %v189
      %v304 = vunpack.c.h.b16 %v189
      %v305 = vunpack.c.l.b16 %v190
      %v306 = vunpack.c.h.b16 %v190
      %v307 = vunpack.c.l.b16 %v191
      %v308 = vunpack.c.h.b16 %v191
      %v309 = vunpack.c.l.b16 %v192
      %v310 = vunpack.c.h.b16 %v192
      %v311 = vunpack.c.l.b16 %v193
      %v312 = vunpack.c.h.b16 %v193
      %v313 = vunpack.c.l.b16 %v194
      %v314 = vunpack.c.h.b16 %v194
      %v315 = vunpack.c.l.b16 %v195
      %v316 = vunpack.c.h.b16 %v195
      %v317 = vunpack.c.l.b16 %v196
      %v318 = vunpack.c.h.b16 %v196
      %v319 = vunpack.c.l.b16 %v197
      %v320 = vunpack.c.h.b16 %v197
      %v321 = vunpack.c.l.b16 %v198
      %v322 = vunpack.c.h.b16 %v198
      %v323 = vunpack.c.l.b16 %v199
      %v324 = vunpack.c.h.b16 %v199
      %v325 = vunpack.c.l.b16 %v200
      %v326 = vunpack.c.h.b16 %v200
      %v327 = vunpack.c.l.b16 %v201
      %v328 = vunpack.c.h.b16 %v201
      %v329 = vunpack.c.l.b16 %v202
      %v330 = vunpack.c.h.b16 %v202
      %v331 = vunpack.c.l.b16 %v203
      %v332 = vunpack.c.h.b16 %v203
      %v333 = vunpack.c.l.b16 %v204
      %v334 = vunpack.c.h.b16 %v204
      %v335 = vunpack.c.l.b16 %v205
      %v336 = vunpack.c.h.b16 %v205
      %v337 = vunpack.c.l.b16 %v206
      %v338 = vunpack.c.h.b16 %v206
      %v339 = vunpack.c.l.b16 %v207
      %v340 = vunpack.c.h.b16 %v207
      %v341 = vunpack.c.l.b16 %v208
      %v342 = vunpack.c.h.b16 %v208
      %v343 = vunpack.c.l.b16 %v209
      %v344 = vunpack.c.h.b16 %v209
      %v345 = vpack.c.b16 %v283, %v281
      %v346 = vpack.c.b16 %v284, %v282
      %v347 = vpack.c.b16 %v287, %v285
      %v348 = vpack.c.b16 %v288, %v286
      %v349 = vpack.c.b16 %v291, %v289
      %v350 = vpack.c.b16 %v292, %v290
      %v351 = vpack.c.b16 %v295, %v293
      %v352 = vpack.c.b16 %v296, %v294
      %v353 = vpack.c.b16 %v299, %v297
      %v354 = vpack.c.b16 %v300, %v298
      %v355 = vpack.c.b16 %v303, %v301
      %v356 = vpack.c.b16 %v304, %v302
      %v357 = vpack.c.b16 %v307, %v305
      %v358 = vpack.c.b16 %v308, %v306
      %v359 = vpack.c.b16 %v311, %v309
      %v360 = vpack.c.b16 %v312, %v310
      %v361 = vpack.c.b16 %v315, %v313
      %v362 = vpack.c.b16 %v316, %v314
      %v363 = vpack.c.b16 %v319, %v317
      %v364 = vpack.c.b16 %v320, %v318
      %v365 = vpack.c.b16 %v323, %v321
      %v366 = vpack.c.b16 %v324, %v322
      %v367 = vpack.c.b16 %v327, %v325
      %v368 = vpack.c.b16 %v328, %v326
      %v369 = vpack.c.b16 %v331, %v329
      %v370 = vpack.c.b16 %v332, %v330
      %v371 = vpack.c.b16 %v335, %v333
      %v372 = vpack.c.b16 %v336, %v334
      %v373 = vpack.c.b16 %v339, %v337
      %v374 = vpack.c.b16 %v340, %v338
      %v375 = vpack.c.b16 %v343, %v341
      %v376 = vpack.c.b16 %v344, %v342
      %v441 = vunpack.c.l.b16 %v210
      %v442 = vunpack.c.l.b16 %v211
      %v443 = vunpack.c.l.b16 %v212
      %v444 = vunpack.c.l.b16 %v213
      %v445 = vunpack.c.l.b16 %v214
      %v446 = vunpack.c.l.b16 %v215
      %v447 = vunpack.c.l.b16 %v216
      %v448 = vunpack.c.l.b16 %v217
      %v449 = vunpack.c.l.b16 %v218
      %v450 = vunpack.c.l.b16 %v219
      %v451 = vunpack.c.l.b16 %v220
      %v452 = vunpack.c.l.b16 %v221
      %v453 = vunpack.c.l.b16 %v222
      %v454 = vunpack.c.l.b16 %v223
      %v455 = vunpack.c.l.b16 %v224
      %v456 = vunpack.c.l.b16 %v225
      %v457 = vunpack.c.l.b16 %v226
      %v458 = vunpack.c.l.b16 %v227
      %v459 = vunpack.c.l.b16 %v228
      %v460 = vunpack.c.l.b16 %v229
      %v461 = vunpack.c.l.b16 %v230
      %v462 = vunpack.c.l.b16 %v231
      %v463 = vunpack.c.l.b16 %v232
      %v464 = vunpack.c.l.b16 %v233
      %v465 = vunpack.c.l.b16 %v234
      %v466 = vunpack.c.l.b16 %v235
      %v467 = vunpack.c.l.b16 %v236
      %v468 = vunpack.c.l.b16 %v237
      %v469 = vunpack.c.l.b16 %v238
      %v470 = vunpack.c.l.b16 %v239
      %v471 = vunpack.c.l.b16 %v240
      %v472 = vunpack.c.l.b16 %v241
      %v473 = vpack.c.b16 %v442, %v441
      %v474 = vpack.c.b16 %v444, %v443
      %v475 = vpack.c.b16 %v446, %v445
      %v476 = vpack.c.b16 %v448, %v447
      %v477 = vpack.c.b16 %v450, %v449
      %v478 = vpack.c.b16 %v452, %v451
      %v479 = vpack.c.b16 %v454, %v453
      %v480 = vpack.c.b16 %v456, %v455
      %v481 = vpack.c.b16 %v458, %v457
      %v482 = vpack.c.b16 %v460, %v459
      %v483 = vpack.c.b16 %v462, %v461
      %v484 = vpack.c.b16 %v464, %v463
      %v485 = vpack.c.b16 %v466, %v465
      %v486 = vpack.c.b16 %v468, %v467
      %v487 = vpack.c.b16 %v470, %v469
      %v488 = vpack.c.b16 %v472, %v471
      %505 = vmatprep.subr.bf16.mxu0 0
      %506 = vmatpush1.bf16.msra.mxu0 %v473
      %507 = vmatprep.subr.bf16.mxu0 0
      %508 = vmatpush1.bf16.msra.mxu0 %v474
      %509 = vmatprep.subr.bf16.mxu0 0
      %510 = vmatpush1.bf16.msra.mxu0 %v475
      %511 = vmatprep.subr.bf16.mxu0 0
      %512 = vmatpush1.bf16.msra.mxu0 %v476
      %513 = vmatprep.subr.bf16.mxu0 0
      %514 = vmatpush1.bf16.msra.mxu0 %v477
      %515 = vmatprep.subr.bf16.mxu0 0
      %516 = vmatpush1.bf16.msra.mxu0 %v478
      %517 = vmatprep.subr.bf16.mxu0 0
      %518 = vmatpush1.bf16.msra.mxu0 %v479
      %519 = vmatprep.subr.bf16.mxu0 0
      %520 = vmatpush1.bf16.msra.mxu0 %v480
      %521 = vmatprep.subr.bf16.mxu0 0
      %522 = vmatpush1.bf16.msra.mxu0 %v481
      %523 = vmatprep.subr.bf16.mxu0 0
      %524 = vmatpush1.bf16.msra.mxu0 %v482
      %525 = vmatprep.subr.bf16.mxu0 0
      %526 = vmatpush1.bf16.msra.mxu0 %v483
      %527 = vmatprep.subr.bf16.mxu0 0
      %528 = vmatpush1.bf16.msra.mxu0 %v484
      %529 = vmatprep.subr.bf16.mxu0 0
      %530 = vmatpush1.bf16.msra.mxu0 %v485
      %531 = vmatprep.subr.bf16.mxu0 0
      %532 = vmatpush1.bf16.msra.mxu0 %v486
      %533 = vmatprep.subr.bf16.mxu0 0
      %534 = vmatpush1.bf16.msra.mxu0 %v487
      %535 = vmatprep.subr.bf16.mxu0 0
      %536 = vmatpush1.bf16.msra.mxu0 %v488
      %537 = vmatprep.mubr.bf16.mxu0 %v346
      %538 = vmatmul.mubr.bf16.gmra.mrb[0].mxu0 %v345
      %v539 = vpop.f32.mrb[0].mxu0
      %v540 = vadd.f32 %v247, %v539
      %v541 = vpop.f32.mrb[0].mxu0
      %v542 = vpop.f32.mrb[0].mxu0
      %v543 = vadd.f32 %v247, %v542
      %v544 = vpop.f32.mrb[0].mxu0
      %545 = vmatprep.mubr.bf16.mxu0 %v348
      %546 = vmatmul.mubr.bf16.gmra.mrb[0].mxu0 %v347
      %v547 = vpop.f32.mrb[0].mxu0
      %v548 = vadd.f32 %v247, %v547
      %v549 = vpop.f32.mrb[0].mxu0
      %v550 = vpop.f32.mrb[0].mxu0
      %v551 = vadd.f32 %v247, %v550
      %v552 = vpop.f32.mrb[0].mxu0
      %553 = vmatprep.mubr.bf16.mxu0 %v350
      %554 = vmatmul.mubr.bf16.gmra.mrb[0].mxu0 %v349
      %v555 = vpop.f32.mrb[0].mxu0
      %v556 = vadd.f32 %v247, %v555
      %v557 = vpop.f32.mrb[0].mxu0
      %v558 = vpop.f32.mrb[0].mxu0
      %v559 = vadd.f32 %v247, %v558
      %v560 = vpop.f32.mrb[0].mxu0
      %561 = vmatprep.mubr.bf16.mxu0 %v352
      %562 = vmatmul.mubr.bf16.gmra.mrb[0].mxu0 %v351
      %v563 = vpop.f32.mrb[0].mxu0
      %v564 = vadd.f32 %v247, %v563
      %v565 = vpop.f32.mrb[0].mxu0
      %v566 = vpop.f32.mrb[0].mxu0
      %v567 = vadd.f32 %v247, %v566
      %v568 = vpop.f32.mrb[0].mxu0
      %569 = vmatprep.mubr.bf16.mxu0 %v354
      %570 = vmatmul.mubr.bf16.gmra.mrb[0].mxu0 %v353
      %v571 = vpop.f32.mrb[0].mxu0
      %v572 = vadd.f32 %v247, %v571
      %v573 = vpop.f32.mrb[0].mxu0
      %v574 = vpop.f32.mrb[0].mxu0
      %v575 = vadd.f32 %v247, %v574
      %v576 = vpop.f32.mrb[0].mxu0
      %577 = vmatprep.mubr.bf16.mxu0 %v356
      %578 = vmatmul.mubr.bf16.gmra.mrb[0].mxu0 %v355
      %v579 = vpop.f32.mrb[0].mxu0
      %v580 = vadd.f32 %v247, %v579
      %v581 = vpop.f32.mrb[0].mxu0
      %v582 = vpop.f32.mrb[0].mxu0
      %v583 = vadd.f32 %v247, %v582
      %v584 = vpop.f32.mrb[0].mxu0
      %585 = vmatprep.mubr.bf16.mxu0 %v358
      %586 = vmatmul.mubr.bf16.gmra.mrb[0].mxu0 %v357
      %v587 = vpop.f32.mrb[0].mxu0
      %v588 = vadd.f32 %v247, %v587
      %v589 = vpop.f32.mrb[0].mxu0
      %v590 = vpop.f32.mrb[0].mxu0
      %v591 = vadd.f32 %v247, %v590
      %v592 = vpop.f32.mrb[0].mxu0
      %593 = vmatprep.mubr.bf16.mxu0 %v360
      %594 = vmatmul.mubr.bf16.gmra.mrb[0].mxu0 %v359
      %v595 = vpop.f32.mrb[0].mxu0
      %v596 = vadd.f32 %v247, %v595
      %v597 = vpop.f32.mrb[0].mxu0
      %v598 = vpop.f32.mrb[0].mxu0
      %v599 = vadd.f32 %v247, %v598
      %v600 = vpop.f32.mrb[0].mxu0
      %601 = vmatprep.mubr.bf16.mxu0 %v362
      %602 = vmatmul.mubr.bf16.gmra.mrb[0].mxu0 %v361
      %v603 = vpop.f32.mrb[0].mxu0
      %v604 = vadd.f32 %v247, %v603
      %v605 = vpop.f32.mrb[0].mxu0
      %v606 = vpop.f32.mrb[0].mxu0
      %v607 = vadd.f32 %v247, %v606
      %v608 = vpop.f32.mrb[0].mxu0
      %609 = vmatprep.mubr.bf16.mxu0 %v364
      %610 = vmatmul.mubr.bf16.gmra.mrb[0].mxu0 %v363
      %v611 = vpop.f32.mrb[0].mxu0
      %v612 = vadd.f32 %v247, %v611
      %v613 = vpop.f32.mrb[0].mxu0
      %v614 = vpop.f32.mrb[0].mxu0
      %v615 = vadd.f32 %v247, %v614
      %v616 = vpop.f32.mrb[0].mxu0
      %617 = vmatprep.mubr.bf16.mxu0 %v366
      %618 = vmatmul.mubr.bf16.gmra.mrb[0].mxu0 %v365
      %v619 = vpop.f32.mrb[0].mxu0
      %v620 = vadd.f32 %v247, %v619
      %v621 = vpop.f32.mrb[0].mxu0
      %v622 = vpop.f32.mrb[0].mxu0
      %v623 = vadd.f32 %v247, %v622
      %v624 = vpop.f32.mrb[0].mxu0
      %625 = vmatprep.mubr.bf16.mxu0 %v368
      %626 = vmatmul.mubr.bf16.gmra.mrb[0].mxu0 %v367
      %v627 = vpop.f32.mrb[0].mxu0
      %v628 = vadd.f32 %v247, %v627
      %v629 = vpop.f32.mrb[0].mxu0
      %v630 = vpop.f32.mrb[0].mxu0
      %v631 = vadd.f32 %v247, %v630
      %v632 = vpop.f32.mrb[0].mxu0
      %633 = vmatprep.mubr.bf16.mxu0 %v370
      %634 = vmatmul.mubr.bf16.gmra.mrb[0].mxu0 %v369
      %v635 = vpop.f32.mrb[0].mxu0
      %v636 = vadd.f32 %v247, %v635
      %v637 = vpop.f32.mrb[0].mxu0
      %v638 = vpop.f32.mrb[0].mxu0
      %v639 = vadd.f32 %v247, %v638
      %v640 = vpop.f32.mrb[0].mxu0
      %641 = vmatprep.mubr.bf16.mxu0 %v372
      %642 = vmatmul.mubr.bf16.gmra.mrb[0].mxu0 %v371
      %v643 = vpop.f32.mrb[0].mxu0
      %v644 = vadd.f32 %v247, %v643
      %v645 = vpop.f32.mrb[0].mxu0
      %v646 = vpop.f32.mrb[0].mxu0
      %v647 = vadd.f32 %v247, %v646
      %v648 = vpop.f32.mrb[0].mxu0
      %649 = vmatprep.mubr.bf16.mxu0 %v374
      %650 = vmatmul.mubr.bf16.gmra.mrb[0].mxu0 %v373
      %v651 = vpop.f32.mrb[0].mxu0
      %v652 = vadd.f32 %v247, %v651
      %v653 = vpop.f32.mrb[0].mxu0
      %v654 = vpop.f32.mrb[0].mxu0
      %v655 = vadd.f32 %v247, %v654
      %v656 = vpop.f32.mrb[0].mxu0
      %657 = vmatprep.mubr.bf16.mxu0 %v376
      %658 = vmatmul.mubr.bf16.gmra.mrb[0].mxu0 %v375
      %v659 = vpop.f32.mrb[0].mxu0
      %v660 = vadd.f32 %v247, %v659
      %v661 = vpop.f32.mrb[0].mxu0
      %v662 = vpop.f32.mrb[0].mxu0
      %v663 = vadd.f32 %v247, %v662
      %v664 = vpop.f32.mrb[0].mxu0
      %665 = vdwg.mxu0
      %v666 = vxor.u32 %v540, 2147483648
      %v667 = vxor.u32 %v543, 2147483648
      %v668 = vxor.u32 %v548, 2147483648
      %v669 = vxor.u32 %v551, 2147483648
      %v670 = vxor.u32 %v556, 2147483648
      %v671 = vxor.u32 %v559, 2147483648
      %v672 = vxor.u32 %v564, 2147483648
      %v673 = vxor.u32 %v567, 2147483648
      %v674 = vxor.u32 %v572, 2147483648
      %v675 = vxor.u32 %v575, 2147483648
      %v676 = vxor.u32 %v580, 2147483648
      %v677 = vxor.u32 %v583, 2147483648
      %v678 = vxor.u32 %v588, 2147483648
      %v679 = vxor.u32 %v591, 2147483648
      %v680 = vxor.u32 %v596, 2147483648
      %v681 = vxor.u32 %v599, 2147483648
      %v682 = vxor.u32 %v604, 2147483648
      %v683 = vxor.u32 %v607, 2147483648
      %v684 = vxor.u32 %v612, 2147483648
      %v685 = vxor.u32 %v615, 2147483648
      %v686 = vxor.u32 %v620, 2147483648
      %v687 = vxor.u32 %v623, 2147483648
      %v688 = vxor.u32 %v628, 2147483648
      %v689 = vxor.u32 %v631, 2147483648
      %v690 = vxor.u32 %v636, 2147483648
      %v691 = vxor.u32 %v639, 2147483648
      %v692 = vxor.u32 %v644, 2147483648
      %v693 = vxor.u32 %v647, 2147483648
      %v694 = vxor.u32 %v652, 2147483648
      %v695 = vxor.u32 %v655, 2147483648
      %v696 = vxor.u32 %v660, 2147483648
      %v697 = vxor.u32 %v663, 2147483648
      %v698 = vmul.f32 %v666, 1.442695
      %v699 = vpow.pop %v698
      %v700 = vmul.f32 %v667, 1.442695
      %v701 = vpow.pop %v700
      %v702 = vmul.f32 %v668, 1.442695
      %v703 = vpow.pop %v702
      %v704 = vmul.f32 %v669, 1.442695
      %v705 = vpow.pop %v704
      %v706 = vmul.f32 %v670, 1.442695
      %v707 = vpow.pop %v706
      %v708 = vmul.f32 %v671, 1.442695
      %v709 = vpow.pop %v708
      %v710 = vmul.f32 %v672, 1.442695
      %v711 = vpow.pop %v710
      %v712 = vmul.f32 %v673, 1.442695
      %v713 = vpow.pop %v712
      %v714 = vmul.f32 %v674, 1.442695
      %v715 = vpow.pop %v714
      %v716 = vmul.f32 %v675, 1.442695
      %v717 = vpow.pop %v716
      %v718 = vmul.f32 %v676, 1.442695
      %v719 = vpow.pop %v718
      %v720 = vmul.f32 %v677, 1.442695
      %v721 = vpow.pop %v720
      %v722 = vmul.f32 %v678, 1.442695
      %v723 = vpow.pop %v722
      %v724 = vmul.f32 %v679, 1.442695
      %v725 = vpow.pop %v724
      %v726 = vmul.f32 %v680, 1.442695
      %v727 = vpow.pop %v726
      %v728 = vmul.f32 %v681, 1.442695
      %v729 = vpow.pop %v728
      %v730 = vmul.f32 %v682, 1.442695
      %v731 = vpow.pop %v730
      %v732 = vmul.f32 %v683, 1.442695
      %v733 = vpow.pop %v732
      %v734 = vmul.f32 %v684, 1.442695
      %v735 = vpow.pop %v734
      %v736 = vmul.f32 %v685, 1.442695
      %v737 = vpow.pop %v736
      %v738 = vmul.f32 %v686, 1.442695
      %v739 = vpow.pop %v738
      %v740 = vmul.f32 %v687, 1.442695
      %v741 = vpow.pop %v740
      %v742 = vmul.f32 %v688, 1.442695
      %v743 = vpow.pop %v742
      %v744 = vmul.f32 %v689, 1.442695
      %v745 = vpow.pop %v744
      %v746 = vmul.f32 %v690, 1.442695
      %v747 = vpow.pop %v746
      %v748 = vmul.f32 %v691, 1.442695
      %v749 = vpow.pop %v748
      %v750 = vmul.f32 %v692, 1.442695
      %v751 = vpow.pop %v750
      %v752 = vmul.f32 %v693, 1.442695
      %v753 = vpow.pop %v752
      %v754 = vmul.f32 %v694, 1.442695
      %v755 = vpow.pop %v754
      %v756 = vmul.f32 %v695, 1.442695
      %v757 = vpow.pop %v756
      %v758 = vmul.f32 %v696, 1.442695
      %v759 = vpow.pop %v758
      %v760 = vmul.f32 %v697, 1.442695
      %v761 = vpow.pop %v760
      %v762 = vadd.f32 %v699, 1.0
      %v763 = vadd.f32 %v701, 1.0
      %v764 = vadd.f32 %v703, 1.0
      %v765 = vadd.f32 %v705, 1.0
      %v766 = vadd.f32 %v707, 1.0
      %v767 = vadd.f32 %v709, 1.0
      %v768 = vadd.f32 %v711, 1.0
      %v769 = vadd.f32 %v713, 1.0
      %v770 = vadd.f32 %v715, 1.0
      %v771 = vadd.f32 %v717, 1.0
      %v772 = vadd.f32 %v719, 1.0
      %v773 = vadd.f32 %v721, 1.0
      %v774 = vadd.f32 %v723, 1.0
      %v775 = vadd.f32 %v725, 1.0
      %v776 = vadd.f32 %v727, 1.0
      %v777 = vadd.f32 %v729, 1.0
      %v778 = vadd.f32 %v731, 1.0
      %v779 = vadd.f32 %v733, 1.0
      %v780 = vadd.f32 %v735, 1.0
      %v781 = vadd.f32 %v737, 1.0
      %v782 = vadd.f32 %v739, 1.0
      %v783 = vadd.f32 %v741, 1.0
      %v784 = vadd.f32 %v743, 1.0
      %v785 = vadd.f32 %v745, 1.0
      %v786 = vadd.f32 %v747, 1.0
      %v787 = vadd.f32 %v749, 1.0
      %v788 = vadd.f32 %v751, 1.0
      %v789 = vadd.f32 %v753, 1.0
      %v790 = vadd.f32 %v755, 1.0
      %v791 = vadd.f32 %v757, 1.0
      %v792 = vadd.f32 %v759, 1.0
      %v793 = vadd.f32 %v761, 1.0
      %v794 = vrcp.pop %v762
      %v795 = vmul.f32 1.0, %v794
      %v796 = vrcp.pop %v763
      %v797 = vmul.f32 1.0, %v796
      %v798 = vrcp.pop %v764
      %v799 = vmul.f32 1.0, %v798
      %v800 = vrcp.pop %v765
      %v801 = vmul.f32 1.0, %v800
      %v802 = vrcp.pop %v766
      %v803 = vmul.f32 1.0, %v802
      %v804 = vrcp.pop %v767
      %v805 = vmul.f32 1.0, %v804
      %v806 = vrcp.pop %v768
      %v807 = vmul.f32 1.0, %v806
      %v808 = vrcp.pop %v769
      %v809 = vmul.f32 1.0, %v808
      %v810 = vrcp.pop %v770
      %v811 = vmul.f32 1.0, %v810
      %v812 = vrcp.pop %v771
      %v813 = vmul.f32 1.0, %v812
      %v814 = vrcp.pop %v772
      %v815 = vmul.f32 1.0, %v814
      %v816 = vrcp.pop %v773
      %v817 = vmul.f32 1.0, %v816
      %v818 = vrcp.pop %v774
      %v819 = vmul.f32 1.0, %v818
      %v820 = vrcp.pop %v775
      %v821 = vmul.f32 1.0, %v820
      %v822 = vrcp.pop %v776
      %v823 = vmul.f32 1.0, %v822
      %v824 = vrcp.pop %v777
      %v825 = vmul.f32 1.0, %v824
      %v826 = vrcp.pop %v778
      %v827 = vmul.f32 1.0, %v826
      %v828 = vrcp.pop %v779
      %v829 = vmul.f32 1.0, %v828
      %v830 = vrcp.pop %v780
      %v831 = vmul.f32 1.0, %v830
      %v832 = vrcp.pop %v781
      %v833 = vmul.f32 1.0, %v832
      %v834 = vrcp.pop %v782
      %v835 = vmul.f32 1.0, %v834
      %v836 = vrcp.pop %v783
      %v837 = vmul.f32 1.0, %v836
      %v838 = vrcp.pop %v784
      %v839 = vmul.f32 1.0, %v838
      %v840 = vrcp.pop %v785
      %v841 = vmul.f32 1.0, %v840
      %v842 = vrcp.pop %v786
      %v843 = vmul.f32 1.0, %v842
      %v844 = vrcp.pop %v787
      %v845 = vmul.f32 1.0, %v844
      %v846 = vrcp.pop %v788
      %v847 = vmul.f32 1.0, %v846
      %v848 = vrcp.pop %v789
      %v849 = vmul.f32 1.0, %v848
      %v850 = vrcp.pop %v790
      %v851 = vmul.f32 1.0, %v850
      %v852 = vrcp.pop %v791
      %v853 = vmul.f32 1.0, %v852
      %v854 = vrcp.pop %v792
      %v855 = vmul.f32 1.0, %v854
      %v856 = vrcp.pop %v793
      %v857 = vmul.f32 1.0, %v856
      %vm858 = vcmask 23552
      %859 = vst.msk [vmem:[%s175] sm:$0xff] %vm858, %v795
      %860 = vst.msk [vmem:[%s175 + $0x8] sm:$0xff] %vm858, %v797
      %861 = vst.msk [vmem:[%s175 + $0x10] sm:$0xff] %vm858, %v799
      %862 = vst.msk [vmem:[%s175 + $0x18] sm:$0xff] %vm858, %v801
      %863 = vst.msk [vmem:[%s175 + $0x20] sm:$0xff] %vm858, %v803
      %864 = vst.msk [vmem:[%s175 + $0x28] sm:$0xff] %vm858, %v805
      %865 = vst.msk [vmem:[%s175 + $0x30] sm:$0xff] %vm858, %v807
      %866 = vst.msk [vmem:[%s175 + $0x38] sm:$0xff] %vm858, %v809
      %867 = vst.msk [vmem:[%s175 + $0x40] sm:$0xff] %vm858, %v811
      %868 = vst.msk [vmem:[%s175 + $0x48] sm:$0xff] %vm858, %v813
      %869 = vst.msk [vmem:[%s175 + $0x50] sm:$0xff] %vm858, %v815
      %870 = vst.msk [vmem:[%s175 + $0x58] sm:$0xff] %vm858, %v817
      %871 = vst.msk [vmem:[%s175 + $0x60] sm:$0xff] %vm858, %v819
      %872 = vst.msk [vmem:[%s175 + $0x68] sm:$0xff] %vm858, %v821
      %873 = vst.msk [vmem:[%s175 + $0x70] sm:$0xff] %vm858, %v823
      %874 = vst.msk [vmem:[%s175 + $0x78] sm:$0xff] %vm858, %v825
      %875 = vst.msk [vmem:[%s175 + $0x80] sm:$0xff] %vm858, %v827
      %876 = vst.msk [vmem:[%s175 + $0x88] sm:$0xff] %vm858, %v829
      %877 = vst.msk [vmem:[%s175 + $0x90] sm:$0xff] %vm858, %v831
      %878 = vst.msk [vmem:[%s175 + $0x98] sm:$0xff] %vm858, %v833
      %879 = vst.msk [vmem:[%s175 + $0xa0] sm:$0xff] %vm858, %v835
      %880 = vst.msk [vmem:[%s175 + $0xa8] sm:$0xff] %vm858, %v837
      %881 = vst.msk [vmem:[%s175 + $0xb0] sm:$0xff] %vm858, %v839
      %882 = vst.msk [vmem:[%s175 + $0xb8] sm:$0xff] %vm858, %v841
      %883 = vst.msk [vmem:[%s175 + $0xc0] sm:$0xff] %vm858, %v843
      %884 = vst.msk [vmem:[%s175 + $0xc8] sm:$0xff] %vm858, %v845
      %885 = vst.msk [vmem:[%s175 + $0xd0] sm:$0xff] %vm858, %v847
      %886 = vst.msk [vmem:[%s175 + $0xd8] sm:$0xff] %vm858, %v849
      %887 = vst.msk [vmem:[%s175 + $0xe0] sm:$0xff] %vm858, %v851
      %888 = vst.msk [vmem:[%s175 + $0xe8] sm:$0xff] %vm858, %v853
      %889 = vst.msk [vmem:[%s175 + $0xf0] sm:$0xff] %vm858, %v855
      %890 = vst.msk [vmem:[%s175 + $0xf8] sm:$0xff] %vm858, %v857
      %s891 = smul.u32 32, %s14
      %p892 = scmp.lt.s32.totalorder %s891, 63
      %s893 = scalar_select %p892, %s891, 63
      %s894 = smul.addr %s893, 8
      %s895 = scalar_lea.vmem %s3, %s894
      // Predicated region
      $region33: #{qvae_forward.29} parent=31 // pred_check
        %p896 = pneg %p100
      $region34: #{qvae_forward.29} parent=31 // pred_check_branch
        %898 = sbr.rel (%p896) target = $region36
      $region35: #{qvae_forward.29} parent=31 // pred_region
        %s899 = smul.u32 32, %s14
      $region36: #{qvae_forward.29} parent=31 // pred_fallthru
        _
    $region32: #{qvae_forward.29} parent=5 // pred_fallthru
      _
    %p900 = scmp.le.s32.totalorder 2, %s9
    // Predicated region
    $region37: #{qvae_forward.29} parent=5 // pred_check
      %p901 = pneg %p900
    $region38: #{qvae_forward.29} parent=5 // pred_check_branch
      %903 = sbr.rel (%p901) target = $region40
    $region39: #{qvae_forward.29} parent=5 // pred_region
      %s904 = ssub.s32 %s9, 2
      // Predicated region
      $region41: #{qvae_forward.29} parent=39 // pred_check
        %p905 = pneg %p106
      $region42: #{qvae_forward.29} parent=39 // pred_check_branch
        %907 = sbr.rel (%p905) target = $region44
      $region43: #{qvae_forward.29} parent=39 // pred_region
        %s908 = smul.u32 32, %s15
        %p909 = scmp.lt.s32.totalorder %s908, 63
        %s910 = scalar_select %p909, %s908, 63
        %s911 = smul.addr %s910, 8
        %s912 = scalar_lea.vmem %s3, %s911
      $region44: #{qvae_forward.29} parent=39 // pred_fallthru
        _
    $region40: #{qvae_forward.29} parent=5 // pred_fallthru
      _
  $region6: #{qvae_forward.29} parent=0 // loop_footer
    %s13 = sadd.s32 1, %s9
  $region7: #{qvae_forward.29} parent=0 // loop_footer_branch
    %8 = sbr.rel target = $region3
  $region8: #{qvae_forward.29} parent=0 // loop_exit
    _

</llo_original>
